<compile_context>
chip_gen: v6e
topology: v6e:2x2x1
jax: 0.10.0
libtpu: 0.0.40
codegen_flags: <defaults>
</compile_context>

<pallas_src>
import functools

import jax
import jax.numpy as jnp
from jax.experimental import pallas as pl
from jax.experimental.pallas import tpu as pltpu


def _silu(v):
    return v * jax.nn.sigmoid(v)


def cross_conv_kernel(x_ref, w1_ref, sb1_ref, w2_ref, sb2_ref, out_ref,
                      xpad_ref, ypad_ref, *, H, W, add):
    """One image per grid step.

    x_ref    : (H*W, C1)       bf16  pixel-major, channels-last
    w1_ref   : (3*C1, c_)      bf16  cv1 (1,3) taps fused along K (tap order w-1, w, w+1)
    sb1_ref  : (2, c_)         f32   folded BN scale/bias for cv1
    w2_ref   : (3*c_, C2)      bf16  cv2 (3,1) taps fused along K (tap order h-1, h, h+1)
    sb2_ref  : (2, C2)         f32   folded BN scale/bias for cv2
    out_ref  : (H*W, C2)       f32
    xpad_ref : (H*W + 2, C1)   bf16  scratch: x with 1-row zero halo (W-direction taps)
    ypad_ref : (H*W + 2W, c_)  bf16  scratch: cv1 output with W-row zero halos (H taps)
    """
    HW = H * W
    C1 = x_ref.shape[1]
    c_ = w1_ref.shape[1]

    x = x_ref[...]                                            # (HW, C1) bf16

    # ---- stage x with a 1-row zero halo; shifted loads give the w +/- 1 taps ----
    zero_row = jnp.zeros((1, C1), xpad_ref.dtype)
    xpad_ref[pl.ds(0, 1), :] = zero_row
    xpad_ref[pl.ds(HW + 1, 1), :] = zero_row
    xpad_ref[pl.ds(1, HW), :] = x

    # Row-boundary masks (only the W-direction shifts need them), computed once.
    wpos = jax.lax.broadcasted_iota(jnp.int32, (HW, 1), 0) % W
    zeros = jnp.zeros_like(x)
    xm1 = jnp.where(wpos == 0,     zeros, xpad_ref[pl.ds(0, HW), :])   # x[h, w-1]
    xp1 = jnp.where(wpos == W - 1, zeros, xpad_ref[pl.ds(2, HW), :])   # x[h, w+1]

    # ---- cv1: (1,3) conv as ONE matmul over K = 3*C1, then BN + SiLU (f32) ------
    xcat = jnp.concatenate([xm1, x, xp1], axis=1)             # (HW, 3*C1) bf16
    t = jnp.dot(xcat, w1_ref[...], preferred_element_type=jnp.float32)
    t = t * sb1_ref[0:1, :] + sb1_ref[1:2, :]
    t = _silu(t)
    y = t.astype(ypad_ref.dtype)                              # bf16 for next matmul

    # ---- stage y with W-row zero halos: shifted loads == exact zero padding in H -
    zero_rows = jnp.zeros((W, c_), ypad_ref.dtype)
    ypad_ref[pl.ds(0, W), :] = zero_rows
    ypad_ref[pl.ds(HW + W, W), :] = zero_rows
    ypad_ref[pl.ds(W, HW), :] = y

    ym1 = ypad_ref[pl.ds(0, HW), :]                           # y[h-1, w]
    yp1 = ypad_ref[pl.ds(2 * W, HW), :]                       # y[h+1, w]

    # ---- cv2: (3,1) conv as ONE matmul over K = 3*c_, then BN + SiLU (f32) ------
    ycat = jnp.concatenate([ym1, y, yp1], axis=1)             # (HW, 3*c_) bf16
    o = jnp.dot(ycat, w2_ref[...], preferred_element_type=jnp.float32)
    o = o * sb2_ref[0:1, :] + sb2_ref[1:2, :]
    o = _silu(o)

    if add:                                                   # shortcut and c1 == c2
        o = o + x.astype(jnp.float32)

    out_ref[...] = o.astype(out_ref.dtype)


def cross_conv_nhwc(x_nhwc, params, *, shortcut=False):
    """Channels-last CrossConv: (N, H, W, C1) -> (N, H, W, C2) f32 (no transposes)."""
    N, H, W, C1 = x_nhwc.shape
    w1f, sb1, w2f, sb2 = params
    c_, C2 = w1f.shape[1], w2f.shape[1]
    assert w1f.shape[0] == 3 * C1 and w2f.shape[0] == 3 * c_
    add = bool(shortcut and C1 == C2)
    HW = H * W

    x2d = x_nhwc.reshape(N, HW, C1).astype(jnp.bfloat16)      # bf16 halves HBM traffic

    kernel = functools.partial(cross_conv_kernel, H=H, W=W, add=add)

    flops = 2 * N * HW * (3 * C1 * c_ + 3 * c_ * C2)
    bytes_accessed = int(N * HW * C1 * 2 + N * HW * C2 * 4
                         + (w1f.size + w2f.size) * 2 + (sb1.size + sb2.size) * 4)
    cost = pl.CostEstimate(flops=flops,
                           transcendentals=N * HW * (c_ + C2),
                           bytes_accessed=bytes_accessed)

    out2d = pl.pallas_call(
        kernel,
        out_shape=jax.ShapeDtypeStruct((N, HW, C2), jnp.float32),
        grid=(N,),
        in_specs=[
            pl.BlockSpec((None, HW, C1), lambda n: (n, 0, 0)),  # per-image pixel tile
            pl.BlockSpec((3 * C1, c_), lambda n: (0, 0)),       # weights: VMEM-resident
            pl.BlockSpec((2, c_), lambda n: (0, 0)),
            pl.BlockSpec((3 * c_, C2), lambda n: (0, 0)),
            pl.BlockSpec((2, C2), lambda n: (0, 0)),
        ],
        out_specs=pl.BlockSpec((None, HW, C2), lambda n: (n, 0, 0)),
        scratch_shapes=[
            pltpu.VMEM((HW + 2, C1), jnp.bfloat16),        # x + 1-row zero halo
            pltpu.VMEM((HW + 2 * W, c_), jnp.bfloat16),    # cv1 out + W-row zero halos
        ],
        compiler_params=pltpu.CompilerParams(
            dimension_semantics=("parallel",),             # megacore-shard batch (v7x)
            vmem_limit_bytes=48 * 1024 * 1024),            # safe on v5e/v6e/v7x
        cost_estimate=cost,
    )(x2d, w1f, sb1, w2f, sb2)

    return out2d.reshape(N, H, W, C2)


def cross_conv_nchw(x_nchw, params, *, shortcut=False):
    """PyTorch-layout adapter. Prefer cross_conv_nhwc in a channels-last network."""
    x_nhwc = jnp.transpose(x_nchw, (0, 2, 3, 1))
    y = cross_conv_nhwc(x_nhwc, params, shortcut=shortcut)
    return jnp.transpose(y, (0, 3, 1, 2))


def _fold_bn(gamma, beta, mean, var, eps=1e-5):
    scale = gamma / jnp.sqrt(var + eps)
    bias = beta - mean * scale
    return jnp.stack([scale, bias], axis=0).astype(jnp.float32)   # (2, C)


def _bn_params(key, c):
    k1, k2, k3, k4 = jax.random.split(key, 4)
    gamma = 1.0 + 0.1 * jax.random.normal(k1, (c,), jnp.float32)
    beta = 0.1 * jax.random.normal(k2, (c,), jnp.float32)
    mean = 0.1 * jax.random.normal(k3, (c,), jnp.float32)
    var = jax.random.uniform(k4, (c,), jnp.float32, minval=0.5, maxval=1.5)
    return _fold_bn(gamma, beta, mean, var)


def init_params(key, c1, c2, k=3, e=1.0):
    """Random weights in PyTorch Conv2d layout, fused/folded for the kernel."""
    c_ = int(c2 * e)
    k0, k1, k2, k3 = jax.random.split(key, 4)

    # PyTorch Conv2d layouts: (cout, cin, kh, kw)
    w_cv1 = jax.random.normal(k0, (c_, c1, 1, k), jnp.float32) / jnp.sqrt(float(c1 * k))
    w_cv2 = jax.random.normal(k1, (c2, c_, k, 1), jnp.float32) / jnp.sqrt(float(c_ * k))

    # Fuse the k spatial taps along the contraction dim (tap-major, then cin):
    #   (cout, cin, 1, k) -> (k, cin, cout) -> (k*cin, cout);  tap 0 <-> w-1 / h-1.
    w1f = jnp.transpose(w_cv1[:, :, 0, :], (2, 1, 0)).reshape(k * c1, c_).astype(jnp.bfloat16)
    w2f = jnp.transpose(w_cv2[:, :, :, 0], (2, 1, 0)).reshape(k * c_, c2).astype(jnp.bfloat16)

    sb1 = _bn_params(k2, c_)   # inference-mode BN folded to per-channel scale/bias
    sb2 = _bn_params(k3, c2)
    return w1f, sb1, w2f, sb2


if __name__ == "__main__":
    key = jax.random.PRNGKey(0)
    kx, kp = jax.random.split(key)

    # Small but lane-dense: channels a multiple of 128 keeps MXU lanes full and
    # the output stores unmasked (per v5e feedback); spatial stays small.
    N, C1, C2, H, W = 2, 128, 128, 16, 16
    x_nchw = jax.random.normal(kx, (N, C1, H, W), jnp.float32)
    params = init_params(kp, C1, C2, k=3, e=1.0)

    out_sc = cross_conv_nchw(x_nchw, params, shortcut=True)    # shortcut-add path (c1==c2)
    out_ns = cross_conv_nchw(x_nchw, params, shortcut=False)   # module default path
    jax.block_until_ready((out_sc, out_ns))

    assert out_sc.shape == (N, C2, H, W), out_sc.shape
    assert out_ns.shape == (N, C2, H, W), out_ns.shape
    assert bool(jnp.all(jnp.isfinite(out_sc))) and bool(jnp.all(jnp.isfinite(out_ns)))
    print("KERNEL_OK")
</pallas_src>

<mosaic_0001>
module attributes {stable_mosaic.version = 11 : i64} {
  func.func @cross_conv_kernel(%arg0: i32, %arg1: memref<1x256x128xbf16, #tpu.memory_space<vmem>>, %arg2: memref<384x128xbf16, #tpu.memory_space<vmem>>, %arg3: memref<2x128xf32, #tpu.memory_space<vmem>>, %arg4: memref<384x128xbf16, #tpu.memory_space<vmem>>, %arg5: memref<2x128xf32, #tpu.memory_space<vmem>>, %arg6: memref<1x256x128xf32, #tpu.memory_space<vmem>>, %arg7: memref<258x128xbf16, #tpu.memory_space<vmem>>, %arg8: memref<288x128xbf16, #tpu.memory_space<vmem>>) attributes {dimension_semantics = [#tpu.dimension_semantics<parallel>], iteration_bounds = array<i64: 2>, scalar_prefetch = 0 : i64, scratch_operands = 2 : i64, tpu.core_type = #tpu.core_type<tc>, window_params = [{transform_indices = @transform_0, window_bounds = array<i64: 1, 256, 128>}, {pipeline_mode = #tpu.pipeline_mode<synchronous>, transform_indices = @transform_1, window_bounds = array<i64: 384, 128>}, {pipeline_mode = #tpu.pipeline_mode<synchronous>, transform_indices = @transform_2, window_bounds = array<i64: 2, 128>}, {pipeline_mode = #tpu.pipeline_mode<synchronous>, transform_indices = @transform_3, window_bounds = array<i64: 384, 128>}, {pipeline_mode = #tpu.pipeline_mode<synchronous>, transform_indices = @transform_4, window_bounds = array<i64: 2, 128>}, {transform_indices = @transform_5, window_bounds = array<i64: 1, 256, 128>}]} {
    %c0 = arith.constant 0 : index
    %c0_0 = arith.constant 0 : index
    %c0_1 = arith.constant 0 : index
    %0 = vector.load %arg1[%c0, %c0_0, %c0_1] : memref<1x256x128xbf16, #tpu.memory_space<vmem>>, vector<1x256x128xbf16>
    %1 = vector.shape_cast %0 : vector<1x256x128xbf16> to vector<256x128xbf16>
    %cst = arith.constant 0.000000e+00 : bf16
    %2 = vector.broadcast %cst : bf16 to vector<1x128xbf16>
    %c0_2 = arith.constant 0 : index
    %c0_3 = arith.constant 0 : index
    %3 = vector.load %arg7[%c0_2, %c0_3] : memref<258x128xbf16, #tpu.memory_space<vmem>>, vector<1x128xbf16>
    tpu.vector_store %arg7[%c0_2, %c0_3], %2 {strides = array<i32>} : memref<258x128xbf16, #tpu.memory_space<vmem>>, vector<1x128xbf16>,
    %c257 = arith.constant 257 : index
    %c0_4 = arith.constant 0 : index
    %4 = vector.load %arg7[%c257, %c0_4] : memref<258x128xbf16, #tpu.memory_space<vmem>>, vector<1x128xbf16>
    tpu.vector_store %arg7[%c257, %c0_4], %2 {strides = array<i32>} : memref<258x128xbf16, #tpu.memory_space<vmem>>, vector<1x128xbf16>,
    %c1 = arith.constant 1 : index
    %c0_5 = arith.constant 0 : index
    %5 = vector.load %arg7[%c1, %c0_5] : memref<258x128xbf16, #tpu.memory_space<vmem>>, vector<256x128xbf16>
    tpu.vector_store %arg7[%c1, %c0_5], %1 {strides = array<i32>} : memref<258x128xbf16, #tpu.memory_space<vmem>>, vector<256x128xbf16>,
    %6 = tpu.iota {dimensions = array<i32: 0>} : vector<256x1xi32>
    %c16_i32 = arith.constant 16 : i32
    %c0_i32 = arith.constant 0 : i32
    %7 = arith.cmpi eq, %c16_i32, %c0_i32 : i32
    %c1_i32 = arith.constant 1 : i32
    %8 = arith.select %7, %c1_i32, %c16_i32 : i32
    %9 = vector.broadcast %8 : i32 to vector<256x1xi32>
    %10 = arith.remsi %6, %9 : vector<256x1xi32>
    %c0_i32_6 = arith.constant 0 : i32
    %11 = vector.broadcast %c0_i32_6 : i32 to vector<256x1xi32>
    %12 = arith.cmpi ne, %10, %11 : vector<256x1xi32>
    %c0_i32_7 = arith.constant 0 : i32
    %13 = vector.broadcast %c0_i32_7 : i32 to vector<256x1xi32>
    %14 = arith.cmpi slt, %10, %13 : vector<256x1xi32>
    %c0_i32_8 = arith.constant 0 : i32
    %15 = arith.cmpi slt, %8, %c0_i32_8 : i32
    %16 = vector.broadcast %15 : i1 to vector<256x1xi1>
    %17 = vector.broadcast %16 : vector<256x1xi1> to vector<256x1xi1>
    %18 = arith.xori %14, %17 : vector<256x1xi1>
    %19 = arith.andi %18, %12 : vector<256x1xi1>
    %20 = vector.broadcast %8 : i32 to vector<256x1xi32>
    %21 = arith.addi %10, %20 : vector<256x1xi32>
    %22 = arith.select %19, %21, %10 : vector<256x1xi1>, vector<256x1xi32>
    %cst_9 = arith.constant 0.000000e+00 : bf16
    %23 = vector.broadcast %cst_9 : bf16 to vector<256x128xbf16>
    %c0_i32_10 = arith.constant 0 : i32
    %24 = vector.broadcast %c0_i32_10 : i32 to vector<256x1xi32>
    %25 = arith.cmpi eq, %22, %24 : vector<256x1xi32>
    %c0_11 = arith.constant 0 : index
    %c0_12 = arith.constant 0 : index
    %26 = vector.load %arg7[%c0_11, %c0_12] : memref<258x128xbf16, #tpu.memory_space<vmem>>, vector<256x128xbf16>
    %27 = vector.shape_cast %25 : vector<256x1xi1> to vector<256x1xi1>
    %28 = vector.broadcast %27 : vector<256x1xi1> to vector<256x128xi1>
    %29 = arith.select %28, %23, %26 : vector<256x128xi1>, vector<256x128xbf16>
    %c15_i32 = arith.constant 15 : i32
    %30 = vector.broadcast %c15_i32 : i32 to vector<256x1xi32>
    %31 = arith.cmpi eq, %22, %30 : vector<256x1xi32>
    %c2 = arith.constant 2 : index
    %c0_13 = arith.constant 0 : index
    %32 = vector.load %arg7[%c2, %c0_13] : memref<258x128xbf16, #tpu.memory_space<vmem>>, vector<256x128xbf16>
    %33 = vector.shape_cast %31 : vector<256x1xi1> to vector<256x1xi1>
    %34 = vector.broadcast %33 : vector<256x1xi1> to vector<256x128xi1>
    %35 = arith.select %34, %23, %32 : vector<256x128xi1>, vector<256x128xbf16>
    %36 = tpu.concatenate %29, %1, %35 in 1 : vector<256x128xbf16>, vector<256x128xbf16>, vector<256x128xbf16> -> vector<256x384xbf16>
    %c0_14 = arith.constant 0 : index
    %c0_15 = arith.constant 0 : index
    %37 = vector.load %arg2[%c0_14, %c0_15] : memref<384x128xbf16, #tpu.memory_space<vmem>>, vector<384x128xbf16>
    %cst_16 = arith.constant dense<0.000000e+00> : vector<256x128xf32>
    %38 = tpu.matmul %36, %37, %cst_16 {dimension_numbers = #tpu.dot_dimension_numbers<[1], [0], [0], [1], [0, 0, 1, 1], [], []>} : vector<256x384xbf16>, vector<384x128xbf16>, vector<256x128xf32> -> vector<256x128xf32>
    %c0_17 = arith.constant 0 : index
    %c0_18 = arith.constant 0 : index
    %39 = vector.load %arg3[%c0_17, %c0_18] : memref<2x128xf32, #tpu.memory_space<vmem>>, vector<1x128xf32>
    %40 = vector.broadcast %39 : vector<1x128xf32> to vector<256x128xf32>
    %41 = arith.mulf %38, %40 : vector<256x128xf32>
    %c1_19 = arith.constant 1 : index
    %c0_20 = arith.constant 0 : index
    %42 = vector.load %arg3[%c1_19, %c0_20] : memref<2x128xf32, #tpu.memory_space<vmem>>, vector<1x128xf32>
    %43 = vector.broadcast %42 : vector<1x128xf32> to vector<256x128xf32>
    %44 = arith.addf %41, %43 : vector<256x128xf32>
    %45 = arith.negf %44 : vector<256x128xf32>
    %46 = math.exp %45 : vector<256x128xf32>
    %cst_21 = arith.constant 1.000000e+00 : f32
    %47 = vector.broadcast %cst_21 : f32 to vector<256x128xf32>
    %48 = arith.addf %47, %46 : vector<256x128xf32>
    %49 = arith.divf %47, %48 : vector<256x128xf32>
    %50 = arith.mulf %44, %49 : vector<256x128xf32>
    %51 = arith.truncf %50 : vector<256x128xf32> to vector<256x128xbf16>
    %cst_22 = arith.constant 0.000000e+00 : bf16
    %52 = vector.broadcast %cst_22 : bf16 to vector<16x128xbf16>
    %c0_23 = arith.constant 0 : index
    %c0_24 = arith.constant 0 : index
    %53 = vector.load %arg8[%c0_23, %c0_24] : memref<288x128xbf16, #tpu.memory_space<vmem>>, vector<16x128xbf16>
    tpu.vector_store %arg8[%c0_23, %c0_24], %52 {strides = array<i32>} : memref<288x128xbf16, #tpu.memory_space<vmem>>, vector<16x128xbf16>,
    %c272 = arith.constant 272 : index
    %c0_25 = arith.constant 0 : index
    %54 = vector.load %arg8[%c272, %c0_25] : memref<288x128xbf16, #tpu.memory_space<vmem>>, vector<16x128xbf16>
    tpu.vector_store %arg8[%c272, %c0_25], %52 {strides = array<i32>} : memref<288x128xbf16, #tpu.memory_space<vmem>>, vector<16x128xbf16>,
    %c16 = arith.constant 16 : index
    %c0_26 = arith.constant 0 : index
    %55 = vector.load %arg8[%c16, %c0_26] : memref<288x128xbf16, #tpu.memory_space<vmem>>, vector<256x128xbf16>
    tpu.vector_store %arg8[%c16, %c0_26], %51 {strides = array<i32>} : memref<288x128xbf16, #tpu.memory_space<vmem>>, vector<256x128xbf16>,
    %c0_27 = arith.constant 0 : index
    %c0_28 = arith.constant 0 : index
    %56 = vector.load %arg8[%c0_27, %c0_28] : memref<288x128xbf16, #tpu.memory_space<vmem>>, vector<256x128xbf16>
    %c32 = arith.constant 32 : index
    %c0_29 = arith.constant 0 : index
    %57 = vector.load %arg8[%c32, %c0_29] : memref<288x128xbf16, #tpu.memory_space<vmem>>, vector<256x128xbf16>
    %58 = tpu.concatenate %56, %51, %57 in 1 : vector<256x128xbf16>, vector<256x128xbf16>, vector<256x128xbf16> -> vector<256x384xbf16>
    %c0_30 = arith.constant 0 : index
    %c0_31 = arith.constant 0 : index
    %59 = vector.load %arg4[%c0_30, %c0_31] : memref<384x128xbf16, #tpu.memory_space<vmem>>, vector<384x128xbf16>
    %cst_32 = arith.constant dense<0.000000e+00> : vector<256x128xf32>
    %60 = tpu.matmul %58, %59, %cst_32 {dimension_numbers = #tpu.dot_dimension_numbers<[1], [0], [0], [1], [0, 0, 1, 1], [], []>} : vector<256x384xbf16>, vector<384x128xbf16>, vector<256x128xf32> -> vector<256x128xf32>
    %c0_33 = arith.constant 0 : index
    %c0_34 = arith.constant 0 : index
    %61 = vector.load %arg5[%c0_33, %c0_34] : memref<2x128xf32, #tpu.memory_space<vmem>>, vector<1x128xf32>
    %62 = vector.broadcast %61 : vector<1x128xf32> to vector<256x128xf32>
    %63 = arith.mulf %60, %62 : vector<256x128xf32>
    %c1_35 = arith.constant 1 : index
    %c0_36 = arith.constant 0 : index
    %64 = vector.load %arg5[%c1_35, %c0_36] : memref<2x128xf32, #tpu.memory_space<vmem>>, vector<1x128xf32>
    %65 = vector.broadcast %64 : vector<1x128xf32> to vector<256x128xf32>
    %66 = arith.addf %63, %65 : vector<256x128xf32>
    %67 = arith.negf %66 : vector<256x128xf32>
    %68 = math.exp %67 : vector<256x128xf32>
    %cst_37 = arith.constant 1.000000e+00 : f32
    %69 = vector.broadcast %cst_37 : f32 to vector<256x128xf32>
    %70 = arith.addf %69, %68 : vector<256x128xf32>
    %71 = arith.divf %69, %70 : vector<256x128xf32>
    %72 = arith.mulf %66, %71 : vector<256x128xf32>
    %73 = arith.extf %1 : vector<256x128xbf16> to vector<256x128xf32>
    %74 = arith.addf %72, %73 : vector<256x128xf32>
    %c0_38 = arith.constant 0 : index
    %c0_39 = arith.constant 0 : index
    %c0_40 = arith.constant 0 : index
    %75 = vector.load %arg6[%c0_38, %c0_39, %c0_40] : memref<1x256x128xf32, #tpu.memory_space<vmem>>, vector<1x256x128xf32>
    %76 = vector.shape_cast %75 : vector<1x256x128xf32> to vector<256x128xf32>
    %77 = vector.shape_cast %74 : vector<256x128xf32> to vector<1x256x128xf32>
    tpu.vector_store %arg6[%c0_38, %c0_39, %c0_40], %77 {strides = array<i32>} : memref<1x256x128xf32, #tpu.memory_space<vmem>>, vector<1x256x128xf32>,
    return
  }
  func.func @transform_0(%arg0: i32) -> (i32, i32, i32) {
    %c0_i32 = arith.constant 0 : i32
    %c0_i32_0 = arith.constant 0 : i32
    %c0_i32_1 = arith.constant 0 : i32
    return %arg0, %c0_i32, %c0_i32_0 : i32, i32, i32
  }
  func.func @transform_1(%arg0: i32) -> (i32, i32) {
    %c0_i32 = arith.constant 0 : i32
    %c0_i32_0 = arith.constant 0 : i32
    %c0_i32_1 = arith.constant 0 : i32
    return %c0_i32, %c0_i32_0 : i32, i32
  }
  func.func @transform_2(%arg0: i32) -> (i32, i32) {
    %c0_i32 = arith.constant 0 : i32
    %c0_i32_0 = arith.constant 0 : i32
    %c0_i32_1 = arith.constant 0 : i32
    return %c0_i32, %c0_i32_0 : i32, i32
  }
  func.func @transform_3(%arg0: i32) -> (i32, i32) {
    %c0_i32 = arith.constant 0 : i32
    %c0_i32_0 = arith.constant 0 : i32
    %c0_i32_1 = arith.constant 0 : i32
    return %c0_i32, %c0_i32_0 : i32, i32
  }
  func.func @transform_4(%arg0: i32) -> (i32, i32) {
    %c0_i32 = arith.constant 0 : i32
    %c0_i32_0 = arith.constant 0 : i32
    %c0_i32_1 = arith.constant 0 : i32
    return %c0_i32, %c0_i32_0 : i32, i32
  }
  func.func @transform_5(%arg0: i32) -> (i32, i32, i32) {
    %c0_i32 = arith.constant 0 : i32
    %c0_i32_0 = arith.constant 0 : i32
    %c0_i32_1 = arith.constant 0 : i32
    return %arg0, %c0_i32, %c0_i32_0 : i32, i32, i32
  }
}

</mosaic_0001>

<llo_original>
// kernel: tpu_custom_call.1
$region0: #{tpu_custom_call.1}
  #allocation0 [shape = 'u32[]', space=smem, size = 0x4, offset = 0x4, fixed_abs, tag = 'smem constant byte address 0x4 - core index']
  #allocation1 [shape = 'u32[144,128]{1,0:T(1,128)}', space=vmem, size = 0x12000, scoped, tag = 'internal scratch']
  #allocation2 [shape = 'bf16[258,128]{1,0:T(8,128)(2,1)}', space=vmem, size = 0x10800, scoped, tag = 'scratch operand']
  #allocation3 [shape = 'bf16[288,128]{1,0:T(8,128)(2,1)}', space=vmem, size = 0x12000, scoped, tag = 'scratch operand']
  %s0 = inlined_call_operand.hbm [shape: bf16[2,256,128], index: 0, kind: input, shape index: {}]
  %s1 = inlined_call_operand.hbm [shape: bf16[384,128], index: 1, kind: input, shape index: {}]
  %s2 = inlined_call_operand.vmem [shape: f32[2,128], index: 2, kind: input, shape index: {}]
  %s3 = inlined_call_operand.hbm [shape: bf16[384,128], index: 3, kind: input, shape index: {}]
  %s4 = inlined_call_operand.vmem [shape: f32[2,128], index: 4, kind: input, shape index: {}]
  %s5 = inlined_call_operand.hbm [shape: f32[2,256,128], index: 5, kind: output, shape index: {}]
  %s6 = sld [smem:[#allocation0]]
  $region65: #{tpu_custom_call.1} parent=0
    _
  %s8 = ssub.s32 1, %s6
  %s9 = scalar_select 0, %s8, %s6
  $region1: #{tpu_custom_call.1} parent=0
    #allocation4 [shape = 'u8[131072]{0}', space=vmem, size = 0x20000, scoped, tag = 'input window, operand 0']
    #allocation5 [shape = 's32[2]{0}', space=sflag, size = 0x8, scoped, tag = 'scoped memory for tpu_custom_call.1']
    #allocation6 [shape = 's32[2]{0}', space=sflag, size = 0x8, scoped, tag = 'scoped memory for tpu_custom_call.1']
    #allocation7 [shape = 'u8[98304]{0}', space=vmem, size = 0x18000, scoped, tag = 'input window, operand 1, single buffered']
    #allocation8 [shape = 's32[1]{0}', space=sflag, size = 0x4, scoped, tag = 'scoped memory for tpu_custom_call.1']
    #allocation9 [shape = 'u8[98304]{0}', space=vmem, size = 0x18000, scoped, tag = 'input window, operand 3, single buffered']
    #allocation10 [shape = 'u8[262144]{0}', space=vmem, size = 0x40000, scoped, tag = 'output window, operand 0']
    %10 = vsyncpa [#allocation5], 0
    %s11 = scalar_lea.sflag [#allocation5], 1
    %12 = vsyncpa %s11, 0
    %13 = vsyncpa [#allocation8], 0
    %14 = vsyncpa [#allocation6], 0
    %s15 = scalar_lea.sflag [#allocation6], 1
    %16 = vsyncpa %s15, 0
    loop: start=0, step=1, limit=4
    $region2: #{tpu_custom_call.1} parent=1 // loop_pre_header
      _
    $region3: #{tpu_custom_call.1} parent=1 // loop_header
      %s18 = sphi 0, %s22
      %p19 = scmp.ge.s32.totalorder %s18, 4
      %s28 = sphi 0, %s30
      %s31 = sphi 0, %s28
      %s32 = sphi 0, %s31
      %s48 = sphi 0, %s32
      %s52 = sphi 0, %s52
      %s54 = sphi 0, %s52
      %s55 = sphi 0, %s54
      %s69 = sphi 0, %s55
      %s73 = sphi 0, %s73
      %s75 = sphi 0, %s73
      %s76 = sphi 0, %s75
      %s90 = sphi 0, %s76
      %s94 = sphi 0, %s94
      %s96 = sphi 0, %s94
      %s97 = sphi 0, %s96
      %s111 = sphi 0, %s97
      %s115 = sphi 0, %s115
      %s117 = sphi 0, %s115
      %s118 = sphi 0, %s117
      %s132 = sphi 0, %s118
      %s138 = sphi 0, %s140
      %s141 = sphi 0, %s138
      %s142 = sphi 0, %s141
      %s158 = sphi 0, %s142
    $region4: #{tpu_custom_call.1} parent=1 // loop_header_branch
      %21 = sbr.rel (%p19) target = $region8
    $region5: #{tpu_custom_call.1} parent=1 // loop_body
      %s23 = ssub.s32 %s18, 1
      %s24 = ssub.s32 %s18, 2
      %s25 = sadd.s32 %s18, 1
      %s26 = ssub.s32 %s18, %s25
      %p27 = scmp.eq.s32.totalorder %s26, 0
      %s29 = sadd.s32 %s28, 1
      %s30 = scalar_select %p27, %s28, %s29
      %p33 = pneg %p27
      %p34 = scmp.eq.s32.totalorder %s18, 1
      %p35 = por %p33, %p34
      %p36 = scmp.ne.s32.totalorder %s28, %s31
      %p37 = scmp.eq.s32.totalorder %s18, 0
      %p38 = por %p36, %p37
      %p39 = scmp.ne.s32.totalorder %s28, %s31
      %p40 = scmp.eq.s32.totalorder %s23, 1
      %p41 = por %p39, %p40
      %p42 = scmp.ne.s32.totalorder %s31, %s32
      %p43 = scmp.eq.s32.totalorder %s23, 0
      %p44 = por %p42, %p43
      %p45 = scmp.ne.s32.totalorder %s31, %s32
      %p46 = scmp.eq.s32.totalorder %s24, 1
      %p47 = por %p45, %p46
      %p49 = scmp.ne.s32.totalorder %s32, %s48
      %p50 = scmp.eq.s32.totalorder %s24, 0
      %p51 = por %p49, %p50
      %s53 = sadd.s32 %s52, 1
      %p56 = scmp.eq.s32.totalorder %s18, 1
      %p57 = scmp.ne.s32.totalorder %s52, %s54
      %p58 = scmp.eq.s32.totalorder %s18, 0
      %p59 = por %p57, %p58
      %p60 = scmp.ne.s32.totalorder %s52, %s54
      %p61 = scmp.eq.s32.totalorder %s23, 1
      %p62 = por %p60, %p61
      %p63 = scmp.ne.s32.totalorder %s54, %s55
      %p64 = scmp.eq.s32.totalorder %s23, 0
      %p65 = por %p63, %p64
      %p66 = scmp.ne.s32.totalorder %s54, %s55
      %p67 = scmp.eq.s32.totalorder %s24, 1
      %p68 = por %p66, %p67
      %p70 = scmp.ne.s32.totalorder %s55, %s69
      %p71 = scmp.eq.s32.totalorder %s24, 0
      %p72 = por %p70, %p71
      %s74 = sadd.s32 %s73, 1
      %p77 = scmp.eq.s32.totalorder %s18, 1
      %p78 = scmp.ne.s32.totalorder %s73, %s75
      %p79 = scmp.eq.s32.totalorder %s18, 0
      %p80 = por %p78, %p79
      %p81 = scmp.ne.s32.totalorder %s73, %s75
      %p82 = scmp.eq.s32.totalorder %s23, 1
      %p83 = por %p81, %p82
      %p84 = scmp.ne.s32.totalorder %s75, %s76
      %p85 = scmp.eq.s32.totalorder %s23, 0
      %p86 = por %p84, %p85
      %p87 = scmp.ne.s32.totalorder %s75, %s76
      %p88 = scmp.eq.s32.totalorder %s24, 1
      %p89 = por %p87, %p88
      %p91 = scmp.ne.s32.totalorder %s76, %s90
      %p92 = scmp.eq.s32.totalorder %s24, 0
      %p93 = por %p91, %p92
      %s95 = sadd.s32 %s94, 1
      %p98 = scmp.eq.s32.totalorder %s18, 1
      %p99 = scmp.ne.s32.totalorder %s94, %s96
      %p100 = scmp.eq.s32.totalorder %s18, 0
      %p101 = por %p99, %p100
      %p102 = scmp.ne.s32.totalorder %s94, %s96
      %p103 = scmp.eq.s32.totalorder %s23, 1
      %p104 = por %p102, %p103
      %p105 = scmp.ne.s32.totalorder %s96, %s97
      %p106 = scmp.eq.s32.totalorder %s23, 0
      %p107 = por %p105, %p106
      %p108 = scmp.ne.s32.totalorder %s96, %s97
      %p109 = scmp.eq.s32.totalorder %s24, 1
      %p110 = por %p108, %p109
      %p112 = scmp.ne.s32.totalorder %s97, %s111
      %p113 = scmp.eq.s32.totalorder %s24, 0
      %p114 = por %p112, %p113
      %s116 = sadd.s32 %s115, 1
      %p119 = scmp.eq.s32.totalorder %s18, 1
      %p120 = scmp.ne.s32.totalorder %s115, %s117
      %p121 = scmp.eq.s32.totalorder %s18, 0
      %p122 = por %p120, %p121
      %p123 = scmp.ne.s32.totalorder %s115, %s117
      %p124 = scmp.eq.s32.totalorder %s23, 1
      %p125 = por %p123, %p124
      %p126 = scmp.ne.s32.totalorder %s117, %s118
      %p127 = scmp.eq.s32.totalorder %s23, 0
      %p128 = por %p126, %p127
      %p129 = scmp.ne.s32.totalorder %s117, %s118
      %p130 = scmp.eq.s32.totalorder %s24, 1
      %p131 = por %p129, %p130
      %p133 = scmp.ne.s32.totalorder %s118, %s132
      %p134 = scmp.eq.s32.totalorder %s24, 0
      %p135 = por %p133, %p134
      %s136 = ssub.s32 %s18, %s25
      %p137 = scmp.eq.s32.totalorder %s136, 0
      %s139 = sadd.s32 %s138, 1
      %s140 = scalar_select %p137, %s138, %s139
      %p143 = pneg %p137
      %p144 = scmp.eq.s32.totalorder %s18, 1
      %p145 = por %p143, %p144
      %p146 = scmp.ne.s32.totalorder %s138, %s141
      %p147 = scmp.eq.s32.totalorder %s18, 0
      %p148 = por %p146, %p147
      %p149 = scmp.ne.s32.totalorder %s138, %s141
      %p150 = scmp.eq.s32.totalorder %s23, 1
      %p151 = por %p149, %p150
      %p152 = scmp.ne.s32.totalorder %s141, %s142
      %p153 = scmp.eq.s32.totalorder %s23, 0
      %p154 = por %p152, %p153
      %p155 = scmp.ne.s32.totalorder %s141, %s142
      %p156 = scmp.eq.s32.totalorder %s24, 1
      %p157 = por %p155, %p156
      %p159 = scmp.ne.s32.totalorder %s142, %s158
      %p160 = scmp.eq.s32.totalorder %s24, 0
      %p161 = por %p159, %p160
      %p162 = scmp.le.s32.totalorder 1, %s18
      %p163 = scmp.lt.s32.totalorder %s18, 3
      %p164 = pnand %p162, %p163
      %p165 = pneg %p164
      // Predicated region
      $region9: #{tpu_custom_call.1} parent=5 // pred_check
        _
      $region10: #{tpu_custom_call.1} parent=5 // pred_check_branch
        %167 = sbr.rel (%p164) target = $region12
      $region11: #{tpu_custom_call.1} parent=5 // pred_region
        %s168 = ssub.s32 %s18, 1
        // Predicated region
        $region13: #{tpu_custom_call.1} parent=11 // pred_check
          %p169 = pneg %p65
        $region14: #{tpu_custom_call.1} parent=11 // pred_check_branch
          %171 = sbr.rel (%p169) target = $region16
        $region15: #{tpu_custom_call.1} parent=11 // pred_region
          %s173 = ssub.s32 3072, 3072
          %174 = vsyncadd [#allocation8], %s173
          %s175 = sshll.u32 [#allocation7], 4
          %s176 = int_to_ptr.vmem [resolvable:$true] %s175
          %181 = dma.hbm_to_vmem [thread:$0]  %s1, 3072, %s176, [#allocation8], 64, 64, 4
        $region16: #{tpu_custom_call.1} parent=11 // pred_fallthru
          _
        // Predicated region
        $region17: #{tpu_custom_call.1} parent=11 // pred_check
          %p182 = pneg %p86
        $region18: #{tpu_custom_call.1} parent=11 // pred_check_branch
          %184 = sbr.rel (%p182) target = $region20
        $region19: #{tpu_custom_call.1} parent=11 // pred_region
          _
        $region20: #{tpu_custom_call.1} parent=11 // pred_fallthru
          _
        // Predicated region
        $region21: #{tpu_custom_call.1} parent=11 // pred_check
          %p185 = pneg %p107
        $region22: #{tpu_custom_call.1} parent=11 // pred_check_branch
          %187 = sbr.rel (%p185) target = $region24
        $region23: #{tpu_custom_call.1} parent=11 // pred_region
          %s189 = ssub.s32 3072, 3072
          %190 = vsyncadd [#allocation8], %s189
          %s191 = sshll.u32 [#allocation9], 4
          %s192 = int_to_ptr.vmem [resolvable:$true] %s191
          %197 = dma.hbm_to_vmem [thread:$0]  %s3, 3072, %s192, [#allocation8], 64, 64, 4
        $region24: #{tpu_custom_call.1} parent=11 // pred_fallthru
          _
        // Predicated region
        $region25: #{tpu_custom_call.1} parent=11 // pred_check
          %p198 = pneg %p128
        $region26: #{tpu_custom_call.1} parent=11 // pred_check_branch
          %200 = sbr.rel (%p198) target = $region28
        $region27: #{tpu_custom_call.1} parent=11 // pred_region
          _
        $region28: #{tpu_custom_call.1} parent=11 // pred_fallthru
          _
      $region12: #{tpu_custom_call.1} parent=5 // pred_fallthru
        _
      %p201 = scmp.lt.s32.totalorder %s18, 2
      // Predicated region
      $region29: #{tpu_custom_call.1} parent=5 // pred_check
        %p202 = pneg %p201
      $region30: #{tpu_custom_call.1} parent=5 // pred_check_branch
        %204 = sbr.rel (%p202) target = $region32
      $region31: #{tpu_custom_call.1} parent=5 // pred_region
        // Predicated region
        $region33: #{tpu_custom_call.1} parent=31 // pred_check
          %p205 = pneg %p38
        $region34: #{tpu_custom_call.1} parent=31 // pred_check_branch
          %207 = sbr.rel (%p205) target = $region36
        $region35: #{tpu_custom_call.1} parent=31 // pred_region
          %s208 = sand.u32 %s28, 1
          %s209 = scalar_lea.sflag [#allocation5], %s208
          %s210 = sand.u32 %s28, 1
          %s211 = smul.addr %s210, 128
          %s212 = scalar_lea.vmem [#allocation4], %s211
          %s214 = ssub.s32 2048, 2048
          %215 = vsyncadd %s209, %s214
          %s216 = smul.addr %s18, 32
          %s217 = smul.addr %s216, 64
          %s218 = scalar_lea.hbm %s0, %s217
          %s219 = sshll.u32 %s212, 4
          %s220 = int_to_ptr.vmem [resolvable:$true] %s219
          %225 = dma.hbm_to_vmem [thread:$0]  %s218, 2048, %s220, %s209, 64, 64, 4
        $region36: #{tpu_custom_call.1} parent=31 // pred_fallthru
          _
      $region32: #{tpu_custom_call.1} parent=5 // pred_fallthru
        _
      %p226 = scmp.le.s32.totalorder 1, %s18
      %p227 = scmp.lt.s32.totalorder %s18, 3
      %p228 = pnand %p226, %p227
      %p229 = pneg %p228
      // Predicated region
      $region37: #{tpu_custom_call.1} parent=5 // pred_check
        _
      $region38: #{tpu_custom_call.1} parent=5 // pred_check_branch
        %231 = sbr.rel (%p228) target = $region40
      $region39: #{tpu_custom_call.1} parent=5 // pred_region
        %s232 = ssub.s32 %s18, 1
        %s233 = sand.u32 %s31, 1
        %s234 = scalar_lea.sflag [#allocation5], %s233
        %s235 = sand.u32 %s31, 1
        %s236 = smul.addr %s235, 128
        %s237 = scalar_lea.vmem [#allocation4], %s236
        // Predicated region
        $region41: #{tpu_custom_call.1} parent=39 // pred_check
          %p238 = pneg %p44
        $region42: #{tpu_custom_call.1} parent=39 // pred_check_branch
          %240 = sbr.rel (%p238) target = $region44
        $region43: #{tpu_custom_call.1} parent=39 // pred_region
          %241 = dma.done %s234, 2048
        $region44: #{tpu_custom_call.1} parent=39 // pred_fallthru
          _
        // Predicated region
        $region45: #{tpu_custom_call.1} parent=39 // pred_check
          %p242 = pneg %p65
        $region46: #{tpu_custom_call.1} parent=39 // pred_check_branch
          %244 = sbr.rel (%p242) target = $region48
        $region47: #{tpu_custom_call.1} parent=39 // pred_region
          %245 = dma.done [#allocation8], 3072
        $region48: #{tpu_custom_call.1} parent=39 // pred_fallthru
          _
        // Predicated region
        $region49: #{tpu_custom_call.1} parent=39 // pred_check
          %p246 = pneg %p107
        $region50: #{tpu_custom_call.1} parent=39 // pred_check_branch
          %248 = sbr.rel (%p246) target = $region52
        $region51: #{tpu_custom_call.1} parent=39 // pred_region
          %249 = dma.done [#allocation8], 3072
        $region52: #{tpu_custom_call.1} parent=39 // pred_fallthru
          _
        %s250 = sand.u32 %s31, 1
        %s251 = scalar_lea.sflag [#allocation5], %s250
        %s252 = sand.u32 %s31, 1
        %s253 = smul.addr %s252, 128
        %s254 = scalar_lea.vmem [#allocation4], %s253
        %p255 = pneg %p44
        %p256 = pneg %p41
        %p257 = pneg %p65
        %p258 = pneg %p62
        %p259 = pneg %p86
        %p260 = pneg %p83
        %p261 = pneg %p107
        %p262 = pneg %p104
        %p263 = pneg %p128
        %p264 = pneg %p125
        %p265 = pneg %p154
        %p266 = pneg %p151
        %s267 = sand.u32 %s141, 1
        %s268 = scalar_lea.sflag [#allocation6], %s267
        %s269 = sand.u32 %s141, 1
        %s270 = smul.addr %s269, 256
        %s271 = scalar_lea.vmem [#allocation10], %s270
        %v275 = vld [vmem:[%s237] sm:$0xf]
        %v276 = vld [vmem:[%s237 + $0x4] sm:$0xf]
        %v277 = vld [vmem:[%s237 + $0x8] sm:$0xf]
        %v278 = vld [vmem:[%s237 + $0xc] sm:$0xf]
        %v279 = vld [vmem:[%s237 + $0x10] sm:$0xf]
        %v280 = vld [vmem:[%s237 + $0x14] sm:$0xf]
        %v281 = vld [vmem:[%s237 + $0x18] sm:$0xf]
        %v282 = vld [vmem:[%s237 + $0x1c] sm:$0xf]
        %v283 = vld [vmem:[%s237 + $0x20] sm:$0xf]
        %v284 = vld [vmem:[%s237 + $0x24] sm:$0xf]
        %v285 = vld [vmem:[%s237 + $0x28] sm:$0xf]
        %v286 = vld [vmem:[%s237 + $0x2c] sm:$0xf]
        %v287 = vld [vmem:[%s237 + $0x30] sm:$0xf]
        %v288 = vld [vmem:[%s237 + $0x34] sm:$0xf]
        %v289 = vld [vmem:[%s237 + $0x38] sm:$0xf]
        %v290 = vld [vmem:[%s237 + $0x3c] sm:$0xf]
        %v291 = vld [vmem:[%s237 + $0x40] sm:$0xf]
        %v292 = vld [vmem:[%s237 + $0x44] sm:$0xf]
        %v293 = vld [vmem:[%s237 + $0x48] sm:$0xf]
        %v294 = vld [vmem:[%s237 + $0x4c] sm:$0xf]
        %v295 = vld [vmem:[%s237 + $0x50] sm:$0xf]
        %v296 = vld [vmem:[%s237 + $0x54] sm:$0xf]
        %v297 = vld [vmem:[%s237 + $0x58] sm:$0xf]
        %v298 = vld [vmem:[%s237 + $0x5c] sm:$0xf]
        %v299 = vld [vmem:[%s237 + $0x60] sm:$0xf]
        %v300 = vld [vmem:[%s237 + $0x64] sm:$0xf]
        %v301 = vld [vmem:[%s237 + $0x68] sm:$0xf]
        %v302 = vld [vmem:[%s237 + $0x6c] sm:$0xf]
        %v303 = vld [vmem:[%s237 + $0x70] sm:$0xf]
        %v304 = vld [vmem:[%s237 + $0x74] sm:$0xf]
        %v305 = vld [vmem:[%s237 + $0x78] sm:$0xf]
        %v306 = vld [vmem:[%s237 + $0x7c] sm:$0xf]
        %vm307 = vcmask 1040384
        %vm308 = vsmask.f32 256
        %vm309 = vmand %vm307, %vm308
        %v310 = vld [vmem:[#allocation2] sm:$0x1]
        %v311 = vsel %vm309, 0, %v310
        %312 = vst [vmem:[#allocation2] sm:$0x1] %v311
        %vm313 = vsmask.f32 7938
        %vm314 = vmand %vm307, %vm313
        %v315 = vld [vmem:[#allocation2 + $0x80] sm:$0x1]
        %v316 = vsel %vm314, 0, %v315
        %317 = vst [vmem:[#allocation2 + $0x80] sm:$0x1] %v316
        %vm318 = vsmask.f32 4368
        %vm319 = vmor %vm308, %vm318
        %v321 = vshrl.u32 %v275, 16
        %v323 = vrot.slane %v321, 7
        %v324 = vshll.u32 %v275, 16
        %v326 = vor.u32 %v323, %v324
        %v327 = vrot.slane %v323, 4
        %v329 = vshrl.u32 %v276, 16
        %v331 = vrot.slane %v329, 7
        %v332 = vshll.u32 %v276, 16
        %v334 = vor.u32 %v331, %v332
        %v335 = vsel %vm319, %v327, %v334
        %v336 = vrot.slane %v331, 4
        %v338 = vshrl.u32 %v277, 16
        %v340 = vrot.slane %v338, 7
        %v341 = vshll.u32 %v277, 16
        %v343 = vor.u32 %v340, %v341
        %v344 = vsel %vm319, %v336, %v343
        %v345 = vrot.slane %v340, 4
        %v347 = vshrl.u32 %v278, 16
        %v349 = vrot.slane %v347, 7
        %v350 = vshll.u32 %v278, 16
        %v352 = vor.u32 %v349, %v350
        %v353 = vsel %vm319, %v345, %v352
        %v354 = vrot.slane %v349, 4
        %v356 = vshrl.u32 %v279, 16
        %v358 = vrot.slane %v356, 7
        %v359 = vshll.u32 %v279, 16
        %v361 = vor.u32 %v358, %v359
        %v362 = vsel %vm319, %v354, %v361
        %v363 = vrot.slane %v358, 4
        %v365 = vshrl.u32 %v280, 16
        %v367 = vrot.slane %v365, 7
        %v368 = vshll.u32 %v280, 16
        %v370 = vor.u32 %v367, %v368
        %v371 = vsel %vm319, %v363, %v370
        %v372 = vrot.slane %v367, 4
        %v374 = vshrl.u32 %v281, 16
        %v376 = vrot.slane %v374, 7
        %v377 = vshll.u32 %v281, 16
        %v379 = vor.u32 %v376, %v377
        %v380 = vsel %vm319, %v372, %v379
        %v381 = vrot.slane %v376, 4
        %v383 = vshrl.u32 %v282, 16
        %v385 = vrot.slane %v383, 7
        %v386 = vshll.u32 %v282, 16
        %v388 = vor.u32 %v385, %v386
        %v389 = vsel %vm319, %v381, %v388
        %v390 = vrot.slane %v385, 4
        %v392 = vshrl.u32 %v283, 16
        %v394 = vrot.slane %v392, 7
        %v395 = vshll.u32 %v283, 16
        %v397 = vor.u32 %v394, %v395
        %v398 = vsel %vm319, %v390, %v397
        %v399 = vrot.slane %v394, 4
        %v401 = vshrl.u32 %v284, 16
        %v403 = vrot.slane %v401, 7
        %v404 = vshll.u32 %v284, 16
        %v406 = vor.u32 %v403, %v404
        %v407 = vsel %vm319, %v399, %v406
        %v408 = vrot.slane %v403, 4
        %v410 = vshrl.u32 %v285, 16
        %v412 = vrot.slane %v410, 7
        %v413 = vshll.u32 %v285, 16
        %v415 = vor.u32 %v412, %v413
        %v416 = vsel %vm319, %v408, %v415
        %v417 = vrot.slane %v412, 4
        %v419 = vshrl.u32 %v286, 16
        %v421 = vrot.slane %v419, 7
        %v422 = vshll.u32 %v286, 16
        %v424 = vor.u32 %v421, %v422
        %v425 = vsel %vm319, %v417, %v424
        %v426 = vrot.slane %v421, 4
        %v428 = vshrl.u32 %v287, 16
        %v430 = vrot.slane %v428, 7
        %v431 = vshll.u32 %v287, 16
        %v433 = vor.u32 %v430, %v431
        %v434 = vsel %vm319, %v426, %v433
        %v435 = vrot.slane %v430, 4
        %v437 = vshrl.u32 %v288, 16
        %v439 = vrot.slane %v437, 7
        %v440 = vshll.u32 %v288, 16
        %v442 = vor.u32 %v439, %v440
        %v443 = vsel %vm319, %v435, %v442
        %v444 = vrot.slane %v439, 4
        %v446 = vshrl.u32 %v289, 16
        %v448 = vrot.slane %v446, 7
        %v449 = vshll.u32 %v289, 16
        %v451 = vor.u32 %v448, %v449
        %v452 = vsel %vm319, %v444, %v451
        %v453 = vrot.slane %v448, 4
        %v455 = vshrl.u32 %v290, 16
        %v457 = vrot.slane %v455, 7
        %v458 = vshll.u32 %v290, 16
        %v460 = vor.u32 %v457, %v458
        %v461 = vsel %vm319, %v453, %v460
        %v462 = vrot.slane %v457, 4
        %v464 = vshrl.u32 %v291, 16
        %v466 = vrot.slane %v464, 7
        %v467 = vshll.u32 %v291, 16
        %v469 = vor.u32 %v466, %v467
        %v470 = vsel %vm319, %v462, %v469
        %v471 = vrot.slane %v466, 4
        %v473 = vshrl.u32 %v292, 16
        %v475 = vrot.slane %v473, 7
        %v476 = vshll.u32 %v292, 16
        %v478 = vor.u32 %v475, %v476
        %v479 = vsel %vm319, %v471, %v478
        %v480 = vrot.slane %v475, 4
        %v482 = vshrl.u32 %v293, 16
        %v484 = vrot.slane %v482, 7
        %v485 = vshll.u32 %v293, 16
        %v487 = vor.u32 %v484, %v485
        %v488 = vsel %vm319, %v480, %v487
        %v489 = vrot.slane %v484, 4
        %v491 = vshrl.u32 %v294, 16
        %v493 = vrot.slane %v491, 7
        %v494 = vshll.u32 %v294, 16
        %v496 = vor.u32 %v493, %v494
        %v497 = vsel %vm319, %v489, %v496
        %v498 = vrot.slane %v493, 4
        %v500 = vshrl.u32 %v295, 16
        %v502 = vrot.slane %v500, 7
        %v503 = vshll.u32 %v295, 16
        %v505 = vor.u32 %v502, %v503
        %v506 = vsel %vm319, %v498, %v505
        %v507 = vrot.slane %v502, 4
        %v509 = vshrl.u32 %v296, 16
        %v511 = vrot.slane %v509, 7
        %v512 = vshll.u32 %v296, 16
        %v514 = vor.u32 %v511, %v512
        %v515 = vsel %vm319, %v507, %v514
        %v516 = vrot.slane %v511, 4
        %v518 = vshrl.u32 %v297, 16
        %v520 = vrot.slane %v518, 7
        %v521 = vshll.u32 %v297, 16
        %v523 = vor.u32 %v520, %v521
        %v524 = vsel %vm319, %v516, %v523
        %v525 = vrot.slane %v520, 4
        %v527 = vshrl.u32 %v298, 16
        %v529 = vrot.slane %v527, 7
        %v530 = vshll.u32 %v298, 16
        %v532 = vor.u32 %v529, %v530
        %v533 = vsel %vm319, %v525, %v532
        %v534 = vrot.slane %v529, 4
        %v536 = vshrl.u32 %v299, 16
        %v538 = vrot.slane %v536, 7
        %v539 = vshll.u32 %v299, 16
        %v541 = vor.u32 %v538, %v539
        %v542 = vsel %vm319, %v534, %v541
        %v543 = vrot.slane %v538, 4
        %v545 = vshrl.u32 %v300, 16
        %v547 = vrot.slane %v545, 7
        %v548 = vshll.u32 %v300, 16
        %v550 = vor.u32 %v547, %v548
        %v551 = vsel %vm319, %v543, %v550
        %v552 = vrot.slane %v547, 4
        %v554 = vshrl.u32 %v301, 16
        %v556 = vrot.slane %v554, 7
        %v557 = vshll.u32 %v301, 16
        %v559 = vor.u32 %v556, %v557
        %v560 = vsel %vm319, %v552, %v559
        %v561 = vrot.slane %v556, 4
        %v563 = vshrl.u32 %v302, 16
        %v565 = vrot.slane %v563, 7
        %v566 = vshll.u32 %v302, 16
        %v568 = vor.u32 %v565, %v566
        %v569 = vsel %vm319, %v561, %v568
        %v570 = vrot.slane %v565, 4
        %v572 = vshrl.u32 %v303, 16
        %v574 = vrot.slane %v572, 7
        %v575 = vshll.u32 %v303, 16
        %v577 = vor.u32 %v574, %v575
        %v578 = vsel %vm319, %v570, %v577
        %v579 = vrot.slane %v574, 4
        %v581 = vshrl.u32 %v304, 16
        %v583 = vrot.slane %v581, 7
        %v584 = vshll.u32 %v304, 16
        %v586 = vor.u32 %v583, %v584
        %v587 = vsel %vm319, %v579, %v586
        %v588 = vrot.slane %v583, 4
        %v590 = vshrl.u32 %v305, 16
        %v592 = vrot.slane %v590, 7
        %v593 = vshll.u32 %v305, 16
        %v595 = vor.u32 %v592, %v593
        %v596 = vsel %vm319, %v588, %v595
        %v597 = vrot.slane %v592, 4
        %v599 = vshrl.u32 %v306, 16
        %v601 = vrot.slane %v599, 7
        %v602 = vshll.u32 %v306, 16
        %v604 = vor.u32 %v601, %v602
        %v605 = vsel %vm319, %v597, %v604
        %v606 = vrot.slane %v601, 4
        %vm640 = vcmask 1043456
        %vm641 = vmand %vm640, %vm313
        %v642 = vld [vmem:[#allocation2] sm:$0xf]
        %v643 = vsel %vm641, %v326, %v642
        %644 = vst [vmem:[#allocation2] sm:$0xf] %v643
        %645 = vst [vmem:[#allocation2 + $0x4] sm:$0xf] %v335
        %646 = vst [vmem:[#allocation2 + $0x8] sm:$0xf] %v344
        %647 = vst [vmem:[#allocation2 + $0xc] sm:$0xf] %v353
        %648 = vst [vmem:[#allocation2 + $0x10] sm:$0xf] %v362
        %649 = vst [vmem:[#allocation2 + $0x14] sm:$0xf] %v371
        %650 = vst [vmem:[#allocation2 + $0x18] sm:$0xf] %v380
        %651 = vst [vmem:[#allocation2 + $0x1c] sm:$0xf] %v389
        %652 = vst [vmem:[#allocation2 + $0x20] sm:$0xf] %v398
        %653 = vst [vmem:[#allocation2 + $0x24] sm:$0xf] %v407
        %654 = vst [vmem:[#allocation2 + $0x28] sm:$0xf] %v416
        %655 = vst [vmem:[#allocation2 + $0x2c] sm:$0xf] %v425
        %656 = vst [vmem:[#allocation2 + $0x30] sm:$0xf] %v434
        %657 = vst [vmem:[#allocation2 + $0x34] sm:$0xf] %v443
        %658 = vst [vmem:[#allocation2 + $0x38] sm:$0xf] %v452
        %659 = vst [vmem:[#allocation2 + $0x3c] sm:$0xf] %v461
        %660 = vst [vmem:[#allocation2 + $0x40] sm:$0xf] %v470
        %661 = vst [vmem:[#allocation2 + $0x44] sm:$0xf] %v479
        %662 = vst [vmem:[#allocation2 + $0x48] sm:$0xf] %v488
        %663 = vst [vmem:[#allocation2 + $0x4c] sm:$0xf] %v497
        %664 = vst [vmem:[#allocation2 + $0x50] sm:$0xf] %v506
        %665 = vst [vmem:[#allocation2 + $0x54] sm:$0xf] %v515
        %666 = vst [vmem:[#allocation2 + $0x58] sm:$0xf] %v524
        %667 = vst [vmem:[#allocation2 + $0x5c] sm:$0xf] %v533
        %668 = vst [vmem:[#allocation2 + $0x60] sm:$0xf] %v542
        %669 = vst [vmem:[#allocation2 + $0x64] sm:$0xf] %v551
        %670 = vst [vmem:[#allocation2 + $0x68] sm:$0xf] %v560
        %671 = vst [vmem:[#allocation2 + $0x6c] sm:$0xf] %v569
        %672 = vst [vmem:[#allocation2 + $0x70] sm:$0xf] %v578
        %673 = vst [vmem:[#allocation2 + $0x74] sm:$0xf] %v587
        %674 = vst [vmem:[#allocation2 + $0x78] sm:$0xf] %v596
        %675 = vst [vmem:[#allocation2 + $0x7c] sm:$0xf] %v605
        %v676 = vld [vmem:[#allocation2 + $0x80] sm:$0x1]
        %v677 = vsel %vm309, %v606, %v676
        %678 = vst [vmem:[#allocation2 + $0x80] sm:$0x1] %v677
        %v679 = vlaneseq
        %v680 = vshrl.u32 %v679, 7
        %v681 = vadd.s32 %v680, 8
        %v682 = vadd.s32 %v680, 16
        %v683 = vadd.s32 %v680, 24
        %v684 = vadd.s32 %v680, 32
        %v685 = vadd.s32 %v680, 40
        %v686 = vadd.s32 %v680, 48
        %v687 = vadd.s32 %v680, 56
        %v688 = vadd.s32 %v680, 64
        %v689 = vadd.s32 %v680, 72
        %v690 = vadd.s32 %v680, 80
        %v691 = vadd.s32 %v680, 88
        %v692 = vadd.s32 %v680, 96
        %v693 = vadd.s32 %v680, 104
        %v694 = vadd.s32 %v680, 112
        %v695 = vadd.s32 %v680, 120
        %v696 = vadd.s32 %v680, 128
        %v697 = vadd.s32 %v680, 136
        %v698 = vadd.s32 %v680, 144
        %v699 = vadd.s32 %v680, 152
        %v700 = vadd.s32 %v680, 160
        %v701 = vadd.s32 %v680, 168
        %v702 = vadd.s32 %v680, 176
        %v703 = vadd.s32 %v680, 184
        %v704 = vadd.s32 %v680, 192
        %v705 = vadd.s32 %v680, 200
        %v706 = vadd.s32 %v680, 208
        %v707 = vadd.s32 %v680, 216
        %v708 = vadd.s32 %v680, 224
        %v709 = vadd.s32 %v680, 232
        %v710 = vadd.s32 %v680, 240
        %v711 = vadd.s32 %v680, 248
        %vm712 = vcmp.lt.s32.totalorder %v680, 0
        %v713 = vsub.s32 0, %v680
        %v714 = vsel %vm712, %v713, %v680
        %v715 = vshrl.u32 %v714, 4
        %v716 = vand.u32 %v714, 15
        %v717 = vsub.s32 0, %v716
        %v718 = vsel %vm712, %v717, %v716
        %vm719 = vcmp.lt.s32.totalorder %v681, 0
        %v720 = vsub.s32 0, %v681
        %v721 = vsel %vm719, %v720, %v681
        %v722 = vshrl.u32 %v721, 4
        %v723 = vand.u32 %v721, 15
        %v724 = vsub.s32 0, %v723
        %v725 = vsel %vm719, %v724, %v723
        %vm726 = vcmp.lt.s32.totalorder %v682, 0
        %v727 = vsub.s32 0, %v682
        %v728 = vsel %vm726, %v727, %v682
        %v729 = vshrl.u32 %v728, 4
        %v730 = vand.u32 %v728, 15
        %v731 = vsub.s32 0, %v730
        %v732 = vsel %vm726, %v731, %v730
        %vm733 = vcmp.lt.s32.totalorder %v683, 0
        %v734 = vsub.s32 0, %v683
        %v735 = vsel %vm733, %v734, %v683
        %v736 = vshrl.u32 %v735, 4
        %v737 = vand.u32 %v735, 15
        %v738 = vsub.s32 0, %v737
        %v739 = vsel %vm733, %v738, %v737
        %vm740 = vcmp.lt.s32.totalorder %v684, 0
        %v741 = vsub.s32 0, %v684
        %v742 = vsel %vm740, %v741, %v684
        %v743 = vshrl.u32 %v742, 4
        %v744 = vand.u32 %v742, 15
        %v745 = vsub.s32 0, %v744
        %v746 = vsel %vm740, %v745, %v744
        %vm747 = vcmp.lt.s32.totalorder %v685, 0
        %v748 = vsub.s32 0, %v685
        %v749 = vsel %vm747, %v748, %v685
        %v750 = vshrl.u32 %v749, 4
        %v751 = vand.u32 %v749, 15
        %v752 = vsub.s32 0, %v751
        %v753 = vsel %vm747, %v752, %v751
        %vm754 = vcmp.lt.s32.totalorder %v686, 0
        %v755 = vsub.s32 0, %v686
        %v756 = vsel %vm754, %v755, %v686
        %v757 = vshrl.u32 %v756, 4
        %v758 = vand.u32 %v756, 15
        %v759 = vsub.s32 0, %v758
        %v760 = vsel %vm754, %v759, %v758
        %vm761 = vcmp.lt.s32.totalorder %v687, 0
        %v762 = vsub.s32 0, %v687
        %v763 = vsel %vm761, %v762, %v687
        %v764 = vshrl.u32 %v763, 4
        %v765 = vand.u32 %v763, 15
        %v766 = vsub.s32 0, %v765
        %v767 = vsel %vm761, %v766, %v765
        %vm768 = vcmp.lt.s32.totalorder %v688, 0
        %v769 = vsub.s32 0, %v688
        %v770 = vsel %vm768, %v769, %v688
        %v771 = vshrl.u32 %v770, 4
        %v772 = vand.u32 %v770, 15
        %v773 = vsub.s32 0, %v772
        %v774 = vsel %vm768, %v773, %v772
        %vm775 = vcmp.lt.s32.totalorder %v689, 0
        %v776 = vsub.s32 0, %v689
        %v777 = vsel %vm775, %v776, %v689
        %v778 = vshrl.u32 %v777, 4
        %v779 = vand.u32 %v777, 15
        %v780 = vsub.s32 0, %v779
        %v781 = vsel %vm775, %v780, %v779
        %vm782 = vcmp.lt.s32.totalorder %v690, 0
        %v783 = vsub.s32 0, %v690
        %v784 = vsel %vm782, %v783, %v690
        %v785 = vshrl.u32 %v784, 4
        %v786 = vand.u32 %v784, 15
        %v787 = vsub.s32 0, %v786
        %v788 = vsel %vm782, %v787, %v786
        %vm789 = vcmp.lt.s32.totalorder %v691, 0
        %v790 = vsub.s32 0, %v691
        %v791 = vsel %vm789, %v790, %v691
        %v792 = vshrl.u32 %v791, 4
        %v793 = vand.u32 %v791, 15
        %v794 = vsub.s32 0, %v793
        %v795 = vsel %vm789, %v794, %v793
        %vm796 = vcmp.lt.s32.totalorder %v692, 0
        %v797 = vsub.s32 0, %v692
        %v798 = vsel %vm796, %v797, %v692
        %v799 = vshrl.u32 %v798, 4
        %v800 = vand.u32 %v798, 15
        %v801 = vsub.s32 0, %v800
        %v802 = vsel %vm796, %v801, %v800
        %vm803 = vcmp.lt.s32.totalorder %v693, 0
        %v804 = vsub.s32 0, %v693
        %v805 = vsel %vm803, %v804, %v693
        %v806 = vshrl.u32 %v805, 4
        %v807 = vand.u32 %v805, 15
        %v808 = vsub.s32 0, %v807
        %v809 = vsel %vm803, %v808, %v807
        %vm810 = vcmp.lt.s32.totalorder %v694, 0
        %v811 = vsub.s32 0, %v694
        %v812 = vsel %vm810, %v811, %v694
        %v813 = vshrl.u32 %v812, 4
        %v814 = vand.u32 %v812, 15
        %v815 = vsub.s32 0, %v814
        %v816 = vsel %vm810, %v815, %v814
        %vm817 = vcmp.lt.s32.totalorder %v695, 0
        %v818 = vsub.s32 0, %v695
        %v819 = vsel %vm817, %v818, %v695
        %v820 = vshrl.u32 %v819, 4
        %v821 = vand.u32 %v819, 15
        %v822 = vsub.s32 0, %v821
        %v823 = vsel %vm817, %v822, %v821
        %vm824 = vcmp.lt.s32.totalorder %v696, 0
        %v825 = vsub.s32 0, %v696
        %v826 = vsel %vm824, %v825, %v696
        %v827 = vshrl.u32 %v826, 4
        %v828 = vand.u32 %v826, 15
        %v829 = vsub.s32 0, %v828
        %v830 = vsel %vm824, %v829, %v828
        %vm831 = vcmp.lt.s32.totalorder %v697, 0
        %v832 = vsub.s32 0, %v697
        %v833 = vsel %vm831, %v832, %v697
        %v834 = vshrl.u32 %v833, 4
        %v835 = vand.u32 %v833, 15
        %v836 = vsub.s32 0, %v835
        %v837 = vsel %vm831, %v836, %v835
        %vm838 = vcmp.lt.s32.totalorder %v698, 0
        %v839 = vsub.s32 0, %v698
        %v840 = vsel %vm838, %v839, %v698
        %v841 = vshrl.u32 %v840, 4
        %v842 = vand.u32 %v840, 15
        %v843 = vsub.s32 0, %v842
        %v844 = vsel %vm838, %v843, %v842
        %vm845 = vcmp.lt.s32.totalorder %v699, 0
        %v846 = vsub.s32 0, %v699
        %v847 = vsel %vm845, %v846, %v699
        %v848 = vshrl.u32 %v847, 4
        %v849 = vand.u32 %v847, 15
        %v850 = vsub.s32 0, %v849
        %v851 = vsel %vm845, %v850, %v849
        %vm852 = vcmp.lt.s32.totalorder %v700, 0
        %v853 = vsub.s32 0, %v700
        %v854 = vsel %vm852, %v853, %v700
        %v855 = vshrl.u32 %v854, 4
        %v856 = vand.u32 %v854, 15
        %v857 = vsub.s32 0, %v856
        %v858 = vsel %vm852, %v857, %v856
        %vm859 = vcmp.lt.s32.totalorder %v701, 0
        %v860 = vsub.s32 0, %v701
        %v861 = vsel %vm859, %v860, %v701
        %v862 = vshrl.u32 %v861, 4
        %v863 = vand.u32 %v861, 15
        %v864 = vsub.s32 0, %v863
        %v865 = vsel %vm859, %v864, %v863
        %vm866 = vcmp.lt.s32.totalorder %v702, 0
        %v867 = vsub.s32 0, %v702
        %v868 = vsel %vm866, %v867, %v702
        %v869 = vshrl.u32 %v868, 4
        %v870 = vand.u32 %v868, 15
        %v871 = vsub.s32 0, %v870
        %v872 = vsel %vm866, %v871, %v870
        %vm873 = vcmp.lt.s32.totalorder %v703, 0
        %v874 = vsub.s32 0, %v703
        %v875 = vsel %vm873, %v874, %v703
        %v876 = vshrl.u32 %v875, 4
        %v877 = vand.u32 %v875, 15
        %v878 = vsub.s32 0, %v877
        %v879 = vsel %vm873, %v878, %v877
        %vm880 = vcmp.lt.s32.totalorder %v704, 0
        %v881 = vsub.s32 0, %v704
        %v882 = vsel %vm880, %v881, %v704
        %v883 = vshrl.u32 %v882, 4
        %v884 = vand.u32 %v882, 15
        %v885 = vsub.s32 0, %v884
        %v886 = vsel %vm880, %v885, %v884
        %vm887 = vcmp.lt.s32.totalorder %v705, 0
        %v888 = vsub.s32 0, %v705
        %v889 = vsel %vm887, %v888, %v705
        %v890 = vshrl.u32 %v889, 4
        %v891 = vand.u32 %v889, 15
        %v892 = vsub.s32 0, %v891
        %v893 = vsel %vm887, %v892, %v891
        %vm894 = vcmp.lt.s32.totalorder %v706, 0
        %v895 = vsub.s32 0, %v706
        %v896 = vsel %vm894, %v895, %v706
        %v897 = vshrl.u32 %v896, 4
        %v898 = vand.u32 %v896, 15
        %v899 = vsub.s32 0, %v898
        %v900 = vsel %vm894, %v899, %v898
        %vm901 = vcmp.lt.s32.totalorder %v707, 0
        %v902 = vsub.s32 0, %v707
        %v903 = vsel %vm901, %v902, %v707
        %v904 = vshrl.u32 %v903, 4
        %v905 = vand.u32 %v903, 15
        %v906 = vsub.s32 0, %v905
        %v907 = vsel %vm901, %v906, %v905
        %vm908 = vcmp.lt.s32.totalorder %v708, 0
        %v909 = vsub.s32 0, %v708
        %v910 = vsel %vm908, %v909, %v708
        %v911 = vshrl.u32 %v910, 4
        %v912 = vand.u32 %v910, 15
        %v913 = vsub.s32 0, %v912
        %v914 = vsel %vm908, %v913, %v912
        %vm915 = vcmp.lt.s32.totalorder %v709, 0
        %v916 = vsub.s32 0, %v709
        %v917 = vsel %vm915, %v916, %v709
        %v918 = vshrl.u32 %v917, 4
        %v919 = vand.u32 %v917, 15
        %v920 = vsub.s32 0, %v919
        %v921 = vsel %vm915, %v920, %v919
        %vm922 = vcmp.lt.s32.totalorder %v710, 0
        %v923 = vsub.s32 0, %v710
        %v924 = vsel %vm922, %v923, %v710
        %v925 = vshrl.u32 %v924, 4
        %v926 = vand.u32 %v924, 15
        %v927 = vsub.s32 0, %v926
        %v928 = vsel %vm922, %v927, %v926
        %vm929 = vcmp.lt.s32.totalorder %v711, 0
        %v930 = vsub.s32 0, %v711
        %v931 = vsel %vm929, %v930, %v711
        %v932 = vshrl.u32 %v931, 4
        %v933 = vand.u32 %v931, 15
        %v934 = vsub.s32 0, %v933
        %v935 = vsel %vm929, %v934, %v933
        %vm936 = vcmp.ne.s32.totalorder %v718, 0
        %vm937 = vcmp.ne.s32.totalorder %v725, 0
        %vm938 = vcmp.ne.s32.totalorder %v732, 0
        %vm939 = vcmp.ne.s32.totalorder %v739, 0
        %vm940 = vcmp.ne.s32.totalorder %v746, 0
        %vm941 = vcmp.ne.s32.totalorder %v753, 0
        %vm942 = vcmp.ne.s32.totalorder %v760, 0
        %vm943 = vcmp.ne.s32.totalorder %v767, 0
        %vm944 = vcmp.ne.s32.totalorder %v774, 0
        %vm945 = vcmp.ne.s32.totalorder %v781, 0
        %vm946 = vcmp.ne.s32.totalorder %v788, 0
        %vm947 = vcmp.ne.s32.totalorder %v795, 0
        %vm948 = vcmp.ne.s32.totalorder %v802, 0
        %vm949 = vcmp.ne.s32.totalorder %v809, 0
        %vm950 = vcmp.ne.s32.totalorder %v816, 0
        %vm951 = vcmp.ne.s32.totalorder %v823, 0
        %vm952 = vcmp.ne.s32.totalorder %v830, 0
        %vm953 = vcmp.ne.s32.totalorder %v837, 0
        %vm954 = vcmp.ne.s32.totalorder %v844, 0
        %vm955 = vcmp.ne.s32.totalorder %v851, 0
        %vm956 = vcmp.ne.s32.totalorder %v858, 0
        %vm957 = vcmp.ne.s32.totalorder %v865, 0
        %vm958 = vcmp.ne.s32.totalorder %v872, 0
        %vm959 = vcmp.ne.s32.totalorder %v879, 0
        %vm960 = vcmp.ne.s32.totalorder %v886, 0
        %vm961 = vcmp.ne.s32.totalorder %v893, 0
        %vm962 = vcmp.ne.s32.totalorder %v900, 0
        %vm963 = vcmp.ne.s32.totalorder %v907, 0
        %vm964 = vcmp.ne.s32.totalorder %v914, 0
        %vm965 = vcmp.ne.s32.totalorder %v921, 0
        %vm966 = vcmp.ne.s32.totalorder %v928, 0
        %vm967 = vcmp.ne.s32.totalorder %v935, 0
        %vm968 = vcmp.lt.s32.totalorder %v718, 0
        %vm969 = vcmp.lt.s32.totalorder %v725, 0
        %vm970 = vcmp.lt.s32.totalorder %v732, 0
        %vm971 = vcmp.lt.s32.totalorder %v739, 0
        %vm972 = vcmp.lt.s32.totalorder %v746, 0
        %vm973 = vcmp.lt.s32.totalorder %v753, 0
        %vm974 = vcmp.lt.s32.totalorder %v760, 0
        %vm975 = vcmp.lt.s32.totalorder %v767, 0
        %vm976 = vcmp.lt.s32.totalorder %v774, 0
        %vm977 = vcmp.lt.s32.totalorder %v781, 0
        %vm978 = vcmp.lt.s32.totalorder %v788, 0
        %vm979 = vcmp.lt.s32.totalorder %v795, 0
        %vm980 = vcmp.lt.s32.totalorder %v802, 0
        %vm981 = vcmp.lt.s32.totalorder %v809, 0
        %vm982 = vcmp.lt.s32.totalorder %v816, 0
        %vm983 = vcmp.lt.s32.totalorder %v823, 0
        %vm984 = vcmp.lt.s32.totalorder %v830, 0
        %vm985 = vcmp.lt.s32.totalorder %v837, 0
        %vm986 = vcmp.lt.s32.totalorder %v844, 0
        %vm987 = vcmp.lt.s32.totalorder %v851, 0
        %vm988 = vcmp.lt.s32.totalorder %v858, 0
        %vm989 = vcmp.lt.s32.totalorder %v865, 0
        %vm990 = vcmp.lt.s32.totalorder %v872, 0
        %vm991 = vcmp.lt.s32.totalorder %v879, 0
        %vm992 = vcmp.lt.s32.totalorder %v886, 0
        %vm993 = vcmp.lt.s32.totalorder %v893, 0
        %vm994 = vcmp.lt.s32.totalorder %v900, 0
        %vm995 = vcmp.lt.s32.totalorder %v907, 0
        %vm996 = vcmp.lt.s32.totalorder %v914, 0
        %vm997 = vcmp.lt.s32.totalorder %v921, 0
        %vm998 = vcmp.lt.s32.totalorder %v928, 0
        %vm999 = vcmp.lt.s32.totalorder %v935, 0
        %vm1000 = vmand %vm968, %vm936
        %vm1001 = vmand %vm969, %vm937
        %vm1002 = vmand %vm970, %vm938
        %vm1003 = vmand %vm971, %vm939
        %vm1004 = vmand %vm972, %vm940
        %vm1005 = vmand %vm973, %vm941
        %vm1006 = vmand %vm974, %vm942
        %vm1007 = vmand %vm975, %vm943
        %vm1008 = vmand %vm976, %vm944
        %vm1009 = vmand %vm977, %vm945
        %vm1010 = vmand %vm978, %vm946
        %vm1011 = vmand %vm979, %vm947
        %vm1012 = vmand %vm980, %vm948
        %vm1013 = vmand %vm981, %vm949
        %vm1014 = vmand %vm982, %vm950
        %vm1015 = vmand %vm983, %vm951
        %vm1016 = vmand %vm984, %vm952
        %vm1017 = vmand %vm985, %vm953
        %vm1018 = vmand %vm986, %vm954
        %vm1019 = vmand %vm987, %vm955
        %vm1020 = vmand %vm988, %vm956
        %vm1021 = vmand %vm989, %vm957
        %vm1022 = vmand %vm990, %vm958
        %vm1023 = vmand %vm991, %vm959
        %vm1024 = vmand %vm992, %vm960
        %vm1025 = vmand %vm993, %vm961
        %vm1026 = vmand %vm994, %vm962
        %vm1027 = vmand %vm995, %vm963
        %vm1028 = vmand %vm996, %vm964
        %vm1029 = vmand %vm997, %vm965
        %vm1030 = vmand %vm998, %vm966
        %vm1031 = vmand %vm999, %vm967
        %v1032 = vadd.s32 %v718, 16
        %v1033 = vadd.s32 %v725, 16
        %v1034 = vadd.s32 %v732, 16
        %v1035 = vadd.s32 %v739, 16
        %v1036 = vadd.s32 %v746, 16
        %v1037 = vadd.s32 %v753, 16
        %v1038 = vadd.s32 %v760, 16
        %v1039 = vadd.s32 %v767, 16
        %v1040 = vadd.s32 %v774, 16
        %v1041 = vadd.s32 %v781, 16
        %v1042 = vadd.s32 %v788, 16
        %v1043 = vadd.s32 %v795, 16
        %v1044 = vadd.s32 %v802, 16
        %v1045 = vadd.s32 %v809, 16
        %v1046 = vadd.s32 %v816, 16
        %v1047 = vadd.s32 %v823, 16
        %v1048 = vadd.s32 %v830, 16
        %v1049 = vadd.s32 %v837, 16
        %v1050 = vadd.s32 %v844, 16
        %v1051 = vadd.s32 %v851, 16
        %v1052 = vadd.s32 %v858, 16
        %v1053 = vadd.s32 %v865, 16
        %v1054 = vadd.s32 %v872, 16
        %v1055 = vadd.s32 %v879, 16
        %v1056 = vadd.s32 %v886, 16
        %v1057 = vadd.s32 %v893, 16
        %v1058 = vadd.s32 %v900, 16
        %v1059 = vadd.s32 %v907, 16
        %v1060 = vadd.s32 %v914, 16
        %v1061 = vadd.s32 %v921, 16
        %v1062 = vadd.s32 %v928, 16
        %v1063 = vadd.s32 %v935, 16
        %v1064 = vsel %vm1000, %v1032, %v718
        %v1065 = vsel %vm1001, %v1033, %v725
        %v1066 = vsel %vm1002, %v1034, %v732
        %v1067 = vsel %vm1003, %v1035, %v739
        %v1068 = vsel %vm1004, %v1036, %v746
        %v1069 = vsel %vm1005, %v1037, %v753
        %v1070 = vsel %vm1006, %v1038, %v760
        %v1071 = vsel %vm1007, %v1039, %v767
        %v1072 = vsel %vm1008, %v1040, %v774
        %v1073 = vsel %vm1009, %v1041, %v781
        %v1074 = vsel %vm1010, %v1042, %v788
        %v1075 = vsel %vm1011, %v1043, %v795
        %v1076 = vsel %vm1012, %v1044, %v802
        %v1077 = vsel %vm1013, %v1045, %v809
        %v1078 = vsel %vm1014, %v1046, %v816
        %v1079 = vsel %vm1015, %v1047, %v823
        %v1080 = vsel %vm1016, %v1048, %v830
        %v1081 = vsel %vm1017, %v1049, %v837
        %v1082 = vsel %vm1018, %v1050, %v844
        %v1083 = vsel %vm1019, %v1051, %v851
        %v1084 = vsel %vm1020, %v1052, %v858
        %v1085 = vsel %vm1021, %v1053, %v865
        %v1086 = vsel %vm1022, %v1054, %v872
        %v1087 = vsel %vm1023, %v1055, %v879
        %v1088 = vsel %vm1024, %v1056, %v886
        %v1089 = vsel %vm1025, %v1057, %v893
        %v1090 = vsel %vm1026, %v1058, %v900
        %v1091 = vsel %vm1027, %v1059, %v907
        %v1092 = vsel %vm1028, %v1060, %v914
        %v1093 = vsel %vm1029, %v1061, %v921
        %v1094 = vsel %vm1030, %v1062, %v928
        %v1095 = vsel %vm1031, %v1063, %v935
        %vm1096 = vcmp.eq.s32.totalorder %v1064, 0
        %vm1097 = vcmp.eq.s32.totalorder %v1065, 0
        %vm1098 = vcmp.eq.s32.totalorder %v1066, 0
        %vm1099 = vcmp.eq.s32.totalorder %v1067, 0
        %vm1100 = vcmp.eq.s32.totalorder %v1068, 0
        %vm1101 = vcmp.eq.s32.totalorder %v1069, 0
        %vm1102 = vcmp.eq.s32.totalorder %v1070, 0
        %vm1103 = vcmp.eq.s32.totalorder %v1071, 0
        %vm1104 = vcmp.eq.s32.totalorder %v1072, 0
        %vm1105 = vcmp.eq.s32.totalorder %v1073, 0
        %vm1106 = vcmp.eq.s32.totalorder %v1074, 0
        %vm1107 = vcmp.eq.s32.totalorder %v1075, 0
        %vm1108 = vcmp.eq.s32.totalorder %v1076, 0
        %vm1109 = vcmp.eq.s32.totalorder %v1077, 0
        %vm1110 = vcmp.eq.s32.totalorder %v1078, 0
        %vm1111 = vcmp.eq.s32.totalorder %v1079, 0
        %vm1112 = vcmp.eq.s32.totalorder %v1080, 0
        %vm1113 = vcmp.eq.s32.totalorder %v1081, 0
        %vm1114 = vcmp.eq.s32.totalorder %v1082, 0
        %vm1115 = vcmp.eq.s32.totalorder %v1083, 0
        %vm1116 = vcmp.eq.s32.totalorder %v1084, 0
        %vm1117 = vcmp.eq.s32.totalorder %v1085, 0
        %vm1118 = vcmp.eq.s32.totalorder %v1086, 0
        %vm1119 = vcmp.eq.s32.totalorder %v1087, 0
        %vm1120 = vcmp.eq.s32.totalorder %v1088, 0
        %vm1121 = vcmp.eq.s32.totalorder %v1089, 0
        %vm1122 = vcmp.eq.s32.totalorder %v1090, 0
        %vm1123 = vcmp.eq.s32.totalorder %v1091, 0
        %vm1124 = vcmp.eq.s32.totalorder %v1092, 0
        %vm1125 = vcmp.eq.s32.totalorder %v1093, 0
        %vm1126 = vcmp.eq.s32.totalorder %v1094, 0
        %vm1127 = vcmp.eq.s32.totalorder %v1095, 0
        %v1128 = vld [vmem:[#allocation2] sm:$0xf]
        %v1129 = vld [vmem:[#allocation2 + $0x4] sm:$0xf]
        %v1130 = vld [vmem:[#allocation2 + $0x8] sm:$0xf]
        %v1131 = vld [vmem:[#allocation2 + $0xc] sm:$0xf]
        %v1132 = vld [vmem:[#allocation2 + $0x10] sm:$0xf]
        %v1133 = vld [vmem:[#allocation2 + $0x14] sm:$0xf]
        %v1134 = vld [vmem:[#allocation2 + $0x18] sm:$0xf]
        %v1135 = vld [vmem:[#allocation2 + $0x1c] sm:$0xf]
        %v1136 = vld [vmem:[#allocation2 + $0x20] sm:$0xf]
        %v1137 = vld [vmem:[#allocation2 + $0x24] sm:$0xf]
        %v1138 = vld [vmem:[#allocation2 + $0x28] sm:$0xf]
        %v1139 = vld [vmem:[#allocation2 + $0x2c] sm:$0xf]
        %v1140 = vld [vmem:[#allocation2 + $0x30] sm:$0xf]
        %v1141 = vld [vmem:[#allocation2 + $0x34] sm:$0xf]
        %v1142 = vld [vmem:[#allocation2 + $0x38] sm:$0xf]
        %v1143 = vld [vmem:[#allocation2 + $0x3c] sm:$0xf]
        %v1144 = vld [vmem:[#allocation2 + $0x40] sm:$0xf]
        %v1145 = vld [vmem:[#allocation2 + $0x44] sm:$0xf]
        %v1146 = vld [vmem:[#allocation2 + $0x48] sm:$0xf]
        %v1147 = vld [vmem:[#allocation2 + $0x4c] sm:$0xf]
        %v1148 = vld [vmem:[#allocation2 + $0x50] sm:$0xf]
        %v1149 = vld [vmem:[#allocation2 + $0x54] sm:$0xf]
        %v1150 = vld [vmem:[#allocation2 + $0x58] sm:$0xf]
        %v1151 = vld [vmem:[#allocation2 + $0x5c] sm:$0xf]
        %v1152 = vld [vmem:[#allocation2 + $0x60] sm:$0xf]
        %v1153 = vld [vmem:[#allocation2 + $0x64] sm:$0xf]
        %v1154 = vld [vmem:[#allocation2 + $0x68] sm:$0xf]
        %v1155 = vld [vmem:[#allocation2 + $0x6c] sm:$0xf]
        %v1156 = vld [vmem:[#allocation2 + $0x70] sm:$0xf]
        %v1157 = vld [vmem:[#allocation2 + $0x74] sm:$0xf]
        %v1158 = vld [vmem:[#allocation2 + $0x78] sm:$0xf]
        %v1159 = vld [vmem:[#allocation2 + $0x7c] sm:$0xf]
        %v1160 = vsel %vm1096, 1, 0
        %v1161 = vsel %vm1097, 1, 0
        %v1162 = vsel %vm1098, 1, 0
        %v1163 = vsel %vm1099, 1, 0
        %v1164 = vsel %vm1100, 1, 0
        %v1165 = vsel %vm1101, 1, 0
        %v1166 = vsel %vm1102, 1, 0
        %v1167 = vsel %vm1103, 1, 0
        %v1168 = vsel %vm1104, 1, 0
        %v1169 = vsel %vm1105, 1, 0
        %v1170 = vsel %vm1106, 1, 0
        %v1171 = vsel %vm1107, 1, 0
        %v1172 = vsel %vm1108, 1, 0
        %v1173 = vsel %vm1109, 1, 0
        %v1174 = vsel %vm1110, 1, 0
        %v1175 = vsel %vm1111, 1, 0
        %v1176 = vsel %vm1112, 1, 0
        %v1177 = vsel %vm1113, 1, 0
        %v1178 = vsel %vm1114, 1, 0
        %v1179 = vsel %vm1115, 1, 0
        %v1180 = vsel %vm1116, 1, 0
        %v1181 = vsel %vm1117, 1, 0
        %v1182 = vsel %vm1118, 1, 0
        %v1183 = vsel %vm1119, 1, 0
        %v1184 = vsel %vm1120, 1, 0
        %v1185 = vsel %vm1121, 1, 0
        %v1186 = vsel %vm1122, 1, 0
        %v1187 = vsel %vm1123, 1, 0
        %v1188 = vsel %vm1124, 1, 0
        %v1189 = vsel %vm1125, 1, 0
        %v1190 = vsel %vm1126, 1, 0
        %v1191 = vsel %vm1127, 1, 0
        %vm1192 = vcmp.eq.s32.totalorder %v1160, 1
        %vm1193 = vcmp.eq.s32.totalorder %v1161, 1
        %vm1194 = vcmp.eq.s32.totalorder %v1162, 1
        %vm1195 = vcmp.eq.s32.totalorder %v1163, 1
        %vm1196 = vcmp.eq.s32.totalorder %v1164, 1
        %vm1197 = vcmp.eq.s32.totalorder %v1165, 1
        %vm1198 = vcmp.eq.s32.totalorder %v1166, 1
        %vm1199 = vcmp.eq.s32.totalorder %v1167, 1
        %vm1200 = vcmp.eq.s32.totalorder %v1168, 1
        %vm1201 = vcmp.eq.s32.totalorder %v1169, 1
        %vm1202 = vcmp.eq.s32.totalorder %v1170, 1
        %vm1203 = vcmp.eq.s32.totalorder %v1171, 1
        %vm1204 = vcmp.eq.s32.totalorder %v1172, 1
        %vm1205 = vcmp.eq.s32.totalorder %v1173, 1
        %vm1206 = vcmp.eq.s32.totalorder %v1174, 1
        %vm1207 = vcmp.eq.s32.totalorder %v1175, 1
        %vm1208 = vcmp.eq.s32.totalorder %v1176, 1
        %vm1209 = vcmp.eq.s32.totalorder %v1177, 1
        %vm1210 = vcmp.eq.s32.totalorder %v1178, 1
        %vm1211 = vcmp.eq.s32.totalorder %v1179, 1
        %vm1212 = vcmp.eq.s32.totalorder %v1180, 1
        %vm1213 = vcmp.eq.s32.totalorder %v1181, 1
        %vm1214 = vcmp.eq.s32.totalorder %v1182, 1
        %vm1215 = vcmp.eq.s32.totalorder %v1183, 1
        %vm1216 = vcmp.eq.s32.totalorder %v1184, 1
        %vm1217 = vcmp.eq.s32.totalorder %v1185, 1
        %vm1218 = vcmp.eq.s32.totalorder %v1186, 1
        %vm1219 = vcmp.eq.s32.totalorder %v1187, 1
        %vm1220 = vcmp.eq.s32.totalorder %v1188, 1
        %vm1221 = vcmp.eq.s32.totalorder %v1189, 1
        %vm1222 = vcmp.eq.s32.totalorder %v1190, 1
        %vm1223 = vcmp.eq.s32.totalorder %v1191, 1
        %vm1224 = vmpackc.low %vm1192, %vm1192
        %vm1225 = vmpackc.low %vm1193, %vm1193
        %vm1226 = vmpackc.low %vm1194, %vm1194
        %vm1227 = vmpackc.low %vm1195, %vm1195
        %vm1228 = vmpackc.low %vm1196, %vm1196
        %vm1229 = vmpackc.low %vm1197, %vm1197
        %vm1230 = vmpackc.low %vm1198, %vm1198
        %vm1231 = vmpackc.low %vm1199, %vm1199
        %vm1232 = vmpackc.low %vm1200, %vm1200
        %vm1233 = vmpackc.low %vm1201, %vm1201
        %vm1234 = vmpackc.low %vm1202, %vm1202
        %vm1235 = vmpackc.low %vm1203, %vm1203
        %vm1236 = vmpackc.low %vm1204, %vm1204
        %vm1237 = vmpackc.low %vm1205, %vm1205
        %vm1238 = vmpackc.low %vm1206, %vm1206
        %vm1239 = vmpackc.low %vm1207, %vm1207
        %vm1240 = vmpackc.low %vm1208, %vm1208
        %vm1241 = vmpackc.low %vm1209, %vm1209
        %vm1242 = vmpackc.low %vm1210, %vm1210
        %vm1243 = vmpackc.low %vm1211, %vm1211
        %vm1244 = vmpackc.low %vm1212, %vm1212
        %vm1245 = vmpackc.low %vm1213, %vm1213
        %vm1246 = vmpackc.low %vm1214, %vm1214
        %vm1247 = vmpackc.low %vm1215, %vm1215
        %vm1248 = vmpackc.low %vm1216, %vm1216
        %vm1249 = vmpackc.low %vm1217, %vm1217
        %vm1250 = vmpackc.low %vm1218, %vm1218
        %vm1251 = vmpackc.low %vm1219, %vm1219
        %vm1252 = vmpackc.low %vm1220, %vm1220
        %vm1253 = vmpackc.low %vm1221, %vm1221
        %vm1254 = vmpackc.low %vm1222, %vm1222
        %vm1255 = vmpackc.low %vm1223, %vm1223
        %v1256 = vsel %vm1224, 0, %v1128
        %v1257 = vsel %vm1225, 0, %v1129
        %v1258 = vsel %vm1226, 0, %v1130
        %v1259 = vsel %vm1227, 0, %v1131
        %v1260 = vsel %vm1228, 0, %v1132
        %v1261 = vsel %vm1229, 0, %v1133
        %v1262 = vsel %vm1230, 0, %v1134
        %v1263 = vsel %vm1231, 0, %v1135
        %v1264 = vsel %vm1232, 0, %v1136
        %v1265 = vsel %vm1233, 0, %v1137
        %v1266 = vsel %vm1234, 0, %v1138
        %v1267 = vsel %vm1235, 0, %v1139
        %v1268 = vsel %vm1236, 0, %v1140
        %v1269 = vsel %vm1237, 0, %v1141
        %v1270 = vsel %vm1238, 0, %v1142
        %v1271 = vsel %vm1239, 0, %v1143
        %v1272 = vsel %vm1240, 0, %v1144
        %v1273 = vsel %vm1241, 0, %v1145
        %v1274 = vsel %vm1242, 0, %v1146
        %v1275 = vsel %vm1243, 0, %v1147
        %v1276 = vsel %vm1244, 0, %v1148
        %v1277 = vsel %vm1245, 0, %v1149
        %v1278 = vsel %vm1246, 0, %v1150
        %v1279 = vsel %vm1247, 0, %v1151
        %v1280 = vsel %vm1248, 0, %v1152
        %v1281 = vsel %vm1249, 0, %v1153
        %v1282 = vsel %vm1250, 0, %v1154
        %v1283 = vsel %vm1251, 0, %v1155
        %v1284 = vsel %vm1252, 0, %v1156
        %v1285 = vsel %vm1253, 0, %v1157
        %v1286 = vsel %vm1254, 0, %v1158
        %v1287 = vsel %vm1255, 0, %v1159
        %vm1288 = vcmp.eq.s32.totalorder %v1064, 15
        %vm1289 = vcmp.eq.s32.totalorder %v1065, 15
        %vm1290 = vcmp.eq.s32.totalorder %v1066, 15
        %vm1291 = vcmp.eq.s32.totalorder %v1067, 15
        %vm1292 = vcmp.eq.s32.totalorder %v1068, 15
        %vm1293 = vcmp.eq.s32.totalorder %v1069, 15
        %vm1294 = vcmp.eq.s32.totalorder %v1070, 15
        %vm1295 = vcmp.eq.s32.totalorder %v1071, 15
        %vm1296 = vcmp.eq.s32.totalorder %v1072, 15
        %vm1297 = vcmp.eq.s32.totalorder %v1073, 15
        %vm1298 = vcmp.eq.s32.totalorder %v1074, 15
        %vm1299 = vcmp.eq.s32.totalorder %v1075, 15
        %vm1300 = vcmp.eq.s32.totalorder %v1076, 15
        %vm1301 = vcmp.eq.s32.totalorder %v1077, 15
        %vm1302 = vcmp.eq.s32.totalorder %v1078, 15
        %vm1303 = vcmp.eq.s32.totalorder %v1079, 15
        %vm1304 = vcmp.eq.s32.totalorder %v1080, 15
        %vm1305 = vcmp.eq.s32.totalorder %v1081, 15
        %vm1306 = vcmp.eq.s32.totalorder %v1082, 15
        %vm1307 = vcmp.eq.s32.totalorder %v1083, 15
        %vm1308 = vcmp.eq.s32.totalorder %v1084, 15
        %vm1309 = vcmp.eq.s32.totalorder %v1085, 15
        %vm1310 = vcmp.eq.s32.totalorder %v1086, 15
        %vm1311 = vcmp.eq.s32.totalorder %v1087, 15
        %vm1312 = vcmp.eq.s32.totalorder %v1088, 15
        %vm1313 = vcmp.eq.s32.totalorder %v1089, 15
        %vm1314 = vcmp.eq.s32.totalorder %v1090, 15
        %vm1315 = vcmp.eq.s32.totalorder %v1091, 15
        %vm1316 = vcmp.eq.s32.totalorder %v1092, 15
        %vm1317 = vcmp.eq.s32.totalorder %v1093, 15
        %vm1318 = vcmp.eq.s32.totalorder %v1094, 15
        %vm1319 = vcmp.eq.s32.totalorder %v1095, 15
        %v1320 = vld [vmem:[#allocation2] sm:$0xe]
        %v1321 = vld [vmem:[#allocation2 + $0x80] sm:$0x1]
        %v1322 = vsel %vm1288, 1, 0
        %v1323 = vsel %vm1289, 1, 0
        %v1324 = vsel %vm1290, 1, 0
        %v1325 = vsel %vm1291, 1, 0
        %v1326 = vsel %vm1292, 1, 0
        %v1327 = vsel %vm1293, 1, 0
        %v1328 = vsel %vm1294, 1, 0
        %v1329 = vsel %vm1295, 1, 0
        %v1330 = vsel %vm1296, 1, 0
        %v1331 = vsel %vm1297, 1, 0
        %v1332 = vsel %vm1298, 1, 0
        %v1333 = vsel %vm1299, 1, 0
        %v1334 = vsel %vm1300, 1, 0
        %v1335 = vsel %vm1301, 1, 0
        %v1336 = vsel %vm1302, 1, 0
        %v1337 = vsel %vm1303, 1, 0
        %v1338 = vsel %vm1304, 1, 0
        %v1339 = vsel %vm1305, 1, 0
        %v1340 = vsel %vm1306, 1, 0
        %v1341 = vsel %vm1307, 1, 0
        %v1342 = vsel %vm1308, 1, 0
        %v1343 = vsel %vm1309, 1, 0
        %v1344 = vsel %vm1310, 1, 0
        %v1345 = vsel %vm1311, 1, 0
        %v1346 = vsel %vm1312, 1, 0
        %v1347 = vsel %vm1313, 1, 0
        %v1348 = vsel %vm1314, 1, 0
        %v1349 = vsel %vm1315, 1, 0
        %v1350 = vsel %vm1316, 1, 0
        %v1351 = vsel %vm1317, 1, 0
        %v1352 = vsel %vm1318, 1, 0
        %v1353 = vsel %vm1319, 1, 0
        %vm1354 = vcmp.eq.s32.totalorder %v1322, 1
        %vm1355 = vcmp.eq.s32.totalorder %v1323, 1
        %vm1356 = vcmp.eq.s32.totalorder %v1324, 1
        %vm1357 = vcmp.eq.s32.totalorder %v1325, 1
        %vm1358 = vcmp.eq.s32.totalorder %v1326, 1
        %vm1359 = vcmp.eq.s32.totalorder %v1327, 1
        %vm1360 = vcmp.eq.s32.totalorder %v1328, 1
        %vm1361 = vcmp.eq.s32.totalorder %v1329, 1
        %vm1362 = vcmp.eq.s32.totalorder %v1330, 1
        %vm1363 = vcmp.eq.s32.totalorder %v1331, 1
        %vm1364 = vcmp.eq.s32.totalorder %v1332, 1
        %vm1365 = vcmp.eq.s32.totalorder %v1333, 1
        %vm1366 = vcmp.eq.s32.totalorder %v1334, 1
        %vm1367 = vcmp.eq.s32.totalorder %v1335, 1
        %vm1368 = vcmp.eq.s32.totalorder %v1336, 1
        %vm1369 = vcmp.eq.s32.totalorder %v1337, 1
        %vm1370 = vcmp.eq.s32.totalorder %v1338, 1
        %vm1371 = vcmp.eq.s32.totalorder %v1339, 1
        %vm1372 = vcmp.eq.s32.totalorder %v1340, 1
        %vm1373 = vcmp.eq.s32.totalorder %v1341, 1
        %vm1374 = vcmp.eq.s32.totalorder %v1342, 1
        %vm1375 = vcmp.eq.s32.totalorder %v1343, 1
        %vm1376 = vcmp.eq.s32.totalorder %v1344, 1
        %vm1377 = vcmp.eq.s32.totalorder %v1345, 1
        %vm1378 = vcmp.eq.s32.totalorder %v1346, 1
        %vm1379 = vcmp.eq.s32.totalorder %v1347, 1
        %vm1380 = vcmp.eq.s32.totalorder %v1348, 1
        %vm1381 = vcmp.eq.s32.totalorder %v1349, 1
        %vm1382 = vcmp.eq.s32.totalorder %v1350, 1
        %vm1383 = vcmp.eq.s32.totalorder %v1351, 1
        %vm1384 = vcmp.eq.s32.totalorder %v1352, 1
        %vm1385 = vcmp.eq.s32.totalorder %v1353, 1
        %vm1386 = vmpackc.low %vm1354, %vm1354
        %vm1387 = vmpackc.low %vm1355, %vm1355
        %vm1388 = vmpackc.low %vm1356, %vm1356
        %vm1389 = vmpackc.low %vm1357, %vm1357
        %vm1390 = vmpackc.low %vm1358, %vm1358
        %vm1391 = vmpackc.low %vm1359, %vm1359
        %vm1392 = vmpackc.low %vm1360, %vm1360
        %vm1393 = vmpackc.low %vm1361, %vm1361
        %vm1394 = vmpackc.low %vm1362, %vm1362
        %vm1395 = vmpackc.low %vm1363, %vm1363
        %vm1396 = vmpackc.low %vm1364, %vm1364
        %vm1397 = vmpackc.low %vm1365, %vm1365
        %vm1398 = vmpackc.low %vm1366, %vm1366
        %vm1399 = vmpackc.low %vm1367, %vm1367
        %vm1400 = vmpackc.low %vm1368, %vm1368
        %vm1401 = vmpackc.low %vm1369, %vm1369
        %vm1402 = vmpackc.low %vm1370, %vm1370
        %vm1403 = vmpackc.low %vm1371, %vm1371
        %vm1404 = vmpackc.low %vm1372, %vm1372
        %vm1405 = vmpackc.low %vm1373, %vm1373
        %vm1406 = vmpackc.low %vm1374, %vm1374
        %vm1407 = vmpackc.low %vm1375, %vm1375
        %vm1408 = vmpackc.low %vm1376, %vm1376
        %vm1409 = vmpackc.low %vm1377, %vm1377
        %vm1410 = vmpackc.low %vm1378, %vm1378
        %vm1411 = vmpackc.low %vm1379, %vm1379
        %vm1412 = vmpackc.low %vm1380, %vm1380
        %vm1413 = vmpackc.low %vm1381, %vm1381
        %vm1414 = vmpackc.low %vm1382, %vm1382
        %vm1415 = vmpackc.low %vm1383, %vm1383
        %vm1416 = vmpackc.low %vm1384, %vm1384
        %vm1417 = vmpackc.low %vm1385, %vm1385
        %v1418 = vsel %vm1386, 65537, 0
        %v1419 = vsel %vm1387, 65537, 0
        %v1420 = vsel %vm1388, 65537, 0
        %v1421 = vsel %vm1389, 65537, 0
        %v1422 = vsel %vm1390, 65537, 0
        %v1423 = vsel %vm1391, 65537, 0
        %v1424 = vsel %vm1392, 65537, 0
        %v1425 = vsel %vm1393, 65537, 0
        %v1426 = vsel %vm1394, 65537, 0
        %v1427 = vsel %vm1395, 65537, 0
        %v1428 = vsel %vm1396, 65537, 0
        %v1429 = vsel %vm1397, 65537, 0
        %v1430 = vsel %vm1398, 65537, 0
        %v1431 = vsel %vm1399, 65537, 0
        %v1432 = vsel %vm1400, 65537, 0
        %v1433 = vsel %vm1401, 65537, 0
        %v1434 = vsel %vm1402, 65537, 0
        %v1435 = vsel %vm1403, 65537, 0
        %v1436 = vsel %vm1404, 65537, 0
        %v1437 = vsel %vm1405, 65537, 0
        %v1438 = vsel %vm1406, 65537, 0
        %v1439 = vsel %vm1407, 65537, 0
        %v1440 = vsel %vm1408, 65537, 0
        %v1441 = vsel %vm1409, 65537, 0
        %v1442 = vsel %vm1410, 65537, 0
        %v1443 = vsel %vm1411, 65537, 0
        %v1444 = vsel %vm1412, 65537, 0
        %v1445 = vsel %vm1413, 65537, 0
        %v1446 = vsel %vm1414, 65537, 0
        %v1447 = vsel %vm1415, 65537, 0
        %v1448 = vsel %vm1416, 65537, 0
        %v1449 = vsel %vm1417, 65537, 0
        %vm1450 = vcmask 1044484
        %vm1451 = vmor %vm307, %vm1450
        %v1452 = vrot.slane %v1418, 7
        %v1453 = vrot.slane %v1452, 4
        %v1454 = vrot.slane %v1419, 7
        %v1455 = vsel %vm1451, %v1453, %v1454
        %v1456 = vrot.slane %v1454, 4
        %v1457 = vrot.slane %v1420, 7
        %v1458 = vsel %vm1451, %v1456, %v1457
        %v1459 = vrot.slane %v1457, 4
        %v1460 = vrot.slane %v1421, 7
        %v1461 = vsel %vm1451, %v1459, %v1460
        %v1462 = vrot.slane %v1460, 4
        %v1463 = vrot.slane %v1422, 7
        %v1464 = vsel %vm1451, %v1462, %v1463
        %v1465 = vrot.slane %v1463, 4
        %v1466 = vrot.slane %v1423, 7
        %v1467 = vsel %vm1451, %v1465, %v1466
        %v1468 = vrot.slane %v1466, 4
        %v1469 = vrot.slane %v1424, 7
        %v1470 = vsel %vm1451, %v1468, %v1469
        %v1471 = vrot.slane %v1469, 4
        %v1472 = vrot.slane %v1425, 7
        %v1473 = vsel %vm1451, %v1471, %v1472
        %v1474 = vrot.slane %v1472, 4
        %v1475 = vrot.slane %v1426, 7
        %v1476 = vsel %vm1451, %v1474, %v1475
        %v1477 = vrot.slane %v1475, 4
        %v1478 = vrot.slane %v1427, 7
        %v1479 = vsel %vm1451, %v1477, %v1478
        %v1480 = vrot.slane %v1478, 4
        %v1481 = vrot.slane %v1428, 7
        %v1482 = vsel %vm1451, %v1480, %v1481
        %v1483 = vrot.slane %v1481, 4
        %v1484 = vrot.slane %v1429, 7
        %v1485 = vsel %vm1451, %v1483, %v1484
        %v1486 = vrot.slane %v1484, 4
        %v1487 = vrot.slane %v1430, 7
        %v1488 = vsel %vm1451, %v1486, %v1487
        %v1489 = vrot.slane %v1487, 4
        %v1490 = vrot.slane %v1431, 7
        %v1491 = vsel %vm1451, %v1489, %v1490
        %v1492 = vrot.slane %v1490, 4
        %v1493 = vrot.slane %v1432, 7
        %v1494 = vsel %vm1451, %v1492, %v1493
        %v1495 = vrot.slane %v1493, 4
        %v1496 = vrot.slane %v1433, 7
        %v1497 = vsel %vm1451, %v1495, %v1496
        %v1498 = vrot.slane %v1496, 4
        %v1499 = vrot.slane %v1434, 7
        %v1500 = vsel %vm1451, %v1498, %v1499
        %v1501 = vrot.slane %v1499, 4
        %v1502 = vrot.slane %v1435, 7
        %v1503 = vsel %vm1451, %v1501, %v1502
        %v1504 = vrot.slane %v1502, 4
        %v1505 = vrot.slane %v1436, 7
        %v1506 = vsel %vm1451, %v1504, %v1505
        %v1507 = vrot.slane %v1505, 4
        %v1508 = vrot.slane %v1437, 7
        %v1509 = vsel %vm1451, %v1507, %v1508
        %v1510 = vrot.slane %v1508, 4
        %v1511 = vrot.slane %v1438, 7
        %v1512 = vsel %vm1451, %v1510, %v1511
        %v1513 = vrot.slane %v1511, 4
        %v1514 = vrot.slane %v1439, 7
        %v1515 = vsel %vm1451, %v1513, %v1514
        %v1516 = vrot.slane %v1514, 4
        %v1517 = vrot.slane %v1440, 7
        %v1518 = vsel %vm1451, %v1516, %v1517
        %v1519 = vrot.slane %v1517, 4
        %v1520 = vrot.slane %v1441, 7
        %v1521 = vsel %vm1451, %v1519, %v1520
        %v1522 = vrot.slane %v1520, 4
        %v1523 = vrot.slane %v1442, 7
        %v1524 = vsel %vm1451, %v1522, %v1523
        %v1525 = vrot.slane %v1523, 4
        %v1526 = vrot.slane %v1443, 7
        %v1527 = vsel %vm1451, %v1525, %v1526
        %v1528 = vrot.slane %v1526, 4
        %v1529 = vrot.slane %v1444, 7
        %v1530 = vsel %vm1451, %v1528, %v1529
        %v1531 = vrot.slane %v1529, 4
        %v1532 = vrot.slane %v1445, 7
        %v1533 = vsel %vm1451, %v1531, %v1532
        %v1534 = vrot.slane %v1532, 4
        %v1535 = vrot.slane %v1446, 7
        %v1536 = vsel %vm1451, %v1534, %v1535
        %v1537 = vrot.slane %v1535, 4
        %v1538 = vrot.slane %v1447, 7
        %v1539 = vsel %vm1451, %v1537, %v1538
        %v1540 = vrot.slane %v1538, 4
        %v1541 = vrot.slane %v1448, 7
        %v1542 = vsel %vm1451, %v1540, %v1541
        %v1543 = vrot.slane %v1541, 4
        %v1544 = vrot.slane %v1449, 7
        %v1545 = vsel %vm1451, %v1543, %v1544
        %v1546 = vrot.slane %v1544, 4
        %vm1547 = vcmp.ne.s16.totalorder %v1452, 0
        %vm1548 = vcmp.ne.s16.totalorder %v1455, 0
        %vm1549 = vcmp.ne.s16.totalorder %v1458, 0
        %vm1550 = vcmp.ne.s16.totalorder %v1461, 0
        %vm1551 = vcmp.ne.s16.totalorder %v1464, 0
        %vm1552 = vcmp.ne.s16.totalorder %v1467, 0
        %vm1553 = vcmp.ne.s16.totalorder %v1470, 0
        %vm1554 = vcmp.ne.s16.totalorder %v1473, 0
        %vm1555 = vcmp.ne.s16.totalorder %v1476, 0
        %vm1556 = vcmp.ne.s16.totalorder %v1479, 0
        %vm1557 = vcmp.ne.s16.totalorder %v1482, 0
        %vm1558 = vcmp.ne.s16.totalorder %v1485, 0
        %vm1559 = vcmp.ne.s16.totalorder %v1488, 0
        %vm1560 = vcmp.ne.s16.totalorder %v1491, 0
        %vm1561 = vcmp.ne.s16.totalorder %v1494, 0
        %vm1562 = vcmp.ne.s16.totalorder %v1497, 0
        %vm1563 = vcmp.ne.s16.totalorder %v1500, 0
        %vm1564 = vcmp.ne.s16.totalorder %v1503, 0
        %vm1565 = vcmp.ne.s16.totalorder %v1506, 0
        %vm1566 = vcmp.ne.s16.totalorder %v1509, 0
        %vm1567 = vcmp.ne.s16.totalorder %v1512, 0
        %vm1568 = vcmp.ne.s16.totalorder %v1515, 0
        %vm1569 = vcmp.ne.s16.totalorder %v1518, 0
        %vm1570 = vcmp.ne.s16.totalorder %v1521, 0
        %vm1571 = vcmp.ne.s16.totalorder %v1524, 0
        %vm1572 = vcmp.ne.s16.totalorder %v1527, 0
        %vm1573 = vcmp.ne.s16.totalorder %v1530, 0
        %vm1574 = vcmp.ne.s16.totalorder %v1533, 0
        %vm1575 = vcmp.ne.s16.totalorder %v1536, 0
        %vm1576 = vcmp.ne.s16.totalorder %v1539, 0
        %vm1577 = vcmp.ne.s16.totalorder %v1542, 0
        %vm1578 = vcmp.ne.s16.totalorder %v1545, 0
        %vm1579 = vcmp.ne.s16.totalorder %v1546, 0
        %v1580 = vsel %vm1547, 0, %v1320
        %v1581 = vsel %vm1548, 0, %v1129
        %v1582 = vsel %vm1549, 0, %v1130
        %v1583 = vsel %vm1550, 0, %v1131
        %v1584 = vsel %vm1551, 0, %v1132
        %v1585 = vsel %vm1552, 0, %v1133
        %v1586 = vsel %vm1553, 0, %v1134
        %v1587 = vsel %vm1554, 0, %v1135
        %v1588 = vsel %vm1555, 0, %v1136
        %v1589 = vsel %vm1556, 0, %v1137
        %v1590 = vsel %vm1557, 0, %v1138
        %v1591 = vsel %vm1558, 0, %v1139
        %v1592 = vsel %vm1559, 0, %v1140
        %v1593 = vsel %vm1560, 0, %v1141
        %v1594 = vsel %vm1561, 0, %v1142
        %v1595 = vsel %vm1562, 0, %v1143
        %v1596 = vsel %vm1563, 0, %v1144
        %v1597 = vsel %vm1564, 0, %v1145
        %v1598 = vsel %vm1565, 0, %v1146
        %v1599 = vsel %vm1566, 0, %v1147
        %v1600 = vsel %vm1567, 0, %v1148
        %v1601 = vsel %vm1568, 0, %v1149
        %v1602 = vsel %vm1569, 0, %v1150
        %v1603 = vsel %vm1570, 0, %v1151
        %v1604 = vsel %vm1571, 0, %v1152
        %v1605 = vsel %vm1572, 0, %v1153
        %v1606 = vsel %vm1573, 0, %v1154
        %v1607 = vsel %vm1574, 0, %v1155
        %v1608 = vsel %vm1575, 0, %v1156
        %v1609 = vsel %vm1576, 0, %v1157
        %v1610 = vsel %vm1577, 0, %v1158
        %v1611 = vsel %vm1578, 0, %v1159
        %v1612 = vsel %vm1579, 0, %v1321
        %v1645 = vunpack.c.l.b16 %v1256
        %v1646 = vunpack.c.l.b16 %v1257
        %v1647 = vunpack.c.l.b16 %v1258
        %v1648 = vunpack.c.l.b16 %v1259
        %v1649 = vunpack.c.l.b16 %v1260
        %v1650 = vunpack.c.l.b16 %v1261
        %v1651 = vunpack.c.l.b16 %v1262
        %v1652 = vunpack.c.l.b16 %v1263
        %v1653 = vunpack.c.l.b16 %v1264
        %v1654 = vunpack.c.l.b16 %v1265
        %v1655 = vunpack.c.l.b16 %v1266
        %v1656 = vunpack.c.l.b16 %v1267
        %v1657 = vunpack.c.l.b16 %v1268
        %v1658 = vunpack.c.l.b16 %v1269
        %v1659 = vunpack.c.l.b16 %v1270
        %v1660 = vunpack.c.l.b16 %v1271
        %v1661 = vunpack.c.l.b16 %v1272
        %v1662 = vunpack.c.l.b16 %v1273
        %v1663 = vunpack.c.l.b16 %v1274
        %v1664 = vunpack.c.l.b16 %v1275
        %v1665 = vunpack.c.l.b16 %v1276
        %v1666 = vunpack.c.l.b16 %v1277
        %v1667 = vunpack.c.l.b16 %v1278
        %v1668 = vunpack.c.l.b16 %v1279
        %v1669 = vunpack.c.l.b16 %v1280
        %v1670 = vunpack.c.l.b16 %v1281
        %v1671 = vunpack.c.l.b16 %v1282
        %v1672 = vunpack.c.l.b16 %v1283
        %v1673 = vunpack.c.l.b16 %v1284
        %v1674 = vunpack.c.l.b16 %v1285
        %v1675 = vunpack.c.l.b16 %v1286
        %v1676 = vunpack.c.l.b16 %v1287
        %v1677 = vpack.c.b16 %v1646, %v1645
        %v1678 = vpack.c.b16 %v1648, %v1647
        %v1679 = vpack.c.b16 %v1650, %v1649
        %v1680 = vpack.c.b16 %v1652, %v1651
        %v1681 = vpack.c.b16 %v1654, %v1653
        %v1682 = vpack.c.b16 %v1656, %v1655
        %v1683 = vpack.c.b16 %v1658, %v1657
        %v1684 = vpack.c.b16 %v1660, %v1659
        %v1685 = vpack.c.b16 %v1662, %v1661
        %v1686 = vpack.c.b16 %v1664, %v1663
        %v1687 = vpack.c.b16 %v1666, %v1665
        %v1688 = vpack.c.b16 %v1668, %v1667
        %v1689 = vpack.c.b16 %v1670, %v1669
        %v1690 = vpack.c.b16 %v1672, %v1671
        %v1691 = vpack.c.b16 %v1674, %v1673
        %v1692 = vpack.c.b16 %v1676, %v1675
        %v1741 = vunpack.c.l.b16 %v275
        %v1742 = vunpack.c.l.b16 %v276
        %v1743 = vunpack.c.l.b16 %v277
        %v1744 = vunpack.c.l.b16 %v278
        %v1745 = vunpack.c.l.b16 %v279
        %v1746 = vunpack.c.l.b16 %v280
        %v1747 = vunpack.c.l.b16 %v281
        %v1748 = vunpack.c.l.b16 %v282
        %v1749 = vunpack.c.l.b16 %v283
        %v1750 = vunpack.c.l.b16 %v284
        %v1751 = vunpack.c.l.b16 %v285
        %v1752 = vunpack.c.l.b16 %v286
        %v1753 = vunpack.c.l.b16 %v287
        %v1754 = vunpack.c.l.b16 %v288
        %v1755 = vunpack.c.l.b16 %v289
        %v1756 = vunpack.c.l.b16 %v290
        %v1757 = vunpack.c.l.b16 %v291
        %v1758 = vunpack.c.l.b16 %v292
        %v1759 = vunpack.c.l.b16 %v293
        %v1760 = vunpack.c.l.b16 %v294
        %v1761 = vunpack.c.l.b16 %v295
        %v1762 = vunpack.c.l.b16 %v296
        %v1763 = vunpack.c.l.b16 %v297
        %v1764 = vunpack.c.l.b16 %v298
        %v1765 = vunpack.c.l.b16 %v299
        %v1766 = vunpack.c.l.b16 %v300
        %v1767 = vunpack.c.l.b16 %v301
        %v1768 = vunpack.c.l.b16 %v302
        %v1769 = vunpack.c.l.b16 %v303
        %v1770 = vunpack.c.l.b16 %v304
        %v1771 = vunpack.c.l.b16 %v305
        %v1772 = vunpack.c.l.b16 %v306
        %v1773 = vpack.c.b16 %v1742, %v1741
        %v1774 = vpack.c.b16 %v1744, %v1743
        %v1775 = vpack.c.b16 %v1746, %v1745
        %v1776 = vpack.c.b16 %v1748, %v1747
        %v1777 = vpack.c.b16 %v1750, %v1749
        %v1778 = vpack.c.b16 %v1752, %v1751
        %v1779 = vpack.c.b16 %v1754, %v1753
        %v1780 = vpack.c.b16 %v1756, %v1755
        %v1781 = vpack.c.b16 %v1758, %v1757
        %v1782 = vpack.c.b16 %v1760, %v1759
        %v1783 = vpack.c.b16 %v1762, %v1761
        %v1784 = vpack.c.b16 %v1764, %v1763
        %v1785 = vpack.c.b16 %v1766, %v1765
        %v1786 = vpack.c.b16 %v1768, %v1767
        %v1787 = vpack.c.b16 %v1770, %v1769
        %v1788 = vpack.c.b16 %v1772, %v1771
        %v1838 = vunpack.c.l.b16 %v1580
        %v1839 = vunpack.c.l.b16 %v1581
        %v1840 = vunpack.c.l.b16 %v1582
        %v1841 = vunpack.c.l.b16 %v1583
        %v1842 = vunpack.c.l.b16 %v1584
        %v1843 = vunpack.c.l.b16 %v1585
        %v1844 = vunpack.c.l.b16 %v1586
        %v1845 = vunpack.c.l.b16 %v1587
        %v1846 = vunpack.c.l.b16 %v1588
        %v1847 = vunpack.c.l.b16 %v1589
        %v1848 = vunpack.c.l.b16 %v1590
        %v1849 = vunpack.c.l.b16 %v1591
        %v1850 = vunpack.c.l.b16 %v1592
        %v1851 = vunpack.c.l.b16 %v1593
        %v1852 = vunpack.c.l.b16 %v1594
        %v1853 = vunpack.c.l.b16 %v1595
        %v1854 = vunpack.c.l.b16 %v1596
        %v1855 = vunpack.c.l.b16 %v1597
        %v1856 = vunpack.c.l.b16 %v1598
        %v1857 = vunpack.c.l.b16 %v1599
        %v1858 = vunpack.c.l.b16 %v1600
        %v1859 = vunpack.c.l.b16 %v1601
        %v1860 = vunpack.c.l.b16 %v1602
        %v1861 = vunpack.c.l.b16 %v1603
        %v1862 = vunpack.c.l.b16 %v1604
        %v1863 = vunpack.c.l.b16 %v1605
        %v1864 = vunpack.c.l.b16 %v1606
        %v1865 = vunpack.c.l.b16 %v1607
        %v1866 = vunpack.c.l.b16 %v1608
        %v1867 = vunpack.c.l.b16 %v1609
        %v1868 = vunpack.c.l.b16 %v1610
        %v1869 = vunpack.c.l.b16 %v1611
        %v1870 = vunpack.c.l.b16 %v1612
        %v1871 = vpack.c.b16 %v1839, %v1838
        %v1872 = vpack.c.b16 %v1841, %v1840
        %v1873 = vpack.c.b16 %v1843, %v1842
        %v1874 = vpack.c.b16 %v1845, %v1844
        %v1875 = vpack.c.b16 %v1847, %v1846
        %v1876 = vpack.c.b16 %v1849, %v1848
        %v1877 = vpack.c.b16 %v1851, %v1850
        %v1878 = vpack.c.b16 %v1853, %v1852
        %v1879 = vpack.c.b16 %v1855, %v1854
        %v1880 = vpack.c.b16 %v1857, %v1856
        %v1881 = vpack.c.b16 %v1859, %v1858
        %v1882 = vpack.c.b16 %v1861, %v1860
        %v1883 = vpack.c.b16 %v1863, %v1862
        %v1884 = vpack.c.b16 %v1865, %v1864
        %v1885 = vpack.c.b16 %v1867, %v1866
        %v1886 = vpack.c.b16 %v1869, %v1868
        %v1887 = vpack.c.b16 %v1870, %v1870
        %vm1888 = vcmask 1046528
        %v1889 = vrot.slane %v1871, 1
        %v1890 = vrot.slane %v1872, 1
        %v1891 = vsel %vm1888, %v1889, %v1890
        %v1892 = vrot.slane %v1873, 1
        %v1893 = vsel %vm1888, %v1890, %v1892
        %v1894 = vrot.slane %v1874, 1
        %v1895 = vsel %vm1888, %v1892, %v1894
        %v1896 = vrot.slane %v1875, 1
        %v1897 = vsel %vm1888, %v1894, %v1896
        %v1898 = vrot.slane %v1876, 1
        %v1899 = vsel %vm1888, %v1896, %v1898
        %v1900 = vrot.slane %v1877, 1
        %v1901 = vsel %vm1888, %v1898, %v1900
        %v1902 = vrot.slane %v1878, 1
        %v1903 = vsel %vm1888, %v1900, %v1902
        %v1904 = vrot.slane %v1879, 1
        %v1905 = vsel %vm1888, %v1902, %v1904
        %v1906 = vrot.slane %v1880, 1
        %v1907 = vsel %vm1888, %v1904, %v1906
        %v1908 = vrot.slane %v1881, 1
        %v1909 = vsel %vm1888, %v1906, %v1908
        %v1910 = vrot.slane %v1882, 1
        %v1911 = vsel %vm1888, %v1908, %v1910
        %v1912 = vrot.slane %v1883, 1
        %v1913 = vsel %vm1888, %v1910, %v1912
        %v1914 = vrot.slane %v1884, 1
        %v1915 = vsel %vm1888, %v1912, %v1914
        %v1916 = vrot.slane %v1885, 1
        %v1917 = vsel %vm1888, %v1914, %v1916
        %v1918 = vrot.slane %v1886, 1
        %v1919 = vsel %vm1888, %v1916, %v1918
        %v1920 = vrot.slane %v1887, 1
        %v1921 = vsel %vm1888, %v1918, %v1920
        %v1938 = vld [vmem:[#allocation7] sm:$0xf]
        %v1939 = vld [vmem:[#allocation7 + $0x4] sm:$0xf]
        %v1940 = vld [vmem:[#allocation7 + $0x8] sm:$0xf]
        %v1941 = vld [vmem:[#allocation7 + $0xc] sm:$0xf]
        %v1942 = vld [vmem:[#allocation7 + $0x10] sm:$0xf]
        %v1943 = vld [vmem:[#allocation7 + $0x14] sm:$0xf]
        %v1944 = vld [vmem:[#allocation7 + $0x18] sm:$0xf]
        %v1945 = vld [vmem:[#allocation7 + $0x1c] sm:$0xf]
        %v1946 = vld [vmem:[#allocation7 + $0x20] sm:$0xf]
        %v1947 = vld [vmem:[#allocation7 + $0x24] sm:$0xf]
        %v1948 = vld [vmem:[#allocation7 + $0x28] sm:$0xf]
        %v1949 = vld [vmem:[#allocation7 + $0x2c] sm:$0xf]
        %v1950 = vld [vmem:[#allocation7 + $0x30] sm:$0xf]
        %v1951 = vld [vmem:[#allocation7 + $0x34] sm:$0xf]
        %v1952 = vld [vmem:[#allocation7 + $0x38] sm:$0xf]
        %v1953 = vld [vmem:[#allocation7 + $0x3c] sm:$0xf]
        %v1954 = vld [vmem:[#allocation7 + $0x40] sm:$0xf]
        %v1955 = vld [vmem:[#allocation7 + $0x44] sm:$0xf]
        %v1956 = vld [vmem:[#allocation7 + $0x48] sm:$0xf]
        %v1957 = vld [vmem:[#allocation7 + $0x4c] sm:$0xf]
        %v1958 = vld [vmem:[#allocation7 + $0x50] sm:$0xf]
        %v1959 = vld [vmem:[#allocation7 + $0x54] sm:$0xf]
        %v1960 = vld [vmem:[#allocation7 + $0x58] sm:$0xf]
        %v1961 = vld [vmem:[#allocation7 + $0x5c] sm:$0xf]
        %v1962 = vld [vmem:[#allocation7 + $0x60] sm:$0xf]
        %v1963 = vld [vmem:[#allocation7 + $0x64] sm:$0xf]
        %v1964 = vld [vmem:[#allocation7 + $0x68] sm:$0xf]
        %v1965 = vld [vmem:[#allocation7 + $0x6c] sm:$0xf]
        %v1966 = vld [vmem:[#allocation7 + $0x70] sm:$0xf]
        %v1967 = vld [vmem:[#allocation7 + $0x74] sm:$0xf]
        %v1968 = vld [vmem:[#allocation7 + $0x78] sm:$0xf]
        %v1969 = vld [vmem:[#allocation7 + $0x7c] sm:$0xf]
        %v1970 = vld [vmem:[#allocation7 + $0x80] sm:$0xf]
        %v1971 = vld [vmem:[#allocation7 + $0x84] sm:$0xf]
        %v1972 = vld [vmem:[#allocation7 + $0x88] sm:$0xf]
        %v1973 = vld [vmem:[#allocation7 + $0x8c] sm:$0xf]
        %v1974 = vld [vmem:[#allocation7 + $0x90] sm:$0xf]
        %v1975 = vld [vmem:[#allocation7 + $0x94] sm:$0xf]
        %v1976 = vld [vmem:[#allocation7 + $0x98] sm:$0xf]
        %v1977 = vld [vmem:[#allocation7 + $0x9c] sm:$0xf]
        %v1978 = vld [vmem:[#allocation7 + $0xa0] sm:$0xf]
        %v1979 = vld [vmem:[#allocation7 + $0xa4] sm:$0xf]
        %v1980 = vld [vmem:[#allocation7 + $0xa8] sm:$0xf]
        %v1981 = vld [vmem:[#allocation7 + $0xac] sm:$0xf]
        %v1982 = vld [vmem:[#allocation7 + $0xb0] sm:$0xf]
        %v1983 = vld [vmem:[#allocation7 + $0xb4] sm:$0xf]
        %v1984 = vld [vmem:[#allocation7 + $0xb8] sm:$0xf]
        %v1985 = vld [vmem:[#allocation7 + $0xbc] sm:$0xf]
        %v2034 = vunpack.c.l.b16 %v1938
        %v2035 = vunpack.c.l.b16 %v1939
        %v2036 = vunpack.c.l.b16 %v1940
        %v2037 = vunpack.c.l.b16 %v1941
        %v2038 = vunpack.c.l.b16 %v1942
        %v2039 = vunpack.c.l.b16 %v1943
        %v2040 = vunpack.c.l.b16 %v1944
        %v2041 = vunpack.c.l.b16 %v1945
        %v2042 = vunpack.c.l.b16 %v1946
        %v2043 = vunpack.c.l.b16 %v1947
        %v2044 = vunpack.c.l.b16 %v1948
        %v2045 = vunpack.c.l.b16 %v1949
        %v2046 = vunpack.c.l.b16 %v1950
        %v2047 = vunpack.c.l.b16 %v1951
        %v2048 = vunpack.c.l.b16 %v1952
        %v2049 = vunpack.c.l.b16 %v1953
        %v2050 = vunpack.c.l.b16 %v1954
        %v2051 = vunpack.c.l.b16 %v1955
        %v2052 = vunpack.c.l.b16 %v1956
        %v2053 = vunpack.c.l.b16 %v1957
        %v2054 = vunpack.c.l.b16 %v1958
        %v2055 = vunpack.c.l.b16 %v1959
        %v2056 = vunpack.c.l.b16 %v1960
        %v2057 = vunpack.c.l.b16 %v1961
        %v2058 = vunpack.c.l.b16 %v1962
        %v2059 = vunpack.c.l.b16 %v1963
        %v2060 = vunpack.c.l.b16 %v1964
        %v2061 = vunpack.c.l.b16 %v1965
        %v2062 = vunpack.c.l.b16 %v1966
        %v2063 = vunpack.c.l.b16 %v1967
        %v2064 = vunpack.c.l.b16 %v1968
        %v2065 = vunpack.c.l.b16 %v1969
        %v2066 = vunpack.c.l.b16 %v1970
        %v2067 = vunpack.c.l.b16 %v1971
        %v2068 = vunpack.c.l.b16 %v1972
        %v2069 = vunpack.c.l.b16 %v1973
        %v2070 = vunpack.c.l.b16 %v1974
        %v2071 = vunpack.c.l.b16 %v1975
        %v2072 = vunpack.c.l.b16 %v1976
        %v2073 = vunpack.c.l.b16 %v1977
        %v2074 = vunpack.c.l.b16 %v1978
        %v2075 = vunpack.c.l.b16 %v1979
        %v2076 = vunpack.c.l.b16 %v1980
        %v2077 = vunpack.c.l.b16 %v1981
        %v2078 = vunpack.c.l.b16 %v1982
        %v2079 = vunpack.c.l.b16 %v1983
        %v2080 = vunpack.c.l.b16 %v1984
        %v2081 = vunpack.c.l.b16 %v1985
        %v2082 = vpack.c.b16 %v2035, %v2034
        %v2083 = vpack.c.b16 %v2037, %v2036
        %v2084 = vpack.c.b16 %v2039, %v2038
        %v2085 = vpack.c.b16 %v2041, %v2040
        %v2086 = vpack.c.b16 %v2043, %v2042
        %v2087 = vpack.c.b16 %v2045, %v2044
        %v2088 = vpack.c.b16 %v2047, %v2046
        %v2089 = vpack.c.b16 %v2049, %v2048
        %v2090 = vpack.c.b16 %v2051, %v2050
        %v2091 = vpack.c.b16 %v2053, %v2052
        %v2092 = vpack.c.b16 %v2055, %v2054
        %v2093 = vpack.c.b16 %v2057, %v2056
        %v2094 = vpack.c.b16 %v2059, %v2058
        %v2095 = vpack.c.b16 %v2061, %v2060
        %v2096 = vpack.c.b16 %v2063, %v2062
        %v2097 = vpack.c.b16 %v2065, %v2064
        %v2098 = vpack.c.b16 %v2067, %v2066
        %v2099 = vpack.c.b16 %v2069, %v2068
        %v2100 = vpack.c.b16 %v2071, %v2070
        %v2101 = vpack.c.b16 %v2073, %v2072
        %v2102 = vpack.c.b16 %v2075, %v2074
        %v2103 = vpack.c.b16 %v2077, %v2076
        %v2104 = vpack.c.b16 %v2079, %v2078
        %v2105 = vpack.c.b16 %v2081, %v2080
        %2130 = vmatprep.subr.bf16.mxu0 0
        %2131 = vmatpush1.bf16.msra.mxu0 %v2089
        %2132 = vmatprep.subr.bf16.mxu0 0
        %2133 = vmatpush1.bf16.msra.mxu0 %v2088
        %2134 = vmatprep.subr.bf16.mxu0 0
        %2135 = vmatpush1.bf16.msra.mxu0 %v2087
        %2136 = vmatprep.subr.bf16.mxu0 0
        %2137 = vmatpush1.bf16.msra.mxu0 %v2086
        %2138 = vmatprep.subr.bf16.mxu0 0
        %2139 = vmatpush1.bf16.msra.mxu0 %v2085
        %2140 = vmatprep.subr.bf16.mxu0 0
        %2141 = vmatpush1.bf16.msra.mxu0 %v2084
        %2142 = vmatprep.subr.bf16.mxu0 0
        %2143 = vmatpush1.bf16.msra.mxu0 %v2083
        %2144 = vmatprep.subr.bf16.mxu0 0
        %2145 = vmatpush1.bf16.msra.mxu0 %v2082
        %2146 = vmatprep.subr.bf16.mxu0 0
        %2147 = vmatpush2.bf16.msra.mxu0 %v2097
        %2148 = vmatprep.subr.bf16.mxu0 0
        %2149 = vmatpush2.bf16.msra.mxu0 %v2096
        %2150 = vmatprep.subr.bf16.mxu0 0
        %2151 = vmatpush2.bf16.msra.mxu0 %v2095
        %2152 = vmatprep.subr.bf16.mxu0 0
        %2153 = vmatpush2.bf16.msra.mxu0 %v2094
        %2154 = vmatprep.subr.bf16.mxu0 0
        %2155 = vmatpush2.bf16.msra.mxu0 %v2093
        %2156 = vmatprep.subr.bf16.mxu0 0
        %2157 = vmatpush2.bf16.msra.mxu0 %v2092
        %2158 = vmatprep.subr.bf16.mxu0 0
        %2159 = vmatpush2.bf16.msra.mxu0 %v2091
        %2160 = vmatprep.subr.bf16.mxu0 0
        %2161 = vmatpush2.bf16.msra.mxu0 %v2090
        %2162 = vmatprep.mubr.bf16.mxu0 %v1773
        %2163 = vmatmul.mubr.bf16.gmra.mxu0 %v1677
        %v2164 = vpop.f32.mrf.mxu0
        %v2165 = vadd.f32 0.0, %v2164
        %v2166 = vpop.f32.mrf.mxu0
        %v2167 = vpop.f32.mrf.mxu0
        %v2168 = vadd.f32 0.0, %v2167
        %v2169 = vpop.f32.mrf.mxu0
        %2170 = vmatprep.mubr.bf16.mxu0 %v1774
        %2171 = vmatmul.mubr.bf16.gmra.mxu0 %v1678
        %v2172 = vpop.f32.mrf.mxu0
        %v2173 = vadd.f32 0.0, %v2172
        %v2174 = vpop.f32.mrf.mxu0
        %v2175 = vpop.f32.mrf.mxu0
        %v2176 = vadd.f32 0.0, %v2175
        %v2177 = vpop.f32.mrf.mxu0
        %2178 = vmatprep.mubr.bf16.mxu0 %v1775
        %2179 = vmatmul.mubr.bf16.gmra.mxu0 %v1679
        %v2180 = vpop.f32.mrf.mxu0
        %v2181 = vadd.f32 0.0, %v2180
        %v2182 = vpop.f32.mrf.mxu0
        %v2183 = vpop.f32.mrf.mxu0
        %v2184 = vadd.f32 0.0, %v2183
        %v2185 = vpop.f32.mrf.mxu0
        %2186 = vmatprep.mubr.bf16.mxu0 %v1776
        %2187 = vmatmul.mubr.bf16.gmra.mxu0 %v1680
        %v2188 = vpop.f32.mrf.mxu0
        %v2189 = vadd.f32 0.0, %v2188
        %v2190 = vpop.f32.mrf.mxu0
        %v2191 = vpop.f32.mrf.mxu0
        %v2192 = vadd.f32 0.0, %v2191
        %v2193 = vpop.f32.mrf.mxu0
        %2194 = vmatprep.mubr.bf16.mxu0 %v1777
        %2195 = vmatmul.mubr.bf16.gmra.mxu0 %v1681
        %v2196 = vpop.f32.mrf.mxu0
        %v2197 = vadd.f32 0.0, %v2196
        %v2198 = vpop.f32.mrf.mxu0
        %v2199 = vpop.f32.mrf.mxu0
        %v2200 = vadd.f32 0.0, %v2199
        %v2201 = vpop.f32.mrf.mxu0
        %2202 = vmatprep.mubr.bf16.mxu0 %v1778
        %2203 = vmatmul.mubr.bf16.gmra.mxu0 %v1682
        %v2204 = vpop.f32.mrf.mxu0
        %v2205 = vadd.f32 0.0, %v2204
        %v2206 = vpop.f32.mrf.mxu0
        %v2207 = vpop.f32.mrf.mxu0
        %v2208 = vadd.f32 0.0, %v2207
        %v2209 = vpop.f32.mrf.mxu0
        %2210 = vmatprep.mubr.bf16.mxu0 %v1779
        %2211 = vmatmul.mubr.bf16.gmra.mxu0 %v1683
        %v2212 = vpop.f32.mrf.mxu0
        %v2213 = vadd.f32 0.0, %v2212
        %v2214 = vpop.f32.mrf.mxu0
        %v2215 = vpop.f32.mrf.mxu0
        %v2216 = vadd.f32 0.0, %v2215
        %v2217 = vpop.f32.mrf.mxu0
        %2218 = vmatprep.mubr.bf16.mxu0 %v1780
        %2219 = vmatmul.mubr.bf16.gmra.mxu0 %v1684
        %v2220 = vpop.f32.mrf.mxu0
        %v2221 = vadd.f32 0.0, %v2220
        %v2222 = vpop.f32.mrf.mxu0
        %v2223 = vpop.f32.mrf.mxu0
        %v2224 = vadd.f32 0.0, %v2223
        %v2225 = vpop.f32.mrf.mxu0
        %2226 = vmatprep.mubr.bf16.mxu0 %v1781
        %2227 = vmatmul.mubr.bf16.gmra.mxu0 %v1685
        %v2228 = vpop.f32.mrf.mxu0
        %v2229 = vadd.f32 0.0, %v2228
        %v2230 = vpop.f32.mrf.mxu0
        %v2231 = vpop.f32.mrf.mxu0
        %v2232 = vadd.f32 0.0, %v2231
        %v2233 = vpop.f32.mrf.mxu0
        %2234 = vmatprep.mubr.bf16.mxu0 %v1782
        %2235 = vmatmul.mubr.bf16.gmra.mxu0 %v1686
        %v2236 = vpop.f32.mrf.mxu0
        %v2237 = vadd.f32 0.0, %v2236
        %v2238 = vpop.f32.mrf.mxu0
        %v2239 = vpop.f32.mrf.mxu0
        %v2240 = vadd.f32 0.0, %v2239
        %v2241 = vpop.f32.mrf.mxu0
        %2242 = vmatprep.mubr.bf16.mxu0 %v1783
        %2243 = vmatmul.mubr.bf16.gmra.mxu0 %v1687
        %v2244 = vpop.f32.mrf.mxu0
        %v2245 = vadd.f32 0.0, %v2244
        %v2246 = vpop.f32.mrf.mxu0
        %v2247 = vpop.f32.mrf.mxu0
        %v2248 = vadd.f32 0.0, %v2247
        %v2249 = vpop.f32.mrf.mxu0
        %2250 = vmatprep.mubr.bf16.mxu0 %v1784
        %2251 = vmatmul.mubr.bf16.gmra.mxu0 %v1688
        %v2252 = vpop.f32.mrf.mxu0
        %v2253 = vadd.f32 0.0, %v2252
        %v2254 = vpop.f32.mrf.mxu0
        %v2255 = vpop.f32.mrf.mxu0
        %v2256 = vadd.f32 0.0, %v2255
        %v2257 = vpop.f32.mrf.mxu0
        %2258 = vmatprep.mubr.bf16.mxu0 %v1785
        %2259 = vmatmul.mubr.bf16.gmra.mxu0 %v1689
        %v2260 = vpop.f32.mrf.mxu0
        %v2261 = vadd.f32 0.0, %v2260
        %v2262 = vpop.f32.mrf.mxu0
        %v2263 = vpop.f32.mrf.mxu0
        %v2264 = vadd.f32 0.0, %v2263
        %v2265 = vpop.f32.mrf.mxu0
        %2266 = vmatprep.mubr.bf16.mxu0 %v1786
        %2267 = vmatmul.mubr.bf16.gmra.mxu0 %v1690
        %v2268 = vpop.f32.mrf.mxu0
        %v2269 = vadd.f32 0.0, %v2268
        %v2270 = vpop.f32.mrf.mxu0
        %v2271 = vpop.f32.mrf.mxu0
        %v2272 = vadd.f32 0.0, %v2271
        %v2273 = vpop.f32.mrf.mxu0
        %2274 = vmatprep.mubr.bf16.mxu0 %v1787
        %2275 = vmatmul.mubr.bf16.gmra.mxu0 %v1691
        %v2276 = vpop.f32.mrf.mxu0
        %v2277 = vadd.f32 0.0, %v2276
        %v2278 = vpop.f32.mrf.mxu0
        %v2279 = vpop.f32.mrf.mxu0
        %v2280 = vadd.f32 0.0, %v2279
        %v2281 = vpop.f32.mrf.mxu0
        %2282 = vmatprep.mubr.bf16.mxu0 %v1788
        %2283 = vmatmul.mubr.bf16.gmra.mxu0 %v1692
        %v2284 = vpop.f32.mrf.mxu0
        %v2285 = vadd.f32 0.0, %v2284
        %v2286 = vpop.f32.mrf.mxu0
        %v2287 = vpop.f32.mrf.mxu0
        %v2288 = vadd.f32 0.0, %v2287
        %v2289 = vpop.f32.mrf.mxu0
        %2290 = vdwg.mxu0
        %2291 = vmatprep.subr.bf16.mxu0 0
        %2292 = vmatpush1.bf16.msra.mxu0 %v2105
        %2293 = vmatprep.subr.bf16.mxu0 0
        %2294 = vmatpush1.bf16.msra.mxu0 %v2104
        %2295 = vmatprep.subr.bf16.mxu0 0
        %2296 = vmatpush1.bf16.msra.mxu0 %v2103
        %2297 = vmatprep.subr.bf16.mxu0 0
        %2298 = vmatpush1.bf16.msra.mxu0 %v2102
        %2299 = vmatprep.subr.bf16.mxu0 0
        %2300 = vmatpush1.bf16.msra.mxu0 %v2101
        %2301 = vmatprep.subr.bf16.mxu0 0
        %2302 = vmatpush1.bf16.msra.mxu0 %v2100
        %2303 = vmatprep.subr.bf16.mxu0 0
        %2304 = vmatpush1.bf16.msra.mxu0 %v2099
        %2305 = vmatprep.subr.bf16.mxu0 0
        %2306 = vmatpush1.bf16.msra.mxu0 %v2098
        %2307 = vmatprep.subr.bf16.mxu0 0
        %2308 = vmatpush2.bf16.msra.mxu0 0
        %2309 = vmatprep.subr.bf16.mxu0 0
        %2310 = vmatpush2.bf16.msra.mxu0 0
        %2311 = vmatprep.subr.bf16.mxu0 0
        %2312 = vmatpush2.bf16.msra.mxu0 0
        %2313 = vmatprep.subr.bf16.mxu0 0
        %2314 = vmatpush2.bf16.msra.mxu0 0
        %2315 = vmatprep.subr.bf16.mxu0 0
        %2316 = vmatpush2.bf16.msra.mxu0 0
        %2317 = vmatprep.subr.bf16.mxu0 0
        %2318 = vmatpush2.bf16.msra.mxu0 0
        %2319 = vmatprep.subr.bf16.mxu0 0
        %2320 = vmatpush2.bf16.msra.mxu0 0
        %2321 = vmatprep.subr.bf16.mxu0 0
        %2322 = vmatpush2.bf16.msra.mxu0 0
        %2323 = vmatprep.mubr.bf16.mxu0 0
        %2324 = vmatmul.mubr.bf16.gmra.mxu0 %v1891
        %v2325 = vpop.f32.mrf.mxu0
        %v2326 = vadd.f32 %v2165, %v2325
        %v2327 = vpop.f32.mrf.mxu0
        %v2328 = vpop.f32.mrf.mxu0
        %v2329 = vadd.f32 %v2168, %v2328
        %v2330 = vpop.f32.mrf.mxu0
        %2331 = vmatprep.mubr.bf16.mxu0 0
        %2332 = vmatmul.mubr.bf16.gmra.mxu0 %v1893
        %v2333 = vpop.f32.mrf.mxu0
        %v2334 = vadd.f32 %v2173, %v2333
        %v2335 = vpop.f32.mrf.mxu0
        %v2336 = vpop.f32.mrf.mxu0
        %v2337 = vadd.f32 %v2176, %v2336
        %v2338 = vpop.f32.mrf.mxu0
        %2339 = vmatprep.mubr.bf16.mxu0 0
        %2340 = vmatmul.mubr.bf16.gmra.mxu0 %v1895
        %v2341 = vpop.f32.mrf.mxu0
        %v2342 = vadd.f32 %v2181, %v2341
        %v2343 = vpop.f32.mrf.mxu0
        %v2344 = vpop.f32.mrf.mxu0
        %v2345 = vadd.f32 %v2184, %v2344
        %v2346 = vpop.f32.mrf.mxu0
        %2347 = vmatprep.mubr.bf16.mxu0 0
        %2348 = vmatmul.mubr.bf16.gmra.mxu0 %v1897
        %v2349 = vpop.f32.mrf.mxu0
        %v2350 = vadd.f32 %v2189, %v2349
        %v2351 = vpop.f32.mrf.mxu0
        %v2352 = vpop.f32.mrf.mxu0
        %v2353 = vadd.f32 %v2192, %v2352
        %v2354 = vpop.f32.mrf.mxu0
        %2355 = vmatprep.mubr.bf16.mxu0 0
        %2356 = vmatmul.mubr.bf16.gmra.mxu0 %v1899
        %v2357 = vpop.f32.mrf.mxu0
        %v2358 = vadd.f32 %v2197, %v2357
        %v2359 = vpop.f32.mrf.mxu0
        %v2360 = vpop.f32.mrf.mxu0
        %v2361 = vadd.f32 %v2200, %v2360
        %v2362 = vpop.f32.mrf.mxu0
        %2363 = vmatprep.mubr.bf16.mxu0 0
        %2364 = vmatmul.mubr.bf16.gmra.mxu0 %v1901
        %v2365 = vpop.f32.mrf.mxu0
        %v2366 = vadd.f32 %v2205, %v2365
        %v2367 = vpop.f32.mrf.mxu0
        %v2368 = vpop.f32.mrf.mxu0
        %v2369 = vadd.f32 %v2208, %v2368
        %v2370 = vpop.f32.mrf.mxu0
        %2371 = vmatprep.mubr.bf16.mxu0 0
        %2372 = vmatmul.mubr.bf16.gmra.mxu0 %v1903
        %v2373 = vpop.f32.mrf.mxu0
        %v2374 = vadd.f32 %v2213, %v2373
        %v2375 = vpop.f32.mrf.mxu0
        %v2376 = vpop.f32.mrf.mxu0
        %v2377 = vadd.f32 %v2216, %v2376
        %v2378 = vpop.f32.mrf.mxu0
        %2379 = vmatprep.mubr.bf16.mxu0 0
        %2380 = vmatmul.mubr.bf16.gmra.mxu0 %v1905
        %v2381 = vpop.f32.mrf.mxu0
        %v2382 = vadd.f32 %v2221, %v2381
        %v2383 = vpop.f32.mrf.mxu0
        %v2384 = vpop.f32.mrf.mxu0
        %v2385 = vadd.f32 %v2224, %v2384
        %v2386 = vpop.f32.mrf.mxu0
        %2387 = vmatprep.mubr.bf16.mxu0 0
        %2388 = vmatmul.mubr.bf16.gmra.mxu0 %v1907
        %v2389 = vpop.f32.mrf.mxu0
        %v2390 = vadd.f32 %v2229, %v2389
        %v2391 = vpop.f32.mrf.mxu0
        %v2392 = vpop.f32.mrf.mxu0
        %v2393 = vadd.f32 %v2232, %v2392
        %v2394 = vpop.f32.mrf.mxu0
        %2395 = vmatprep.mubr.bf16.mxu0 0
        %2396 = vmatmul.mubr.bf16.gmra.mxu0 %v1909
        %v2397 = vpop.f32.mrf.mxu0
        %v2398 = vadd.f32 %v2237, %v2397
        %v2399 = vpop.f32.mrf.mxu0
        %v2400 = vpop.f32.mrf.mxu0
        %v2401 = vadd.f32 %v2240, %v2400
        %v2402 = vpop.f32.mrf.mxu0
        %2403 = vmatprep.mubr.bf16.mxu0 0
        %2404 = vmatmul.mubr.bf16.gmra.mxu0 %v1911
        %v2405 = vpop.f32.mrf.mxu0
        %v2406 = vadd.f32 %v2245, %v2405
        %v2407 = vpop.f32.mrf.mxu0
        %v2408 = vpop.f32.mrf.mxu0
        %v2409 = vadd.f32 %v2248, %v2408
        %v2410 = vpop.f32.mrf.mxu0
        %2411 = vmatprep.mubr.bf16.mxu0 0
        %2412 = vmatmul.mubr.bf16.gmra.mxu0 %v1913
        %v2413 = vpop.f32.mrf.mxu0
        %v2414 = vadd.f32 %v2253, %v2413
        %v2415 = vpop.f32.mrf.mxu0
        %v2416 = vpop.f32.mrf.mxu0
        %v2417 = vadd.f32 %v2256, %v2416
        %v2418 = vpop.f32.mrf.mxu0
        %2419 = vmatprep.mubr.bf16.mxu0 0
        %2420 = vmatmul.mubr.bf16.gmra.mxu0 %v1915
        %v2421 = vpop.f32.mrf.mxu0
        %v2422 = vadd.f32 %v2261, %v2421
        %v2423 = vpop.f32.mrf.mxu0
        %v2424 = vpop.f32.mrf.mxu0
        %v2425 = vadd.f32 %v2264, %v2424
        %v2426 = vpop.f32.mrf.mxu0
        %2427 = vmatprep.mubr.bf16.mxu0 0
        %2428 = vmatmul.mubr.bf16.gmra.mxu0 %v1917
        %v2429 = vpop.f32.mrf.mxu0
        %v2430 = vadd.f32 %v2269, %v2429
        %v2431 = vpop.f32.mrf.mxu0
        %v2432 = vpop.f32.mrf.mxu0
        %v2433 = vadd.f32 %v2272, %v2432
        %v2434 = vpop.f32.mrf.mxu0
        %2435 = vmatprep.mubr.bf16.mxu0 0
        %2436 = vmatmul.mubr.bf16.gmra.mxu0 %v1919
        %v2437 = vpop.f32.mrf.mxu0
        %v2438 = vadd.f32 %v2277, %v2437
        %v2439 = vpop.f32.mrf.mxu0
        %v2440 = vpop.f32.mrf.mxu0
        %v2441 = vadd.f32 %v2280, %v2440
        %v2442 = vpop.f32.mrf.mxu0
        %2443 = vmatprep.mubr.bf16.mxu0 0
        %2444 = vmatmul.mubr.bf16.gmra.mxu0 %v1921
        %v2445 = vpop.f32.mrf.mxu0
        %v2446 = vadd.f32 %v2285, %v2445
        %v2447 = vpop.f32.mrf.mxu0
        %v2448 = vpop.f32.mrf.mxu0
        %v2449 = vadd.f32 %v2288, %v2448
        %v2450 = vpop.f32.mrf.mxu0
        %2451 = vdwg.mxu0
        %v2452 = vld [vmem:[%s2] sm:$0x1]
        %v2453 = vlaneseq
        %v2454 = vshrl.u32 %v2453, 7
        %v2455 = vsub.s32 0, %v2454
        %v2456 = vrot.slane %v2452, %v2455
        %v2457 = vmul.f32 %v2326, %v2456
        %v2458 = vmul.f32 %v2329, %v2456
        %v2459 = vmul.f32 %v2334, %v2456
        %v2460 = vmul.f32 %v2337, %v2456
        %v2461 = vmul.f32 %v2342, %v2456
        %v2462 = vmul.f32 %v2345, %v2456
        %v2463 = vmul.f32 %v2350, %v2456
        %v2464 = vmul.f32 %v2353, %v2456
        %v2465 = vmul.f32 %v2358, %v2456
        %v2466 = vmul.f32 %v2361, %v2456
        %v2467 = vmul.f32 %v2366, %v2456
        %v2468 = vmul.f32 %v2369, %v2456
        %v2469 = vmul.f32 %v2374, %v2456
        %v2470 = vmul.f32 %v2377, %v2456
        %v2471 = vmul.f32 %v2382, %v2456
        %v2472 = vmul.f32 %v2385, %v2456
        %v2473 = vmul.f32 %v2390, %v2456
        %v2474 = vmul.f32 %v2393, %v2456
        %v2475 = vmul.f32 %v2398, %v2456
        %v2476 = vmul.f32 %v2401, %v2456
        %v2477 = vmul.f32 %v2406, %v2456
        %v2478 = vmul.f32 %v2409, %v2456
        %v2479 = vmul.f32 %v2414, %v2456
        %v2480 = vmul.f32 %v2417, %v2456
        %v2481 = vmul.f32 %v2422, %v2456
        %v2482 = vmul.f32 %v2425, %v2456
        %v2483 = vmul.f32 %v2430, %v2456
        %v2484 = vmul.f32 %v2433, %v2456
        %v2485 = vmul.f32 %v2438, %v2456
        %v2486 = vmul.f32 %v2441, %v2456
        %v2487 = vmul.f32 %v2446, %v2456
        %v2488 = vmul.f32 %v2449, %v2456
        %v2489 = vld [vmem:[%s2 + $0x1] sm:$0x1]
        %v2490 = vlaneseq
        %v2491 = vshrl.u32 %v2490, 7
        %v2492 = vsub.s32 0, %v2491
        %v2493 = vrot.slane %v2489, %v2492
        %v2494 = vadd.f32 %v2457, %v2493
        %v2495 = vadd.f32 %v2458, %v2493
        %v2496 = vadd.f32 %v2459, %v2493
        %v2497 = vadd.f32 %v2460, %v2493
        %v2498 = vadd.f32 %v2461, %v2493
        %v2499 = vadd.f32 %v2462, %v2493
        %v2500 = vadd.f32 %v2463, %v2493
        %v2501 = vadd.f32 %v2464, %v2493
        %v2502 = vadd.f32 %v2465, %v2493
        %v2503 = vadd.f32 %v2466, %v2493
        %v2504 = vadd.f32 %v2467, %v2493
        %v2505 = vadd.f32 %v2468, %v2493
        %v2506 = vadd.f32 %v2469, %v2493
        %v2507 = vadd.f32 %v2470, %v2493
        %v2508 = vadd.f32 %v2471, %v2493
        %v2509 = vadd.f32 %v2472, %v2493
        %v2510 = vadd.f32 %v2473, %v2493
        %v2511 = vadd.f32 %v2474, %v2493
        %v2512 = vadd.f32 %v2475, %v2493
        %v2513 = vadd.f32 %v2476, %v2493
        %v2514 = vadd.f32 %v2477, %v2493
        %v2515 = vadd.f32 %v2478, %v2493
        %v2516 = vadd.f32 %v2479, %v2493
        %v2517 = vadd.f32 %v2480, %v2493
        %v2518 = vadd.f32 %v2481, %v2493
        %v2519 = vadd.f32 %v2482, %v2493
        %v2520 = vadd.f32 %v2483, %v2493
        %v2521 = vadd.f32 %v2484, %v2493
        %v2522 = vadd.f32 %v2485, %v2493
        %v2523 = vadd.f32 %v2486, %v2493
        %v2524 = vadd.f32 %v2487, %v2493
        %v2525 = vadd.f32 %v2488, %v2493
        %v2526 = vxor.u32 %v2494, 2147483648
        %v2527 = vxor.u32 %v2495, 2147483648
        %v2528 = vxor.u32 %v2496, 2147483648
        %v2529 = vxor.u32 %v2497, 2147483648
        %v2530 = vxor.u32 %v2498, 2147483648
        %v2531 = vxor.u32 %v2499, 2147483648
        %v2532 = vxor.u32 %v2500, 2147483648
        %v2533 = vxor.u32 %v2501, 2147483648
        %v2534 = vxor.u32 %v2502, 2147483648
        %v2535 = vxor.u32 %v2503, 2147483648
        %v2536 = vxor.u32 %v2504, 2147483648
        %v2537 = vxor.u32 %v2505, 2147483648
        %v2538 = vxor.u32 %v2506, 2147483648
        %v2539 = vxor.u32 %v2507, 2147483648
        %v2540 = vxor.u32 %v2508, 2147483648
        %v2541 = vxor.u32 %v2509, 2147483648
        %v2542 = vxor.u32 %v2510, 2147483648
        %v2543 = vxor.u32 %v2511, 2147483648
        %v2544 = vxor.u32 %v2512, 2147483648
        %v2545 = vxor.u32 %v2513, 2147483648
        %v2546 = vxor.u32 %v2514, 2147483648
        %v2547 = vxor.u32 %v2515, 2147483648
        %v2548 = vxor.u32 %v2516, 2147483648
        %v2549 = vxor.u32 %v2517, 2147483648
        %v2550 = vxor.u32 %v2518, 2147483648
        %v2551 = vxor.u32 %v2519, 2147483648
        %v2552 = vxor.u32 %v2520, 2147483648
        %v2553 = vxor.u32 %v2521, 2147483648
        %v2554 = vxor.u32 %v2522, 2147483648
        %v2555 = vxor.u32 %v2523, 2147483648
        %v2556 = vxor.u32 %v2524, 2147483648
        %v2557 = vxor.u32 %v2525, 2147483648
        %v2558 = vmul.f32 %v2526, 1.442695
        %v2559 = vpow.pop %v2558
        %v2560 = vmul.f32 %v2527, 1.442695
        %v2561 = vpow.pop %v2560
        %v2562 = vmul.f32 %v2528, 1.442695
        %v2563 = vpow.pop %v2562
        %v2564 = vmul.f32 %v2529, 1.442695
        %v2565 = vpow.pop %v2564
        %v2566 = vmul.f32 %v2530, 1.442695
        %v2567 = vpow.pop %v2566
        %v2568 = vmul.f32 %v2531, 1.442695
        %v2569 = vpow.pop %v2568
        %v2570 = vmul.f32 %v2532, 1.442695
        %v2571 = vpow.pop %v2570
        %v2572 = vmul.f32 %v2533, 1.442695
        %v2573 = vpow.pop %v2572
        %v2574 = vmul.f32 %v2534, 1.442695
        %v2575 = vpow.pop %v2574
        %v2576 = vmul.f32 %v2535, 1.442695
        %v2577 = vpow.pop %v2576
        %v2578 = vmul.f32 %v2536, 1.442695
        %v2579 = vpow.pop %v2578
        %v2580 = vmul.f32 %v2537, 1.442695
        %v2581 = vpow.pop %v2580
        %v2582 = vmul.f32 %v2538, 1.442695
        %v2583 = vpow.pop %v2582
        %v2584 = vmul.f32 %v2539, 1.442695
        %v2585 = vpow.pop %v2584
        %v2586 = vmul.f32 %v2540, 1.442695
        %v2587 = vpow.pop %v2586
        %v2588 = vmul.f32 %v2541, 1.442695
        %v2589 = vpow.pop %v2588
        %v2590 = vmul.f32 %v2542, 1.442695
        %v2591 = vpow.pop %v2590
        %v2592 = vmul.f32 %v2543, 1.442695
        %v2593 = vpow.pop %v2592
        %v2594 = vmul.f32 %v2544, 1.442695
        %v2595 = vpow.pop %v2594
        %v2596 = vmul.f32 %v2545, 1.442695
        %v2597 = vpow.pop %v2596
        %v2598 = vmul.f32 %v2546, 1.442695
        %v2599 = vpow.pop %v2598
        %v2600 = vmul.f32 %v2547, 1.442695
        %v2601 = vpow.pop %v2600
        %v2602 = vmul.f32 %v2548, 1.442695
        %v2603 = vpow.pop %v2602
        %v2604 = vmul.f32 %v2549, 1.442695
        %v2605 = vpow.pop %v2604
        %v2606 = vmul.f32 %v2550, 1.442695
        %v2607 = vpow.pop %v2606
        %v2608 = vmul.f32 %v2551, 1.442695
        %v2609 = vpow.pop %v2608
        %v2610 = vmul.f32 %v2552, 1.442695
        %v2611 = vpow.pop %v2610
        %v2612 = vmul.f32 %v2553, 1.442695
        %v2613 = vpow.pop %v2612
        %v2614 = vmul.f32 %v2554, 1.442695
        %v2615 = vpow.pop %v2614
        %v2616 = vmul.f32 %v2555, 1.442695
        %v2617 = vpow.pop %v2616
        %v2618 = vmul.f32 %v2556, 1.442695
        %v2619 = vpow.pop %v2618
        %v2620 = vmul.f32 %v2557, 1.442695
        %v2621 = vpow.pop %v2620
        %v2622 = vadd.f32 %v2559, 1.0
        %v2623 = vadd.f32 %v2561, 1.0
        %v2624 = vadd.f32 %v2563, 1.0
        %v2625 = vadd.f32 %v2565, 1.0
        %v2626 = vadd.f32 %v2567, 1.0
        %v2627 = vadd.f32 %v2569, 1.0
        %v2628 = vadd.f32 %v2571, 1.0
        %v2629 = vadd.f32 %v2573, 1.0
        %v2630 = vadd.f32 %v2575, 1.0
        %v2631 = vadd.f32 %v2577, 1.0
        %v2632 = vadd.f32 %v2579, 1.0
        %v2633 = vadd.f32 %v2581, 1.0
        %v2634 = vadd.f32 %v2583, 1.0
        %v2635 = vadd.f32 %v2585, 1.0
        %v2636 = vadd.f32 %v2587, 1.0
        %v2637 = vadd.f32 %v2589, 1.0
        %v2638 = vadd.f32 %v2591, 1.0
        %v2639 = vadd.f32 %v2593, 1.0
        %v2640 = vadd.f32 %v2595, 1.0
        %v2641 = vadd.f32 %v2597, 1.0
        %v2642 = vadd.f32 %v2599, 1.0
        %v2643 = vadd.f32 %v2601, 1.0
        %v2644 = vadd.f32 %v2603, 1.0
        %v2645 = vadd.f32 %v2605, 1.0
        %v2646 = vadd.f32 %v2607, 1.0
        %v2647 = vadd.f32 %v2609, 1.0
        %v2648 = vadd.f32 %v2611, 1.0
        %v2649 = vadd.f32 %v2613, 1.0
        %v2650 = vadd.f32 %v2615, 1.0
        %v2651 = vadd.f32 %v2617, 1.0
        %v2652 = vadd.f32 %v2619, 1.0
        %v2653 = vadd.f32 %v2621, 1.0
        %v2654 = vrcp.pop %v2622
        %v2655 = vmul.f32 1.0, %v2654
        %v2656 = vrcp.pop %v2623
        %v2657 = vmul.f32 1.0, %v2656
        %v2658 = vrcp.pop %v2624
        %v2659 = vmul.f32 1.0, %v2658
        %v2660 = vrcp.pop %v2625
        %v2661 = vmul.f32 1.0, %v2660
        %v2662 = vrcp.pop %v2626
        %v2663 = vmul.f32 1.0, %v2662
        %v2664 = vrcp.pop %v2627
        %v2665 = vmul.f32 1.0, %v2664
        %v2666 = vrcp.pop %v2628
        %v2667 = vmul.f32 1.0, %v2666
        %v2668 = vrcp.pop %v2629
        %v2669 = vmul.f32 1.0, %v2668
        %v2670 = vrcp.pop %v2630
        %v2671 = vmul.f32 1.0, %v2670
        %v2672 = vrcp.pop %v2631
        %v2673 = vmul.f32 1.0, %v2672
        %v2674 = vrcp.pop %v2632
        %v2675 = vmul.f32 1.0, %v2674
        %v2676 = vrcp.pop %v2633
        %v2677 = vmul.f32 1.0, %v2676
        %v2678 = vrcp.pop %v2634
        %v2679 = vmul.f32 1.0, %v2678
        %v2680 = vrcp.pop %v2635
        %v2681 = vmul.f32 1.0, %v2680
        %v2682 = vrcp.pop %v2636
        %v2683 = vmul.f32 1.0, %v2682
        %v2684 = vrcp.pop %v2637
        %v2685 = vmul.f32 1.0, %v2684
        %v2686 = vrcp.pop %v2638
        %v2687 = vmul.f32 1.0, %v2686
        %v2688 = vrcp.pop %v2639
        %v2689 = vmul.f32 1.0, %v2688
        %v2690 = vrcp.pop %v2640
        %v2691 = vmul.f32 1.0, %v2690
        %v2692 = vrcp.pop %v2641
        %v2693 = vmul.f32 1.0, %v2692
        %v2694 = vrcp.pop %v2642
        %v2695 = vmul.f32 1.0, %v2694
        %v2696 = vrcp.pop %v2643
        %v2697 = vmul.f32 1.0, %v2696
        %v2698 = vrcp.pop %v2644
        %v2699 = vmul.f32 1.0, %v2698
        %v2700 = vrcp.pop %v2645
        %v2701 = vmul.f32 1.0, %v2700
        %v2702 = vrcp.pop %v2646
        %v2703 = vmul.f32 1.0, %v2702
        %v2704 = vrcp.pop %v2647
        %v2705 = vmul.f32 1.0, %v2704
        %v2706 = vrcp.pop %v2648
        %v2707 = vmul.f32 1.0, %v2706
        %v2708 = vrcp.pop %v2649
        %v2709 = vmul.f32 1.0, %v2708
        %v2710 = vrcp.pop %v2650
        %v2711 = vmul.f32 1.0, %v2710
        %v2712 = vrcp.pop %v2651
        %v2713 = vmul.f32 1.0, %v2712
        %v2714 = vrcp.pop %v2652
        %v2715 = vmul.f32 1.0, %v2714
        %v2716 = vrcp.pop %v2653
        %v2717 = vmul.f32 1.0, %v2716
        %v2718 = vmul.f32 %v2494, %v2655
        %v2719 = vmul.f32 %v2495, %v2657
        %v2720 = vmul.f32 %v2496, %v2659
        %v2721 = vmul.f32 %v2497, %v2661
        %v2722 = vmul.f32 %v2498, %v2663
        %v2723 = vmul.f32 %v2499, %v2665
        %v2724 = vmul.f32 %v2500, %v2667
        %v2725 = vmul.f32 %v2501, %v2669
        %v2726 = vmul.f32 %v2502, %v2671
        %v2727 = vmul.f32 %v2503, %v2673
        %v2728 = vmul.f32 %v2504, %v2675
        %v2729 = vmul.f32 %v2505, %v2677
        %v2730 = vmul.f32 %v2506, %v2679
        %v2731 = vmul.f32 %v2507, %v2681
        %v2732 = vmul.f32 %v2508, %v2683
        %v2733 = vmul.f32 %v2509, %v2685
        %v2734 = vmul.f32 %v2510, %v2687
        %v2735 = vmul.f32 %v2511, %v2689
        %v2736 = vmul.f32 %v2512, %v2691
        %v2737 = vmul.f32 %v2513, %v2693
        %v2738 = vmul.f32 %v2514, %v2695
        %v2739 = vmul.f32 %v2515, %v2697
        %v2740 = vmul.f32 %v2516, %v2699
        %v2741 = vmul.f32 %v2517, %v2701
        %v2742 = vmul.f32 %v2518, %v2703
        %v2743 = vmul.f32 %v2519, %v2705
        %v2744 = vmul.f32 %v2520, %v2707
        %v2745 = vmul.f32 %v2521, %v2709
        %v2746 = vmul.f32 %v2522, %v2711
        %v2747 = vmul.f32 %v2523, %v2713
        %v2748 = vmul.f32 %v2524, %v2715
        %v2749 = vmul.f32 %v2525, %v2717
        %v2750 = vpack.c.bf16 %v2719, %v2718
        %v2751 = vpack.c.bf16 %v2721, %v2720
        %v2752 = vpack.c.bf16 %v2723, %v2722
        %v2753 = vpack.c.bf16 %v2725, %v2724
        %v2754 = vpack.c.bf16 %v2727, %v2726
        %v2755 = vpack.c.bf16 %v2729, %v2728
        %v2756 = vpack.c.bf16 %v2731, %v2730
        %v2757 = vpack.c.bf16 %v2733, %v2732
        %v2758 = vpack.c.bf16 %v2735, %v2734
        %v2759 = vpack.c.bf16 %v2737, %v2736
        %v2760 = vpack.c.bf16 %v2739, %v2738
        %v2761 = vpack.c.bf16 %v2741, %v2740
        %v2762 = vpack.c.bf16 %v2743, %v2742
        %v2763 = vpack.c.bf16 %v2745, %v2744
        %v2764 = vpack.c.bf16 %v2747, %v2746
        %v2765 = vpack.c.bf16 %v2749, %v2748
        %2766 = vst [vmem:[#allocation3] sm:$0xf] 0
        %2767 = vst [vmem:[#allocation3 + $0x4] sm:$0xf] 0
        %2768 = vst [vmem:[#allocation3 + $0x88] sm:$0xf] 0
        %2769 = vst [vmem:[#allocation3 + $0x8c] sm:$0xf] 0
        %v2786 = vunpack.c.l.b16 %v2750
        %v2787 = vunpack.c.h.b16 %v2750
        %v2788 = vunpack.c.l.b16 %v2751
        %v2789 = vunpack.c.h.b16 %v2751
        %v2790 = vunpack.c.l.b16 %v2752
        %v2791 = vunpack.c.h.b16 %v2752
        %v2792 = vunpack.c.l.b16 %v2753
        %v2793 = vunpack.c.h.b16 %v2753
        %v2794 = vunpack.c.l.b16 %v2754
        %v2795 = vunpack.c.h.b16 %v2754
        %v2796 = vunpack.c.l.b16 %v2755
        %v2797 = vunpack.c.h.b16 %v2755
        %v2798 = vunpack.c.l.b16 %v2756
        %v2799 = vunpack.c.h.b16 %v2756
        %v2800 = vunpack.c.l.b16 %v2757
        %v2801 = vunpack.c.h.b16 %v2757
        %v2802 = vunpack.c.l.b16 %v2758
        %v2803 = vunpack.c.h.b16 %v2758
        %v2804 = vunpack.c.l.b16 %v2759
        %v2805 = vunpack.c.h.b16 %v2759
        %v2806 = vunpack.c.l.b16 %v2760
        %v2807 = vunpack.c.h.b16 %v2760
        %v2808 = vunpack.c.l.b16 %v2761
        %v2809 = vunpack.c.h.b16 %v2761
        %v2810 = vunpack.c.l.b16 %v2762
        %v2811 = vunpack.c.h.b16 %v2762
        %v2812 = vunpack.c.l.b16 %v2763
        %v2813 = vunpack.c.h.b16 %v2763
        %v2814 = vunpack.c.l.b16 %v2764
        %v2815 = vunpack.c.h.b16 %v2764
        %v2816 = vunpack.c.l.b16 %v2765
        %v2817 = vunpack.c.h.b16 %v2765
        %v2818 = vpack.c.b16 %v2786, %v2786
        %v2819 = vpack.c.b16 %v2787, %v2787
        %v2820 = vpack.c.b16 %v2788, %v2788
        %v2821 = vpack.c.b16 %v2789, %v2789
        %v2822 = vpack.c.b16 %v2790, %v2790
        %v2823 = vpack.c.b16 %v2791, %v2791
        %v2824 = vpack.c.b16 %v2792, %v2792
        %v2825 = vpack.c.b16 %v2793, %v2793
        %v2826 = vpack.c.b16 %v2794, %v2794
        %v2827 = vpack.c.b16 %v2795, %v2795
        %v2828 = vpack.c.b16 %v2796, %v2796
        %v2829 = vpack.c.b16 %v2797, %v2797
        %v2830 = vpack.c.b16 %v2798, %v2798
        %v2831 = vpack.c.b16 %v2799, %v2799
        %v2832 = vpack.c.b16 %v2800, %v2800
        %v2833 = vpack.c.b16 %v2801, %v2801
        %v2834 = vpack.c.b16 %v2802, %v2802
        %v2835 = vpack.c.b16 %v2803, %v2803
        %v2836 = vpack.c.b16 %v2804, %v2804
        %v2837 = vpack.c.b16 %v2805, %v2805
        %v2838 = vpack.c.b16 %v2806, %v2806
        %v2839 = vpack.c.b16 %v2807, %v2807
        %v2840 = vpack.c.b16 %v2808, %v2808
        %v2841 = vpack.c.b16 %v2809, %v2809
        %v2842 = vpack.c.b16 %v2810, %v2810
        %v2843 = vpack.c.b16 %v2811, %v2811
        %v2844 = vpack.c.b16 %v2812, %v2812
        %v2845 = vpack.c.b16 %v2813, %v2813
        %v2846 = vpack.c.b16 %v2814, %v2814
        %v2847 = vpack.c.b16 %v2815, %v2815
        %v2848 = vpack.c.b16 %v2816, %v2816
        %v2849 = vpack.c.b16 %v2817, %v2817
        %2882 = vst [vmem:[#allocation3 + $0x8] sm:$0xf] %v2818
        %2883 = vst [vmem:[#allocation3 + $0xc] sm:$0xf] %v2819
        %2884 = vst [vmem:[#allocation3 + $0x10] sm:$0xf] %v2820
        %2885 = vst [vmem:[#allocation3 + $0x14] sm:$0xf] %v2821
        %2886 = vst [vmem:[#allocation3 + $0x18] sm:$0xf] %v2822
        %2887 = vst [vmem:[#allocation3 + $0x1c] sm:$0xf] %v2823
        %2888 = vst [vmem:[#allocation3 + $0x20] sm:$0xf] %v2824
        %2889 = vst [vmem:[#allocation3 + $0x24] sm:$0xf] %v2825
        %2890 = vst [vmem:[#allocation3 + $0x28] sm:$0xf] %v2826
        %2891 = vst [vmem:[#allocation3 + $0x2c] sm:$0xf] %v2827
        %2892 = vst [vmem:[#allocation3 + $0x30] sm:$0xf] %v2828
        %2893 = vst [vmem:[#allocation3 + $0x34] sm:$0xf] %v2829
        %2894 = vst [vmem:[#allocation3 + $0x38] sm:$0xf] %v2830
        %2895 = vst [vmem:[#allocation3 + $0x3c] sm:$0xf] %v2831
        %2896 = vst [vmem:[#allocation3 + $0x40] sm:$0xf] %v2832
        %2897 = vst [vmem:[#allocation3 + $0x44] sm:$0xf] %v2833
        %2898 = vst [vmem:[#allocation3 + $0x48] sm:$0xf] %v2834
        %2899 = vst [vmem:[#allocation3 + $0x4c] sm:$0xf] %v2835
        %2900 = vst [vmem:[#allocation3 + $0x50] sm:$0xf] %v2836
        %2901 = vst [vmem:[#allocation3 + $0x54] sm:$0xf] %v2837
        %2902 = vst [vmem:[#allocation3 + $0x58] sm:$0xf] %v2838
        %2903 = vst [vmem:[#allocation3 + $0x5c] sm:$0xf] %v2839
        %2904 = vst [vmem:[#allocation3 + $0x60] sm:$0xf] %v2840
        %2905 = vst [vmem:[#allocation3 + $0x64] sm:$0xf] %v2841
        %2906 = vst [vmem:[#allocation3 + $0x68] sm:$0xf] %v2842
        %2907 = vst [vmem:[#allocation3 + $0x6c] sm:$0xf] %v2843
        %2908 = vst [vmem:[#allocation3 + $0x70] sm:$0xf] %v2844
        %2909 = vst [vmem:[#allocation3 + $0x74] sm:$0xf] %v2845
        %2910 = vst [vmem:[#allocation3 + $0x78] sm:$0xf] %v2846
        %2911 = vst [vmem:[#allocation3 + $0x7c] sm:$0xf] %v2847
        %2912 = vst [vmem:[#allocation3 + $0x80] sm:$0xf] %v2848
        %2913 = vst [vmem:[#allocation3 + $0x84] sm:$0xf] %v2849
        %v2914 = vld [vmem:[#allocation3] sm:$0xf]
        %v2915 = vld [vmem:[#allocation3 + $0x4] sm:$0xf]
        %v2916 = vld [vmem:[#allocation3 + $0x8] sm:$0xf]
        %v2917 = vld [vmem:[#allocation3 + $0xc] sm:$0xf]
        %v2918 = vld [vmem:[#allocation3 + $0x10] sm:$0xf]
        %v2919 = vld [vmem:[#allocation3 + $0x14] sm:$0xf]
        %v2920 = vld [vmem:[#allocation3 + $0x18] sm:$0xf]
        %v2921 = vld [vmem:[#allocation3 + $0x1c] sm:$0xf]
        %v2922 = vld [vmem:[#allocation3 + $0x20] sm:$0xf]
        %v2923 = vld [vmem:[#allocation3 + $0x24] sm:$0xf]
        %v2924 = vld [vmem:[#allocation3 + $0x28] sm:$0xf]
        %v2925 = vld [vmem:[#allocation3 + $0x2c] sm:$0xf]
        %v2926 = vld [vmem:[#allocation3 + $0x30] sm:$0xf]
        %v2927 = vld [vmem:[#allocation3 + $0x34] sm:$0xf]
        %v2928 = vld [vmem:[#allocation3 + $0x38] sm:$0xf]
        %v2929 = vld [vmem:[#allocation3 + $0x3c] sm:$0xf]
        %v2930 = vld [vmem:[#allocation3 + $0x40] sm:$0xf]
        %v2931 = vld [vmem:[#allocation3 + $0x44] sm:$0xf]
        %v2932 = vld [vmem:[#allocation3 + $0x48] sm:$0xf]
        %v2933 = vld [vmem:[#allocation3 + $0x4c] sm:$0xf]
        %v2934 = vld [vmem:[#allocation3 + $0x50] sm:$0xf]
        %v2935 = vld [vmem:[#allocation3 + $0x54] sm:$0xf]
        %v2936 = vld [vmem:[#allocation3 + $0x58] sm:$0xf]
        %v2937 = vld [vmem:[#allocation3 + $0x5c] sm:$0xf]
        %v2938 = vld [vmem:[#allocation3 + $0x60] sm:$0xf]
        %v2939 = vld [vmem:[#allocation3 + $0x64] sm:$0xf]
        %v2940 = vld [vmem:[#allocation3 + $0x68] sm:$0xf]
        %v2941 = vld [vmem:[#allocation3 + $0x6c] sm:$0xf]
        %v2942 = vld [vmem:[#allocation3 + $0x70] sm:$0xf]
        %v2943 = vld [vmem:[#allocation3 + $0x74] sm:$0xf]
        %v2944 = vld [vmem:[#allocation3 + $0x78] sm:$0xf]
        %v2945 = vld [vmem:[#allocation3 + $0x7c] sm:$0xf]
        %v2946 = vld [vmem:[#allocation3 + $0x10] sm:$0xf]
        %v2947 = vld [vmem:[#allocation3 + $0x14] sm:$0xf]
        %v2948 = vld [vmem:[#allocation3 + $0x18] sm:$0xf]
        %v2949 = vld [vmem:[#allocation3 + $0x1c] sm:$0xf]
        %v2950 = vld [vmem:[#allocation3 + $0x20] sm:$0xf]
        %v2951 = vld [vmem:[#allocation3 + $0x24] sm:$0xf]
        %v2952 = vld [vmem:[#allocation3 + $0x28] sm:$0xf]
        %v2953 = vld [vmem:[#allocation3 + $0x2c] sm:$0xf]
        %v2954 = vld [vmem:[#allocation3 + $0x30] sm:$0xf]
        %v2955 = vld [vmem:[#allocation3 + $0x34] sm:$0xf]
        %v2956 = vld [vmem:[#allocation3 + $0x38] sm:$0xf]
        %v2957 = vld [vmem:[#allocation3 + $0x3c] sm:$0xf]
        %v2958 = vld [vmem:[#allocation3 + $0x40] sm:$0xf]
        %v2959 = vld [vmem:[#allocation3 + $0x44] sm:$0xf]
        %v2960 = vld [vmem:[#allocation3 + $0x48] sm:$0xf]
        %v2961 = vld [vmem:[#allocation3 + $0x4c] sm:$0xf]
        %v2962 = vld [vmem:[#allocation3 + $0x50] sm:$0xf]
        %v2963 = vld [vmem:[#allocation3 + $0x54] sm:$0xf]
        %v2964 = vld [vmem:[#allocation3 + $0x58] sm:$0xf]
        %v2965 = vld [vmem:[#allocation3 + $0x5c] sm:$0xf]
        %v2966 = vld [vmem:[#allocation3 + $0x60] sm:$0xf]
        %v2967 = vld [vmem:[#allocation3 + $0x64] sm:$0xf]
        %v2968 = vld [vmem:[#allocation3 + $0x68] sm:$0xf]
        %v2969 = vld [vmem:[#allocation3 + $0x6c] sm:$0xf]
        %v2970 = vld [vmem:[#allocation3 + $0x70] sm:$0xf]
        %v2971 = vld [vmem:[#allocation3 + $0x74] sm:$0xf]
        %v2972 = vld [vmem:[#allocation3 + $0x78] sm:$0xf]
        %v2973 = vld [vmem:[#allocation3 + $0x7c] sm:$0xf]
        %v2974 = vld [vmem:[#allocation3 + $0x80] sm:$0xf]
        %v2975 = vld [vmem:[#allocation3 + $0x84] sm:$0xf]
        %v2976 = vld [vmem:[#allocation3 + $0x88] sm:$0xf]
        %v2977 = vld [vmem:[#allocation3 + $0x8c] sm:$0xf]
        %v3010 = vunpack.c.l.b16 %v2914
        %v3011 = vunpack.c.l.b16 %v2915
        %v3012 = vunpack.c.l.b16 %v2916
        %v3013 = vunpack.c.l.b16 %v2917
        %v3014 = vunpack.c.l.b16 %v2918
        %v3015 = vunpack.c.l.b16 %v2919
        %v3016 = vunpack.c.l.b16 %v2920
        %v3017 = vunpack.c.l.b16 %v2921
        %v3018 = vunpack.c.l.b16 %v2922
        %v3019 = vunpack.c.l.b16 %v2923
        %v3020 = vunpack.c.l.b16 %v2924
        %v3021 = vunpack.c.l.b16 %v2925
        %v3022 = vunpack.c.l.b16 %v2926
        %v3023 = vunpack.c.l.b16 %v2927
        %v3024 = vunpack.c.l.b16 %v2928
        %v3025 = vunpack.c.l.b16 %v2929
        %v3026 = vunpack.c.l.b16 %v2930
        %v3027 = vunpack.c.l.b16 %v2931
        %v3028 = vunpack.c.l.b16 %v2932
        %v3029 = vunpack.c.l.b16 %v2933
        %v3030 = vunpack.c.l.b16 %v2934
        %v3031 = vunpack.c.l.b16 %v2935
        %v3032 = vunpack.c.l.b16 %v2936
        %v3033 = vunpack.c.l.b16 %v2937
        %v3034 = vunpack.c.l.b16 %v2938
        %v3035 = vunpack.c.l.b16 %v2939
        %v3036 = vunpack.c.l.b16 %v2940
        %v3037 = vunpack.c.l.b16 %v2941
        %v3038 = vunpack.c.l.b16 %v2942
        %v3039 = vunpack.c.l.b16 %v2943
        %v3040 = vunpack.c.l.b16 %v2944
        %v3041 = vunpack.c.l.b16 %v2945
        %v3042 = vpack.c.b16 %v3011, %v3010
        %v3043 = vpack.c.b16 %v3013, %v3012
        %v3044 = vpack.c.b16 %v3015, %v3014
        %v3045 = vpack.c.b16 %v3017, %v3016
        %v3046 = vpack.c.b16 %v3019, %v3018
        %v3047 = vpack.c.b16 %v3021, %v3020
        %v3048 = vpack.c.b16 %v3023, %v3022
        %v3049 = vpack.c.b16 %v3025, %v3024
        %v3050 = vpack.c.b16 %v3027, %v3026
        %v3051 = vpack.c.b16 %v3029, %v3028
        %v3052 = vpack.c.b16 %v3031, %v3030
        %v3053 = vpack.c.b16 %v3033, %v3032
        %v3054 = vpack.c.b16 %v3035, %v3034
        %v3055 = vpack.c.b16 %v3037, %v3036
        %v3056 = vpack.c.b16 %v3039, %v3038
        %v3057 = vpack.c.b16 %v3041, %v3040
        %v3106 = vunpack.c.l.b16 %v2946
        %v3107 = vunpack.c.l.b16 %v2947
        %v3108 = vunpack.c.l.b16 %v2948
        %v3109 = vunpack.c.l.b16 %v2949
        %v3110 = vunpack.c.l.b16 %v2950
        %v3111 = vunpack.c.l.b16 %v2951
        %v3112 = vunpack.c.l.b16 %v2952
        %v3113 = vunpack.c.l.b16 %v2953
        %v3114 = vunpack.c.l.b16 %v2954
        %v3115 = vunpack.c.l.b16 %v2955
        %v3116 = vunpack.c.l.b16 %v2956
        %v3117 = vunpack.c.l.b16 %v2957
        %v3118 = vunpack.c.l.b16 %v2958
        %v3119 = vunpack.c.l.b16 %v2959
        %v3120 = vunpack.c.l.b16 %v2960
        %v3121 = vunpack.c.l.b16 %v2961
        %v3122 = vunpack.c.l.b16 %v2962
        %v3123 = vunpack.c.l.b16 %v2963
        %v3124 = vunpack.c.l.b16 %v2964
        %v3125 = vunpack.c.l.b16 %v2965
        %v3126 = vunpack.c.l.b16 %v2966
        %v3127 = vunpack.c.l.b16 %v2967
        %v3128 = vunpack.c.l.b16 %v2968
        %v3129 = vunpack.c.l.b16 %v2969
        %v3130 = vunpack.c.l.b16 %v2970
        %v3131 = vunpack.c.l.b16 %v2971
        %v3132 = vunpack.c.l.b16 %v2972
        %v3133 = vunpack.c.l.b16 %v2973
        %v3134 = vunpack.c.l.b16 %v2974
        %v3135 = vunpack.c.l.b16 %v2975
        %v3136 = vunpack.c.l.b16 %v2976
        %v3137 = vunpack.c.l.b16 %v2977
        %v3138 = vpack.c.b16 %v3107, %v3106
        %v3139 = vpack.c.b16 %v3109, %v3108
        %v3140 = vpack.c.b16 %v3111, %v3110
        %v3141 = vpack.c.b16 %v3113, %v3112
        %v3142 = vpack.c.b16 %v3115, %v3114
        %v3143 = vpack.c.b16 %v3117, %v3116
        %v3144 = vpack.c.b16 %v3119, %v3118
        %v3145 = vpack.c.b16 %v3121, %v3120
        %v3146 = vpack.c.b16 %v3123, %v3122
        %v3147 = vpack.c.b16 %v3125, %v3124
        %v3148 = vpack.c.b16 %v3127, %v3126
        %v3149 = vpack.c.b16 %v3129, %v3128
        %v3150 = vpack.c.b16 %v3131, %v3130
        %v3151 = vpack.c.b16 %v3133, %v3132
        %v3152 = vpack.c.b16 %v3135, %v3134
        %v3153 = vpack.c.b16 %v3137, %v3136
        %v3170 = vld [vmem:[#allocation9] sm:$0xf]
        %v3171 = vld [vmem:[#allocation9 + $0x4] sm:$0xf]
        %v3172 = vld [vmem:[#allocation9 + $0x8] sm:$0xf]
        %v3173 = vld [vmem:[#allocation9 + $0xc] sm:$0xf]
        %v3174 = vld [vmem:[#allocation9 + $0x10] sm:$0xf]
        %v3175 = vld [vmem:[#allocation9 + $0x14] sm:$0xf]
        %v3176 = vld [vmem:[#allocation9 + $0x18] sm:$0xf]
        %v3177 = vld [vmem:[#allocation9 + $0x1c] sm:$0xf]
        %v3178 = vld [vmem:[#allocation9 + $0x20] sm:$0xf]
        %v3179 = vld [vmem:[#allocation9 + $0x24] sm:$0xf]
        %v3180 = vld [vmem:[#allocation9 + $0x28] sm:$0xf]
        %v3181 = vld [vmem:[#allocation9 + $0x2c] sm:$0xf]
        %v3182 = vld [vmem:[#allocation9 + $0x30] sm:$0xf]
        %v3183 = vld [vmem:[#allocation9 + $0x34] sm:$0xf]
        %v3184 = vld [vmem:[#allocation9 + $0x38] sm:$0xf]
        %v3185 = vld [vmem:[#allocation9 + $0x3c] sm:$0xf]
        %v3186 = vld [vmem:[#allocation9 + $0x40] sm:$0xf]
        %v3187 = vld [vmem:[#allocation9 + $0x44] sm:$0xf]
        %v3188 = vld [vmem:[#allocation9 + $0x48] sm:$0xf]
        %v3189 = vld [vmem:[#allocation9 + $0x4c] sm:$0xf]
        %v3190 = vld [vmem:[#allocation9 + $0x50] sm:$0xf]
        %v3191 = vld [vmem:[#allocation9 + $0x54] sm:$0xf]
        %v3192 = vld [vmem:[#allocation9 + $0x58] sm:$0xf]
        %v3193 = vld [vmem:[#allocation9 + $0x5c] sm:$0xf]
        %v3194 = vld [vmem:[#allocation9 + $0x60] sm:$0xf]
        %v3195 = vld [vmem:[#allocation9 + $0x64] sm:$0xf]
        %v3196 = vld [vmem:[#allocation9 + $0x68] sm:$0xf]
        %v3197 = vld [vmem:[#allocation9 + $0x6c] sm:$0xf]
        %v3198 = vld [vmem:[#allocation9 + $0x70] sm:$0xf]
        %v3199 = vld [vmem:[#allocation9 + $0x74] sm:$0xf]
        %v3200 = vld [vmem:[#allocation9 + $0x78] sm:$0xf]
        %v3201 = vld [vmem:[#allocation9 + $0x7c] sm:$0xf]
        %v3202 = vld [vmem:[#allocation9 + $0x80] sm:$0xf]
        %v3203 = vld [vmem:[#allocation9 + $0x84] sm:$0xf]
        %v3204 = vld [vmem:[#allocation9 + $0x88] sm:$0xf]
        %v3205 = vld [vmem:[#allocation9 + $0x8c] sm:$0xf]
        %v3206 = vld [vmem:[#allocation9 + $0x90] sm:$0xf]
        %v3207 = vld [vmem:[#allocation9 + $0x94] sm:$0xf]
        %v3208 = vld [vmem:[#allocation9 + $0x98] sm:$0xf]
        %v3209 = vld [vmem:[#allocation9 + $0x9c] sm:$0xf]
        %v3210 = vld [vmem:[#allocation9 + $0xa0] sm:$0xf]
        %v3211 = vld [vmem:[#allocation9 + $0xa4] sm:$0xf]
        %v3212 = vld [vmem:[#allocation9 + $0xa8] sm:$0xf]
        %v3213 = vld [vmem:[#allocation9 + $0xac] sm:$0xf]
        %v3214 = vld [vmem:[#allocation9 + $0xb0] sm:$0xf]
        %v3215 = vld [vmem:[#allocation9 + $0xb4] sm:$0xf]
        %v3216 = vld [vmem:[#allocation9 + $0xb8] sm:$0xf]
        %v3217 = vld [vmem:[#allocation9 + $0xbc] sm:$0xf]
        %v3266 = vunpack.c.l.b16 %v3170
        %v3267 = vunpack.c.l.b16 %v3171
        %v3268 = vunpack.c.l.b16 %v3172
        %v3269 = vunpack.c.l.b16 %v3173
        %v3270 = vunpack.c.l.b16 %v3174
        %v3271 = vunpack.c.l.b16 %v3175
        %v3272 = vunpack.c.l.b16 %v3176
        %v3273 = vunpack.c.l.b16 %v3177
        %v3274 = vunpack.c.l.b16 %v3178
        %v3275 = vunpack.c.l.b16 %v3179
        %v3276 = vunpack.c.l.b16 %v3180
        %v3277 = vunpack.c.l.b16 %v3181
        %v3278 = vunpack.c.l.b16 %v3182
        %v3279 = vunpack.c.l.b16 %v3183
        %v3280 = vunpack.c.l.b16 %v3184
        %v3281 = vunpack.c.l.b16 %v3185
        %v3282 = vunpack.c.l.b16 %v3186
        %v3283 = vunpack.c.l.b16 %v3187
        %v3284 = vunpack.c.l.b16 %v3188
        %v3285 = vunpack.c.l.b16 %v3189
        %v3286 = vunpack.c.l.b16 %v3190
        %v3287 = vunpack.c.l.b16 %v3191
        %v3288 = vunpack.c.l.b16 %v3192
        %v3289 = vunpack.c.l.b16 %v3193
        %v3290 = vunpack.c.l.b16 %v3194
        %v3291 = vunpack.c.l.b16 %v3195
        %v3292 = vunpack.c.l.b16 %v3196
        %v3293 = vunpack.c.l.b16 %v3197
        %v3294 = vunpack.c.l.b16 %v3198
        %v3295 = vunpack.c.l.b16 %v3199
        %v3296 = vunpack.c.l.b16 %v3200
        %v3297 = vunpack.c.l.b16 %v3201
        %v3298 = vunpack.c.l.b16 %v3202
        %v3299 = vunpack.c.l.b16 %v3203
        %v3300 = vunpack.c.l.b16 %v3204
        %v3301 = vunpack.c.l.b16 %v3205
        %v3302 = vunpack.c.l.b16 %v3206
        %v3303 = vunpack.c.l.b16 %v3207
        %v3304 = vunpack.c.l.b16 %v3208
        %v3305 = vunpack.c.l.b16 %v3209
        %v3306 = vunpack.c.l.b16 %v3210
        %v3307 = vunpack.c.l.b16 %v3211
        %v3308 = vunpack.c.l.b16 %v3212
        %v3309 = vunpack.c.l.b16 %v3213
        %v3310 = vunpack.c.l.b16 %v3214
        %v3311 = vunpack.c.l.b16 %v3215
        %v3312 = vunpack.c.l.b16 %v3216
        %v3313 = vunpack.c.l.b16 %v3217
        %v3314 = vpack.c.b16 %v3267, %v3266
        %v3315 = vpack.c.b16 %v3269, %v3268
        %v3316 = vpack.c.b16 %v3271, %v3270
        %v3317 = vpack.c.b16 %v3273, %v3272
        %v3318 = vpack.c.b16 %v3275, %v3274
        %v3319 = vpack.c.b16 %v3277, %v3276
        %v3320 = vpack.c.b16 %v3279, %v3278
        %v3321 = vpack.c.b16 %v3281, %v3280
        %v3322 = vpack.c.b16 %v3283, %v3282
        %v3323 = vpack.c.b16 %v3285, %v3284
        %v3324 = vpack.c.b16 %v3287, %v3286
        %v3325 = vpack.c.b16 %v3289, %v3288
        %v3326 = vpack.c.b16 %v3291, %v3290
        %v3327 = vpack.c.b16 %v3293, %v3292
        %v3328 = vpack.c.b16 %v3295, %v3294
        %v3329 = vpack.c.b16 %v3297, %v3296
        %v3330 = vpack.c.b16 %v3299, %v3298
        %v3331 = vpack.c.b16 %v3301, %v3300
        %v3332 = vpack.c.b16 %v3303, %v3302
        %v3333 = vpack.c.b16 %v3305, %v3304
        %v3334 = vpack.c.b16 %v3307, %v3306
        %v3335 = vpack.c.b16 %v3309, %v3308
        %v3336 = vpack.c.b16 %v3311, %v3310
        %v3337 = vpack.c.b16 %v3313, %v3312
        %3362 = vmatprep.subr.bf16.mxu0 0
        %3363 = vmatpush1.bf16.msra.mxu0 %v3321
        %3364 = vmatprep.subr.bf16.mxu0 0
        %3365 = vmatpush1.bf16.msra.mxu0 %v3320
        %3366 = vmatprep.subr.bf16.mxu0 0
        %3367 = vmatpush1.bf16.msra.mxu0 %v3319
        %3368 = vmatprep.subr.bf16.mxu0 0
        %3369 = vmatpush1.bf16.msra.mxu0 %v3318
        %3370 = vmatprep.subr.bf16.mxu0 0
        %3371 = vmatpush1.bf16.msra.mxu0 %v3317
        %3372 = vmatprep.subr.bf16.mxu0 0
        %3373 = vmatpush1.bf16.msra.mxu0 %v3316
        %3374 = vmatprep.subr.bf16.mxu0 0
        %3375 = vmatpush1.bf16.msra.mxu0 %v3315
        %3376 = vmatprep.subr.bf16.mxu0 0
        %3377 = vmatpush1.bf16.msra.mxu0 %v3314
        %3378 = vmatprep.subr.bf16.mxu0 0
        %3379 = vmatpush2.bf16.msra.mxu0 %v3329
        %3380 = vmatprep.subr.bf16.mxu0 0
        %3381 = vmatpush2.bf16.msra.mxu0 %v3328
        %3382 = vmatprep.subr.bf16.mxu0 0
        %3383 = vmatpush2.bf16.msra.mxu0 %v3327
        %3384 = vmatprep.subr.bf16.mxu0 0
        %3385 = vmatpush2.bf16.msra.mxu0 %v3326
        %3386 = vmatprep.subr.bf16.mxu0 0
        %3387 = vmatpush2.bf16.msra.mxu0 %v3325
        %3388 = vmatprep.subr.bf16.mxu0 0
        %3389 = vmatpush2.bf16.msra.mxu0 %v3324
        %3390 = vmatprep.subr.bf16.mxu0 0
        %3391 = vmatpush2.bf16.msra.mxu0 %v3323
        %3392 = vmatprep.subr.bf16.mxu0 0
        %3393 = vmatpush2.bf16.msra.mxu0 %v3322
        %3394 = vmatprep.mubr.bf16.mxu0 %v2750
        %3395 = vmatmul.mubr.bf16.gmra.mxu0 %v3042
        %v3396 = vpop.f32.mrf.mxu0
        %v3397 = vadd.f32 0.0, %v3396
        %v3398 = vpop.f32.mrf.mxu0
        %v3399 = vpop.f32.mrf.mxu0
        %v3400 = vadd.f32 0.0, %v3399
        %v3401 = vpop.f32.mrf.mxu0
        %3402 = vmatprep.mubr.bf16.mxu0 %v2751
        %3403 = vmatmul.mubr.bf16.gmra.mxu0 %v3043
        %v3404 = vpop.f32.mrf.mxu0
        %v3405 = vadd.f32 0.0, %v3404
        %v3406 = vpop.f32.mrf.mxu0
        %v3407 = vpop.f32.mrf.mxu0
        %v3408 = vadd.f32 0.0, %v3407
        %v3409 = vpop.f32.mrf.mxu0
        %3410 = vmatprep.mubr.bf16.mxu0 %v2752
        %3411 = vmatmul.mubr.bf16.gmra.mxu0 %v3044
        %v3412 = vpop.f32.mrf.mxu0
        %v3413 = vadd.f32 0.0, %v3412
        %v3414 = vpop.f32.mrf.mxu0
        %v3415 = vpop.f32.mrf.mxu0
        %v3416 = vadd.f32 0.0, %v3415
        %v3417 = vpop.f32.mrf.mxu0
        %3418 = vmatprep.mubr.bf16.mxu0 %v2753
        %3419 = vmatmul.mubr.bf16.gmra.mxu0 %v3045
        %v3420 = vpop.f32.mrf.mxu0
        %v3421 = vadd.f32 0.0, %v3420
        %v3422 = vpop.f32.mrf.mxu0
        %v3423 = vpop.f32.mrf.mxu0
        %v3424 = vadd.f32 0.0, %v3423
        %v3425 = vpop.f32.mrf.mxu0
        %3426 = vmatprep.mubr.bf16.mxu0 %v2754
        %3427 = vmatmul.mubr.bf16.gmra.mxu0 %v3046
        %v3428 = vpop.f32.mrf.mxu0
        %v3429 = vadd.f32 0.0, %v3428
        %v3430 = vpop.f32.mrf.mxu0
        %v3431 = vpop.f32.mrf.mxu0
        %v3432 = vadd.f32 0.0, %v3431
        %v3433 = vpop.f32.mrf.mxu0
        %3434 = vmatprep.mubr.bf16.mxu0 %v2755
        %3435 = vmatmul.mubr.bf16.gmra.mxu0 %v3047
        %v3436 = vpop.f32.mrf.mxu0
        %v3437 = vadd.f32 0.0, %v3436
        %v3438 = vpop.f32.mrf.mxu0
        %v3439 = vpop.f32.mrf.mxu0
        %v3440 = vadd.f32 0.0, %v3439
        %v3441 = vpop.f32.mrf.mxu0
        %3442 = vmatprep.mubr.bf16.mxu0 %v2756
        %3443 = vmatmul.mubr.bf16.gmra.mxu0 %v3048
        %v3444 = vpop.f32.mrf.mxu0
        %v3445 = vadd.f32 0.0, %v3444
        %v3446 = vpop.f32.mrf.mxu0
        %v3447 = vpop.f32.mrf.mxu0
        %v3448 = vadd.f32 0.0, %v3447
        %v3449 = vpop.f32.mrf.mxu0
        %3450 = vmatprep.mubr.bf16.mxu0 %v2757
        %3451 = vmatmul.mubr.bf16.gmra.mxu0 %v3049
        %v3452 = vpop.f32.mrf.mxu0
        %v3453 = vadd.f32 0.0, %v3452
        %v3454 = vpop.f32.mrf.mxu0
        %v3455 = vpop.f32.mrf.mxu0
        %v3456 = vadd.f32 0.0, %v3455
        %v3457 = vpop.f32.mrf.mxu0
        %3458 = vmatprep.mubr.bf16.mxu0 %v2758
        %3459 = vmatmul.mubr.bf16.gmra.mxu0 %v3050
        %v3460 = vpop.f32.mrf.mxu0
        %v3461 = vadd.f32 0.0, %v3460
        %v3462 = vpop.f32.mrf.mxu0
        %v3463 = vpop.f32.mrf.mxu0
        %v3464 = vadd.f32 0.0, %v3463
        %v3465 = vpop.f32.mrf.mxu0
        %3466 = vmatprep.mubr.bf16.mxu0 %v2759
        %3467 = vmatmul.mubr.bf16.gmra.mxu0 %v3051
        %v3468 = vpop.f32.mrf.mxu0
        %v3469 = vadd.f32 0.0, %v3468
        %v3470 = vpop.f32.mrf.mxu0
        %v3471 = vpop.f32.mrf.mxu0
        %v3472 = vadd.f32 0.0, %v3471
        %v3473 = vpop.f32.mrf.mxu0
        %3474 = vmatprep.mubr.bf16.mxu0 %v2760
        %3475 = vmatmul.mubr.bf16.gmra.mxu0 %v3052
        %v3476 = vpop.f32.mrf.mxu0
        %v3477 = vadd.f32 0.0, %v3476
        %v3478 = vpop.f32.mrf.mxu0
        %v3479 = vpop.f32.mrf.mxu0
        %v3480 = vadd.f32 0.0, %v3479
        %v3481 = vpop.f32.mrf.mxu0
        %3482 = vmatprep.mubr.bf16.mxu0 %v2761
        %3483 = vmatmul.mubr.bf16.gmra.mxu0 %v3053
        %v3484 = vpop.f32.mrf.mxu0
        %v3485 = vadd.f32 0.0, %v3484
        %v3486 = vpop.f32.mrf.mxu0
        %v3487 = vpop.f32.mrf.mxu0
        %v3488 = vadd.f32 0.0, %v3487
        %v3489 = vpop.f32.mrf.mxu0
        %3490 = vmatprep.mubr.bf16.mxu0 %v2762
        %3491 = vmatmul.mubr.bf16.gmra.mxu0 %v3054
        %v3492 = vpop.f32.mrf.mxu0
        %v3493 = vadd.f32 0.0, %v3492
        %v3494 = vpop.f32.mrf.mxu0
        %v3495 = vpop.f32.mrf.mxu0
        %v3496 = vadd.f32 0.0, %v3495
        %v3497 = vpop.f32.mrf.mxu0
        %3498 = vmatprep.mubr.bf16.mxu0 %v2763
        %3499 = vmatmul.mubr.bf16.gmra.mxu0 %v3055
        %v3500 = vpop.f32.mrf.mxu0
        %v3501 = vadd.f32 0.0, %v3500
        %v3502 = vpop.f32.mrf.mxu0
        %v3503 = vpop.f32.mrf.mxu0
        %v3504 = vadd.f32 0.0, %v3503
        %v3505 = vpop.f32.mrf.mxu0
        %3506 = vmatprep.mubr.bf16.mxu0 %v2764
        %3507 = vmatmul.mubr.bf16.gmra.mxu0 %v3056
        %v3508 = vpop.f32.mrf.mxu0
        %v3509 = vadd.f32 0.0, %v3508
        %v3510 = vpop.f32.mrf.mxu0
        %v3511 = vpop.f32.mrf.mxu0
        %v3512 = vadd.f32 0.0, %v3511
        %v3513 = vpop.f32.mrf.mxu0
        %3514 = vmatprep.mubr.bf16.mxu0 %v2765
        %3515 = vmatmul.mubr.bf16.gmra.mxu0 %v3057
        %v3516 = vpop.f32.mrf.mxu0
        %v3517 = vadd.f32 0.0, %v3516
        %v3518 = vpop.f32.mrf.mxu0
        %v3519 = vpop.f32.mrf.mxu0
        %v3520 = vadd.f32 0.0, %v3519
        %v3521 = vpop.f32.mrf.mxu0
        %3522 = vdwg.mxu0
        %3523 = vmatprep.subr.bf16.mxu0 0
        %3524 = vmatpush1.bf16.msra.mxu0 %v3337
        %3525 = vmatprep.subr.bf16.mxu0 0
        %3526 = vmatpush1.bf16.msra.mxu0 %v3336
        %3527 = vmatprep.subr.bf16.mxu0 0
        %3528 = vmatpush1.bf16.msra.mxu0 %v3335
        %3529 = vmatprep.subr.bf16.mxu0 0
        %3530 = vmatpush1.bf16.msra.mxu0 %v3334
        %3531 = vmatprep.subr.bf16.mxu0 0
        %3532 = vmatpush1.bf16.msra.mxu0 %v3333
        %3533 = vmatprep.subr.bf16.mxu0 0
        %3534 = vmatpush1.bf16.msra.mxu0 %v3332
        %3535 = vmatprep.subr.bf16.mxu0 0
        %3536 = vmatpush1.bf16.msra.mxu0 %v3331
        %3537 = vmatprep.subr.bf16.mxu0 0
        %3538 = vmatpush1.bf16.msra.mxu0 %v3330
        %3539 = vmatprep.subr.bf16.mxu0 0
        %3540 = vmatpush2.bf16.msra.mxu0 0
        %3541 = vmatprep.subr.bf16.mxu0 0
        %3542 = vmatpush2.bf16.msra.mxu0 0
        %3543 = vmatprep.subr.bf16.mxu0 0
        %3544 = vmatpush2.bf16.msra.mxu0 0
        %3545 = vmatprep.subr.bf16.mxu0 0
        %3546 = vmatpush2.bf16.msra.mxu0 0
        %3547 = vmatprep.subr.bf16.mxu0 0
        %3548 = vmatpush2.bf16.msra.mxu0 0
        %3549 = vmatprep.subr.bf16.mxu0 0
        %3550 = vmatpush2.bf16.msra.mxu0 0
        %3551 = vmatprep.subr.bf16.mxu0 0
        %3552 = vmatpush2.bf16.msra.mxu0 0
        %3553 = vmatprep.subr.bf16.mxu0 0
        %3554 = vmatpush2.bf16.msra.mxu0 0
        %3555 = vmatprep.mubr.bf16.mxu0 0
        %3556 = vmatmul.mubr.bf16.gmra.mxu0 %v3138
        %v3557 = vpop.f32.mrf.mxu0
        %v3558 = vadd.f32 %v3397, %v3557
        %v3559 = vpop.f32.mrf.mxu0
        %v3560 = vpop.f32.mrf.mxu0
        %v3561 = vadd.f32 %v3400, %v3560
        %v3562 = vpop.f32.mrf.mxu0
        %3563 = vmatprep.mubr.bf16.mxu0 0
        %3564 = vmatmul.mubr.bf16.gmra.mxu0 %v3139
        %v3565 = vpop.f32.mrf.mxu0
        %v3566 = vadd.f32 %v3405, %v3565
        %v3567 = vpop.f32.mrf.mxu0
        %v3568 = vpop.f32.mrf.mxu0
        %v3569 = vadd.f32 %v3408, %v3568
        %v3570 = vpop.f32.mrf.mxu0
        %3571 = vmatprep.mubr.bf16.mxu0 0
        %3572 = vmatmul.mubr.bf16.gmra.mxu0 %v3140
        %v3573 = vpop.f32.mrf.mxu0
        %v3574 = vadd.f32 %v3413, %v3573
        %v3575 = vpop.f32.mrf.mxu0
        %v3576 = vpop.f32.mrf.mxu0
        %v3577 = vadd.f32 %v3416, %v3576
        %v3578 = vpop.f32.mrf.mxu0
        %3579 = vmatprep.mubr.bf16.mxu0 0
        %3580 = vmatmul.mubr.bf16.gmra.mxu0 %v3141
        %v3581 = vpop.f32.mrf.mxu0
        %v3582 = vadd.f32 %v3421, %v3581
        %v3583 = vpop.f32.mrf.mxu0
        %v3584 = vpop.f32.mrf.mxu0
        %v3585 = vadd.f32 %v3424, %v3584
        %v3586 = vpop.f32.mrf.mxu0
        %3587 = vmatprep.mubr.bf16.mxu0 0
        %3588 = vmatmul.mubr.bf16.gmra.mxu0 %v3142
        %v3589 = vpop.f32.mrf.mxu0
        %v3590 = vadd.f32 %v3429, %v3589
        %v3591 = vpop.f32.mrf.mxu0
        %v3592 = vpop.f32.mrf.mxu0
        %v3593 = vadd.f32 %v3432, %v3592
        %v3594 = vpop.f32.mrf.mxu0
        %3595 = vmatprep.mubr.bf16.mxu0 0
        %3596 = vmatmul.mubr.bf16.gmra.mxu0 %v3143
        %v3597 = vpop.f32.mrf.mxu0
        %v3598 = vadd.f32 %v3437, %v3597
        %v3599 = vpop.f32.mrf.mxu0
        %v3600 = vpop.f32.mrf.mxu0
        %v3601 = vadd.f32 %v3440, %v3600
        %v3602 = vpop.f32.mrf.mxu0
        %3603 = vmatprep.mubr.bf16.mxu0 0
        %3604 = vmatmul.mubr.bf16.gmra.mxu0 %v3144
        %v3605 = vpop.f32.mrf.mxu0
        %v3606 = vadd.f32 %v3445, %v3605
        %v3607 = vpop.f32.mrf.mxu0
        %v3608 = vpop.f32.mrf.mxu0
        %v3609 = vadd.f32 %v3448, %v3608
        %v3610 = vpop.f32.mrf.mxu0
        %3611 = vmatprep.mubr.bf16.mxu0 0
        %3612 = vmatmul.mubr.bf16.gmra.mxu0 %v3145
        %v3613 = vpop.f32.mrf.mxu0
        %v3614 = vadd.f32 %v3453, %v3613
        %v3615 = vpop.f32.mrf.mxu0
        %v3616 = vpop.f32.mrf.mxu0
        %v3617 = vadd.f32 %v3456, %v3616
        %v3618 = vpop.f32.mrf.mxu0
        %3619 = vmatprep.mubr.bf16.mxu0 0
        %3620 = vmatmul.mubr.bf16.gmra.mxu0 %v3146
        %v3621 = vpop.f32.mrf.mxu0
        %v3622 = vadd.f32 %v3461, %v3621
        %v3623 = vpop.f32.mrf.mxu0
        %v3624 = vpop.f32.mrf.mxu0
        %v3625 = vadd.f32 %v3464, %v3624
        %v3626 = vpop.f32.mrf.mxu0
        %3627 = vmatprep.mubr.bf16.mxu0 0
        %3628 = vmatmul.mubr.bf16.gmra.mxu0 %v3147
        %v3629 = vpop.f32.mrf.mxu0
        %v3630 = vadd.f32 %v3469, %v3629
        %v3631 = vpop.f32.mrf.mxu0
        %v3632 = vpop.f32.mrf.mxu0
        %v3633 = vadd.f32 %v3472, %v3632
        %v3634 = vpop.f32.mrf.mxu0
        %3635 = vmatprep.mubr.bf16.mxu0 0
        %3636 = vmatmul.mubr.bf16.gmra.mxu0 %v3148
        %v3637 = vpop.f32.mrf.mxu0
        %v3638 = vadd.f32 %v3477, %v3637
        %v3639 = vpop.f32.mrf.mxu0
        %v3640 = vpop.f32.mrf.mxu0
        %v3641 = vadd.f32 %v3480, %v3640
        %v3642 = vpop.f32.mrf.mxu0
        %3643 = vmatprep.mubr.bf16.mxu0 0
        %3644 = vmatmul.mubr.bf16.gmra.mxu0 %v3149
        %v3645 = vpop.f32.mrf.mxu0
        %v3646 = vadd.f32 %v3485, %v3645
        %v3647 = vpop.f32.mrf.mxu0
        %v3648 = vpop.f32.mrf.mxu0
        %v3649 = vadd.f32 %v3488, %v3648
        %v3650 = vpop.f32.mrf.mxu0
        %3651 = vmatprep.mubr.bf16.mxu0 0
        %3652 = vmatmul.mubr.bf16.gmra.mxu0 %v3150
        %v3653 = vpop.f32.mrf.mxu0
        %v3654 = vadd.f32 %v3493, %v3653
        %v3655 = vpop.f32.mrf.mxu0
        %v3656 = vpop.f32.mrf.mxu0
        %v3657 = vadd.f32 %v3496, %v3656
        %v3658 = vpop.f32.mrf.mxu0
        %3659 = vmatprep.mubr.bf16.mxu0 0
        %3660 = vmatmul.mubr.bf16.gmra.mxu0 %v3151
        %v3661 = vpop.f32.mrf.mxu0
        %v3662 = vadd.f32 %v3501, %v3661
        %v3663 = vpop.f32.mrf.mxu0
        %v3664 = vpop.f32.mrf.mxu0
        %v3665 = vadd.f32 %v3504, %v3664
        %v3666 = vpop.f32.mrf.mxu0
        %3667 = vmatprep.mubr.bf16.mxu0 0
        %3668 = vmatmul.mubr.bf16.gmra.mxu0 %v3152
        %v3669 = vpop.f32.mrf.mxu0
        %v3670 = vadd.f32 %v3509, %v3669
        %v3671 = vpop.f32.mrf.mxu0
        %v3672 = vpop.f32.mrf.mxu0
        %v3673 = vadd.f32 %v3512, %v3672
        %v3674 = vpop.f32.mrf.mxu0
        %3675 = vmatprep.mubr.bf16.mxu0 0
        %3676 = vmatmul.mubr.bf16.gmra.mxu0 %v3153
        %v3677 = vpop.f32.mrf.mxu0
        %v3678 = vadd.f32 %v3517, %v3677
        %v3679 = vpop.f32.mrf.mxu0
        %v3680 = vpop.f32.mrf.mxu0
        %v3681 = vadd.f32 %v3520, %v3680
        %v3682 = vpop.f32.mrf.mxu0
        %3683 = vdwg.mxu0
        %v3684 = vld [vmem:[%s4] sm:$0x1]
        %v3685 = vlaneseq
        %v3686 = vshrl.u32 %v3685, 7
        %v3687 = vsub.s32 0, %v3686
        %v3688 = vrot.slane %v3684, %v3687
        %v3689 = vmul.f32 %v3558, %v3688
        %v3690 = vmul.f32 %v3561, %v3688
        %v3691 = vmul.f32 %v3566, %v3688
        %v3692 = vmul.f32 %v3569, %v3688
        %v3693 = vmul.f32 %v3574, %v3688
        %v3694 = vmul.f32 %v3577, %v3688
        %v3695 = vmul.f32 %v3582, %v3688
        %v3696 = vmul.f32 %v3585, %v3688
        %v3697 = vmul.f32 %v3590, %v3688
        %v3698 = vmul.f32 %v3593, %v3688
        %v3699 = vmul.f32 %v3598, %v3688
        %v3700 = vmul.f32 %v3601, %v3688
        %v3701 = vmul.f32 %v3606, %v3688
        %v3702 = vmul.f32 %v3609, %v3688
        %v3703 = vmul.f32 %v3614, %v3688
        %v3704 = vmul.f32 %v3617, %v3688
        %v3705 = vmul.f32 %v3622, %v3688
        %v3706 = vmul.f32 %v3625, %v3688
        %v3707 = vmul.f32 %v3630, %v3688
        %v3708 = vmul.f32 %v3633, %v3688
        %v3709 = vmul.f32 %v3638, %v3688
        %v3710 = vmul.f32 %v3641, %v3688
        %v3711 = vmul.f32 %v3646, %v3688
        %v3712 = vmul.f32 %v3649, %v3688
        %v3713 = vmul.f32 %v3654, %v3688
        %v3714 = vmul.f32 %v3657, %v3688
        %v3715 = vmul.f32 %v3662, %v3688
        %v3716 = vmul.f32 %v3665, %v3688
        %v3717 = vmul.f32 %v3670, %v3688
        %v3718 = vmul.f32 %v3673, %v3688
        %v3719 = vmul.f32 %v3678, %v3688
        %v3720 = vmul.f32 %v3681, %v3688
        %v3721 = vld [vmem:[%s4 + $0x1] sm:$0x1]
        %v3722 = vlaneseq
        %v3723 = vshrl.u32 %v3722, 7
        %v3724 = vsub.s32 0, %v3723
        %v3725 = vrot.slane %v3721, %v3724
        %v3726 = vadd.f32 %v3689, %v3725
        %v3727 = vadd.f32 %v3690, %v3725
        %v3728 = vadd.f32 %v3691, %v3725
        %v3729 = vadd.f32 %v3692, %v3725
        %v3730 = vadd.f32 %v3693, %v3725
        %v3731 = vadd.f32 %v3694, %v3725
        %v3732 = vadd.f32 %v3695, %v3725
        %v3733 = vadd.f32 %v3696, %v3725
        %v3734 = vadd.f32 %v3697, %v3725
        %v3735 = vadd.f32 %v3698, %v3725
        %v3736 = vadd.f32 %v3699, %v3725
        %v3737 = vadd.f32 %v3700, %v3725
        %v3738 = vadd.f32 %v3701, %v3725
        %v3739 = vadd.f32 %v3702, %v3725
        %v3740 = vadd.f32 %v3703, %v3725
        %v3741 = vadd.f32 %v3704, %v3725
        %v3742 = vadd.f32 %v3705, %v3725
        %v3743 = vadd.f32 %v3706, %v3725
        %v3744 = vadd.f32 %v3707, %v3725
        %v3745 = vadd.f32 %v3708, %v3725
        %v3746 = vadd.f32 %v3709, %v3725
        %v3747 = vadd.f32 %v3710, %v3725
        %v3748 = vadd.f32 %v3711, %v3725
        %v3749 = vadd.f32 %v3712, %v3725
        %v3750 = vadd.f32 %v3713, %v3725
        %v3751 = vadd.f32 %v3714, %v3725
        %v3752 = vadd.f32 %v3715, %v3725
        %v3753 = vadd.f32 %v3716, %v3725
        %v3754 = vadd.f32 %v3717, %v3725
        %v3755 = vadd.f32 %v3718, %v3725
        %v3756 = vadd.f32 %v3719, %v3725
        %v3757 = vadd.f32 %v3720, %v3725
        %v3758 = vxor.u32 %v3726, 2147483648
        %v3759 = vxor.u32 %v3727, 2147483648
        %v3760 = vxor.u32 %v3728, 2147483648
        %v3761 = vxor.u32 %v3729, 2147483648
        %v3762 = vxor.u32 %v3730, 2147483648
        %v3763 = vxor.u32 %v3731, 2147483648
        %v3764 = vxor.u32 %v3732, 2147483648
        %v3765 = vxor.u32 %v3733, 2147483648
        %v3766 = vxor.u32 %v3734, 2147483648
        %v3767 = vxor.u32 %v3735, 2147483648
        %v3768 = vxor.u32 %v3736, 2147483648
        %v3769 = vxor.u32 %v3737, 2147483648
        %v3770 = vxor.u32 %v3738, 2147483648
        %v3771 = vxor.u32 %v3739, 2147483648
        %v3772 = vxor.u32 %v3740, 2147483648
        %v3773 = vxor.u32 %v3741, 2147483648
        %v3774 = vxor.u32 %v3742, 2147483648
        %v3775 = vxor.u32 %v3743, 2147483648
        %v3776 = vxor.u32 %v3744, 2147483648
        %v3777 = vxor.u32 %v3745, 2147483648
        %v3778 = vxor.u32 %v3746, 2147483648
        %v3779 = vxor.u32 %v3747, 2147483648
        %v3780 = vxor.u32 %v3748, 2147483648
        %v3781 = vxor.u32 %v3749, 2147483648
        %v3782 = vxor.u32 %v3750, 2147483648
        %v3783 = vxor.u32 %v3751, 2147483648
        %v3784 = vxor.u32 %v3752, 2147483648
        %v3785 = vxor.u32 %v3753, 2147483648
        %v3786 = vxor.u32 %v3754, 2147483648
        %v3787 = vxor.u32 %v3755, 2147483648
        %v3788 = vxor.u32 %v3756, 2147483648
        %v3789 = vxor.u32 %v3757, 2147483648
        %v3790 = vmul.f32 %v3758, 1.442695
        %v3791 = vpow.pop %v3790
        %v3792 = vmul.f32 %v3759, 1.442695
        %v3793 = vpow.pop %v3792
        %v3794 = vmul.f32 %v3760, 1.442695
        %v3795 = vpow.pop %v3794
        %v3796 = vmul.f32 %v3761, 1.442695
        %v3797 = vpow.pop %v3796
        %v3798 = vmul.f32 %v3762, 1.442695
        %v3799 = vpow.pop %v3798
        %v3800 = vmul.f32 %v3763, 1.442695
        %v3801 = vpow.pop %v3800
        %v3802 = vmul.f32 %v3764, 1.442695
        %v3803 = vpow.pop %v3802
        %v3804 = vmul.f32 %v3765, 1.442695
        %v3805 = vpow.pop %v3804
        %v3806 = vmul.f32 %v3766, 1.442695
        %v3807 = vpow.pop %v3806
        %v3808 = vmul.f32 %v3767, 1.442695
        %v3809 = vpow.pop %v3808
        %v3810 = vmul.f32 %v3768, 1.442695
        %v3811 = vpow.pop %v3810
        %v3812 = vmul.f32 %v3769, 1.442695
        %v3813 = vpow.pop %v3812
        %v3814 = vmul.f32 %v3770, 1.442695
        %v3815 = vpow.pop %v3814
        %v3816 = vmul.f32 %v3771, 1.442695
        %v3817 = vpow.pop %v3816
        %v3818 = vmul.f32 %v3772, 1.442695
        %v3819 = vpow.pop %v3818
        %v3820 = vmul.f32 %v3773, 1.442695
        %v3821 = vpow.pop %v3820
        %v3822 = vmul.f32 %v3774, 1.442695
        %v3823 = vpow.pop %v3822
        %v3824 = vmul.f32 %v3775, 1.442695
        %v3825 = vpow.pop %v3824
        %v3826 = vmul.f32 %v3776, 1.442695
        %v3827 = vpow.pop %v3826
        %v3828 = vmul.f32 %v3777, 1.442695
        %v3829 = vpow.pop %v3828
        %v3830 = vmul.f32 %v3778, 1.442695
        %v3831 = vpow.pop %v3830
        %v3832 = vmul.f32 %v3779, 1.442695
        %v3833 = vpow.pop %v3832
        %v3834 = vmul.f32 %v3780, 1.442695
        %v3835 = vpow.pop %v3834
        %v3836 = vmul.f32 %v3781, 1.442695
        %v3837 = vpow.pop %v3836
        %v3838 = vmul.f32 %v3782, 1.442695
        %v3839 = vpow.pop %v3838
        %v3840 = vmul.f32 %v3783, 1.442695
        %v3841 = vpow.pop %v3840
        %v3842 = vmul.f32 %v3784, 1.442695
        %v3843 = vpow.pop %v3842
        %v3844 = vmul.f32 %v3785, 1.442695
        %v3845 = vpow.pop %v3844
        %v3846 = vmul.f32 %v3786, 1.442695
        %v3847 = vpow.pop %v3846
        %v3848 = vmul.f32 %v3787, 1.442695
        %v3849 = vpow.pop %v3848
        %v3850 = vmul.f32 %v3788, 1.442695
        %v3851 = vpow.pop %v3850
        %v3852 = vmul.f32 %v3789, 1.442695
        %v3853 = vpow.pop %v3852
        %v3854 = vadd.f32 %v3791, 1.0
        %v3855 = vadd.f32 %v3793, 1.0
        %v3856 = vadd.f32 %v3795, 1.0
        %v3857 = vadd.f32 %v3797, 1.0
        %v3858 = vadd.f32 %v3799, 1.0
        %v3859 = vadd.f32 %v3801, 1.0
        %v3860 = vadd.f32 %v3803, 1.0
        %v3861 = vadd.f32 %v3805, 1.0
        %v3862 = vadd.f32 %v3807, 1.0
        %v3863 = vadd.f32 %v3809, 1.0
        %v3864 = vadd.f32 %v3811, 1.0
        %v3865 = vadd.f32 %v3813, 1.0
        %v3866 = vadd.f32 %v3815, 1.0
        %v3867 = vadd.f32 %v3817, 1.0
        %v3868 = vadd.f32 %v3819, 1.0
        %v3869 = vadd.f32 %v3821, 1.0
        %v3870 = vadd.f32 %v3823, 1.0
        %v3871 = vadd.f32 %v3825, 1.0
        %v3872 = vadd.f32 %v3827, 1.0
        %v3873 = vadd.f32 %v3829, 1.0
        %v3874 = vadd.f32 %v3831, 1.0
        %v3875 = vadd.f32 %v3833, 1.0
        %v3876 = vadd.f32 %v3835, 1.0
        %v3877 = vadd.f32 %v3837, 1.0
        %v3878 = vadd.f32 %v3839, 1.0
        %v3879 = vadd.f32 %v3841, 1.0
        %v3880 = vadd.f32 %v3843, 1.0
        %v3881 = vadd.f32 %v3845, 1.0
        %v3882 = vadd.f32 %v3847, 1.0
        %v3883 = vadd.f32 %v3849, 1.0
        %v3884 = vadd.f32 %v3851, 1.0
        %v3885 = vadd.f32 %v3853, 1.0
        %v3886 = vrcp.pop %v3854
        %v3887 = vmul.f32 1.0, %v3886
        %v3888 = vrcp.pop %v3855
        %v3889 = vmul.f32 1.0, %v3888
        %v3890 = vrcp.pop %v3856
        %v3891 = vmul.f32 1.0, %v3890
        %v3892 = vrcp.pop %v3857
        %v3893 = vmul.f32 1.0, %v3892
        %v3894 = vrcp.pop %v3858
        %v3895 = vmul.f32 1.0, %v3894
        %v3896 = vrcp.pop %v3859
        %v3897 = vmul.f32 1.0, %v3896
        %v3898 = vrcp.pop %v3860
        %v3899 = vmul.f32 1.0, %v3898
        %v3900 = vrcp.pop %v3861
        %v3901 = vmul.f32 1.0, %v3900
        %v3902 = vrcp.pop %v3862
        %v3903 = vmul.f32 1.0, %v3902
        %v3904 = vrcp.pop %v3863
        %v3905 = vmul.f32 1.0, %v3904
        %v3906 = vrcp.pop %v3864
        %v3907 = vmul.f32 1.0, %v3906
        %v3908 = vrcp.pop %v3865
        %v3909 = vmul.f32 1.0, %v3908
        %v3910 = vrcp.pop %v3866
        %v3911 = vmul.f32 1.0, %v3910
        %v3912 = vrcp.pop %v3867
        %v3913 = vmul.f32 1.0, %v3912
        %v3914 = vrcp.pop %v3868
        %v3915 = vmul.f32 1.0, %v3914
        %v3916 = vrcp.pop %v3869
        %v3917 = vmul.f32 1.0, %v3916
        %v3918 = vrcp.pop %v3870
        %v3919 = vmul.f32 1.0, %v3918
        %v3920 = vrcp.pop %v3871
        %v3921 = vmul.f32 1.0, %v3920
        %v3922 = vrcp.pop %v3872
        %v3923 = vmul.f32 1.0, %v3922
        %v3924 = vrcp.pop %v3873
        %v3925 = vmul.f32 1.0, %v3924
        %v3926 = vrcp.pop %v3874
        %v3927 = vmul.f32 1.0, %v3926
        %v3928 = vrcp.pop %v3875
        %v3929 = vmul.f32 1.0, %v3928
        %v3930 = vrcp.pop %v3876
        %v3931 = vmul.f32 1.0, %v3930
        %v3932 = vrcp.pop %v3877
        %v3933 = vmul.f32 1.0, %v3932
        %v3934 = vrcp.pop %v3878
        %v3935 = vmul.f32 1.0, %v3934
        %v3936 = vrcp.pop %v3879
        %v3937 = vmul.f32 1.0, %v3936
        %v3938 = vrcp.pop %v3880
        %v3939 = vmul.f32 1.0, %v3938
        %v3940 = vrcp.pop %v3881
        %v3941 = vmul.f32 1.0, %v3940
        %v3942 = vrcp.pop %v3882
        %v3943 = vmul.f32 1.0, %v3942
        %v3944 = vrcp.pop %v3883
        %v3945 = vmul.f32 1.0, %v3944
        %v3946 = vrcp.pop %v3884
        %v3947 = vmul.f32 1.0, %v3946
        %v3948 = vrcp.pop %v3885
        %v3949 = vmul.f32 1.0, %v3948
        %v3950 = vmul.f32 %v3726, %v3887
        %v3951 = vmul.f32 %v3727, %v3889
        %v3952 = vmul.f32 %v3728, %v3891
        %v3953 = vmul.f32 %v3729, %v3893
        %v3954 = vmul.f32 %v3730, %v3895
        %v3955 = vmul.f32 %v3731, %v3897
        %v3956 = vmul.f32 %v3732, %v3899
        %v3957 = vmul.f32 %v3733, %v3901
        %v3958 = vmul.f32 %v3734, %v3903
        %v3959 = vmul.f32 %v3735, %v3905
        %v3960 = vmul.f32 %v3736, %v3907
        %v3961 = vmul.f32 %v3737, %v3909
        %v3962 = vmul.f32 %v3738, %v3911
        %v3963 = vmul.f32 %v3739, %v3913
        %v3964 = vmul.f32 %v3740, %v3915
        %v3965 = vmul.f32 %v3741, %v3917
        %v3966 = vmul.f32 %v3742, %v3919
        %v3967 = vmul.f32 %v3743, %v3921
        %v3968 = vmul.f32 %v3744, %v3923
        %v3969 = vmul.f32 %v3745, %v3925
        %v3970 = vmul.f32 %v3746, %v3927
        %v3971 = vmul.f32 %v3747, %v3929
        %v3972 = vmul.f32 %v3748, %v3931
        %v3973 = vmul.f32 %v3749, %v3933
        %v3974 = vmul.f32 %v3750, %v3935
        %v3975 = vmul.f32 %v3751, %v3937
        %v3976 = vmul.f32 %v3752, %v3939
        %v3977 = vmul.f32 %v3753, %v3941
        %v3978 = vmul.f32 %v3754, %v3943
        %v3979 = vmul.f32 %v3755, %v3945
        %v3980 = vmul.f32 %v3756, %v3947
        %v3981 = vmul.f32 %v3757, %v3949
        %v3982 = vunpack.c.l.bf16 %v275
        %v3983 = vunpack.c.l.bf16 %v276
        %v3984 = vunpack.c.l.bf16 %v277
        %v3985 = vunpack.c.l.bf16 %v278
        %v3986 = vunpack.c.l.bf16 %v279
        %v3987 = vunpack.c.l.bf16 %v280
        %v3988 = vunpack.c.l.bf16 %v281
        %v3989 = vunpack.c.l.bf16 %v282
        %v3990 = vunpack.c.l.bf16 %v283
        %v3991 = vunpack.c.l.bf16 %v284
        %v3992 = vunpack.c.l.bf16 %v285
        %v3993 = vunpack.c.l.bf16 %v286
        %v3994 = vunpack.c.l.bf16 %v287
        %v3995 = vunpack.c.l.bf16 %v288
        %v3996 = vunpack.c.l.bf16 %v289
        %v3997 = vunpack.c.l.bf16 %v290
        %v3998 = vunpack.c.l.bf16 %v291
        %v3999 = vunpack.c.l.bf16 %v292
        %v4000 = vunpack.c.l.bf16 %v293
        %v4001 = vunpack.c.l.bf16 %v294
        %v4002 = vunpack.c.l.bf16 %v295
        %v4003 = vunpack.c.l.bf16 %v296
        %v4004 = vunpack.c.l.bf16 %v297
        %v4005 = vunpack.c.l.bf16 %v298
        %v4006 = vunpack.c.l.bf16 %v299
        %v4007 = vunpack.c.l.bf16 %v300
        %v4008 = vunpack.c.l.bf16 %v301
        %v4009 = vunpack.c.l.bf16 %v302
        %v4010 = vunpack.c.l.bf16 %v303
        %v4011 = vunpack.c.l.bf16 %v304
        %v4012 = vunpack.c.l.bf16 %v305
        %v4013 = vunpack.c.l.bf16 %v306
        %v4014 = vadd.f32 %v3950, %v3982
        %v4015 = vadd.f32 %v3951, %v3983
        %v4016 = vadd.f32 %v3952, %v3984
        %v4017 = vadd.f32 %v3953, %v3985
        %v4018 = vadd.f32 %v3954, %v3986
        %v4019 = vadd.f32 %v3955, %v3987
        %v4020 = vadd.f32 %v3956, %v3988
        %v4021 = vadd.f32 %v3957, %v3989
        %v4022 = vadd.f32 %v3958, %v3990
        %v4023 = vadd.f32 %v3959, %v3991
        %v4024 = vadd.f32 %v3960, %v3992
        %v4025 = vadd.f32 %v3961, %v3993
        %v4026 = vadd.f32 %v3962, %v3994
        %v4027 = vadd.f32 %v3963, %v3995
        %v4028 = vadd.f32 %v3964, %v3996
        %v4029 = vadd.f32 %v3965, %v3997
        %v4030 = vadd.f32 %v3966, %v3998
        %v4031 = vadd.f32 %v3967, %v3999
        %v4032 = vadd.f32 %v3968, %v4000
        %v4033 = vadd.f32 %v3969, %v4001
        %v4034 = vadd.f32 %v3970, %v4002
        %v4035 = vadd.f32 %v3971, %v4003
        %v4036 = vadd.f32 %v3972, %v4004
        %v4037 = vadd.f32 %v3973, %v4005
        %v4038 = vadd.f32 %v3974, %v4006
        %v4039 = vadd.f32 %v3975, %v4007
        %v4040 = vadd.f32 %v3976, %v4008
        %v4041 = vadd.f32 %v3977, %v4009
        %v4042 = vadd.f32 %v3978, %v4010
        %v4043 = vadd.f32 %v3979, %v4011
        %v4044 = vadd.f32 %v3980, %v4012
        %v4045 = vadd.f32 %v3981, %v4013
        %4046 = vst [vmem:[%s271] sm:$0xff] %v4014
        %4047 = vst [vmem:[%s271 + $0x8] sm:$0xff] %v4015
        %4048 = vst [vmem:[%s271 + $0x10] sm:$0xff] %v4016
        %4049 = vst [vmem:[%s271 + $0x18] sm:$0xff] %v4017
        %4050 = vst [vmem:[%s271 + $0x20] sm:$0xff] %v4018
        %4051 = vst [vmem:[%s271 + $0x28] sm:$0xff] %v4019
        %4052 = vst [vmem:[%s271 + $0x30] sm:$0xff] %v4020
        %4053 = vst [vmem:[%s271 + $0x38] sm:$0xff] %v4021
        %4054 = vst [vmem:[%s271 + $0x40] sm:$0xff] %v4022
        %4055 = vst [vmem:[%s271 + $0x48] sm:$0xff] %v4023
        %4056 = vst [vmem:[%s271 + $0x50] sm:$0xff] %v4024
        %4057 = vst [vmem:[%s271 + $0x58] sm:$0xff] %v4025
        %4058 = vst [vmem:[%s271 + $0x60] sm:$0xff] %v4026
        %4059 = vst [vmem:[%s271 + $0x68] sm:$0xff] %v4027
        %4060 = vst [vmem:[%s271 + $0x70] sm:$0xff] %v4028
        %4061 = vst [vmem:[%s271 + $0x78] sm:$0xff] %v4029
        %4062 = vst [vmem:[%s271 + $0x80] sm:$0xff] %v4030
        %4063 = vst [vmem:[%s271 + $0x88] sm:$0xff] %v4031
        %4064 = vst [vmem:[%s271 + $0x90] sm:$0xff] %v4032
        %4065 = vst [vmem:[%s271 + $0x98] sm:$0xff] %v4033
        %4066 = vst [vmem:[%s271 + $0xa0] sm:$0xff] %v4034
        %4067 = vst [vmem:[%s271 + $0xa8] sm:$0xff] %v4035
        %4068 = vst [vmem:[%s271 + $0xb0] sm:$0xff] %v4036
        %4069 = vst [vmem:[%s271 + $0xb8] sm:$0xff] %v4037
        %4070 = vst [vmem:[%s271 + $0xc0] sm:$0xff] %v4038
        %4071 = vst [vmem:[%s271 + $0xc8] sm:$0xff] %v4039
        %4072 = vst [vmem:[%s271 + $0xd0] sm:$0xff] %v4040
        %4073 = vst [vmem:[%s271 + $0xd8] sm:$0xff] %v4041
        %4074 = vst [vmem:[%s271 + $0xe0] sm:$0xff] %v4042
        %4075 = vst [vmem:[%s271 + $0xe8] sm:$0xff] %v4043
        %4076 = vst [vmem:[%s271 + $0xf0] sm:$0xff] %v4044
        %4077 = vst [vmem:[%s271 + $0xf8] sm:$0xff] %v4045
        %s4078 = sand.u32 %s141, 1
        %s4079 = scalar_lea.sflag [#allocation6], %s4078
        %s4080 = sand.u32 %s141, 1
        %s4081 = smul.addr %s4080, 256
        %s4082 = scalar_lea.vmem [#allocation10], %s4081
        // Predicated region
        $region53: #{tpu_custom_call.1} parent=39 // pred_check
          %p4083 = pneg %p151
        $region54: #{tpu_custom_call.1} parent=39 // pred_check_branch
          %4085 = sbr.rel (%p4083) target = $region56
        $region55: #{tpu_custom_call.1} parent=39 // pred_region
          %s4087 = ssub.s32 4096, 4096
          %4088 = vsyncadd %s4079, %s4087
          %s4089 = smul.addr %s23, 32
          %s4090 = smul.addr %s4089, 128
          %s4091 = scalar_lea.hbm %s5, %s4090
          %s4092 = sshll.u32 %s4082, 4
          %s4093 = int_to_ptr.vmem [resolvable:$true] %s4092
          %4098 = dma.vmem_to_hbm [thread:$0]  %s4093, 4096, %s4091, %s4079, 128, 128, 8
        $region56: #{tpu_custom_call.1} parent=39 // pred_fallthru
          _
      $region40: #{tpu_custom_call.1} parent=5 // pred_fallthru
        _
      %p4099 = scmp.le.s32.totalorder 2, %s18
      // Predicated region
      $region57: #{tpu_custom_call.1} parent=5 // pred_check
        %p4100 = pneg %p4099
      $region58: #{tpu_custom_call.1} parent=5 // pred_check_branch
        %4102 = sbr.rel (%p4100) target = $region60
      $region59: #{tpu_custom_call.1} parent=5 // pred_region
        %s4103 = ssub.s32 %s18, 2
        // Predicated region
        $region61: #{tpu_custom_call.1} parent=59 // pred_check
          %p4104 = pneg %p157
        $region62: #{tpu_custom_call.1} parent=59 // pred_check_branch
          %4106 = sbr.rel (%p4104) target = $region64
        $region63: #{tpu_custom_call.1} parent=59 // pred_region
          %s4107 = sand.u32 %s142, 1
          %s4108 = scalar_lea.sflag [#allocation6], %s4107
          %s4109 = sand.u32 %s142, 1
          %s4110 = smul.addr %s4109, 256
          %s4111 = scalar_lea.vmem [#allocation10], %s4110
          %4112 = dma.done %s4108, 4096
        $region64: #{tpu_custom_call.1} parent=59 // pred_fallthru
          _
      $region60: #{tpu_custom_call.1} parent=5 // pred_fallthru
        _
    $region6: #{tpu_custom_call.1} parent=1 // loop_footer
      %s22 = sadd.s32 1, %s18
    $region7: #{tpu_custom_call.1} parent=1 // loop_footer_branch
      %17 = sbr.rel target = $region3
    $region8: #{tpu_custom_call.1} parent=1 // loop_exit
      _
    %4113 = vsyncpa [#allocation5], 1
    %s4114 = scalar_lea.sflag [#allocation5], 1
    %4115 = vsyncpa %s4114, 1
    %4116 = vsyncpa [#allocation8], 1
    %4117 = vsyncpa [#allocation6], 1
    %s4118 = scalar_lea.sflag [#allocation6], 1
    %4119 = vsyncpa %s4118, 1

</llo_original>
